<compile_context>
chip_gen: v5e
topology: v5e:2x2
jax: 0.10.0
libtpu: 0.0.40
codegen_flags: <defaults>
</compile_context>

<pallas_src>
import functools

import jax
import jax.numpy as jnp
from jax import lax
from jax.experimental import pallas as pl
from jax.experimental.pallas import tpu as pltpu


def _round_up(x, m):
    return (x + m - 1) // m * m


def _mish(x):
    # mish(x) = x * tanh(softplus(x)); single-exp rewrite:
    #   tanh(log1p(u)) = u*(u+2) / (u*(u+2) + 2), u = e^x
    # PyTorch-style softplus threshold at 20 (mish(x) -> x for large x).
    u = jnp.exp(jnp.minimum(x, 20.0))
    n = u * (u + 2.0)
    t = n / (n + 2.0)
    return jnp.where(x > 20.0, x, x * t)


def _mish_ref(x):
    # Straightforward form (exp + log1p + tanh) used only by the JAX reference.
    sp = jnp.where(x > 20.0, x, jnp.log1p(jnp.exp(jnp.minimum(x, 20.0))))
    return x * jnp.tanh(sp)


def _csp_fused_kernel(x_ref, x_hbm, w1_ref, s1_ref, b1_ref, w2_ref, s2_ref,
                      b2_ref, o_ref, slab, halo, sem, *, w_valid, cdtype):
    # x_ref : (TH, Wp, Cp)       current row band of x (pipelined, VMEM, f32)
    # x_hbm : (N*H, Wp, Cp)      full x in HBM (pl.ANY) for halo rows
    # w1    : (Cp, Chp)          1x1 conv weight (BN folded via s1/b1)
    # w2    : (3, 3*Chp, Cop)    3x3 conv weight, kw folded into the K dim
    # slab  : (TH+2, Wp, 3*Chp)  kw-replicated, zero-padded hidden band
    # halo  : (2, Wp, Cp)        x rows above / below the band (scratch, f32)
    b = pl.program_id(0)
    i = pl.program_id(1)
    nb = pl.num_programs(1)
    th, wp, cinp = x_ref.shape
    chidp = w1_ref.shape[1]
    coutp = w2_ref.shape[2]
    m = th * wp
    c0, c1, c2, c3 = 0, chidp, 2 * chidp, 3 * chidp

    # ---- Halo DMAs: issue immediately, wait only after the core 1x1 conv ----
    r0 = (b * nb + i) * th
    total_rows = pl.num_programs(0) * nb * th
    top_row = jnp.maximum(r0 - 1, 0)            # clamped -> always a valid copy
    bot_row = jnp.minimum(r0 + th, total_rows - 1)
    cp_top = pltpu.make_async_copy(x_hbm.at[top_row], halo.at[0], sem.at[0])
    cp_bot = pltpu.make_async_copy(x_hbm.at[bot_row], halo.at[1], sem.at[1])
    cp_top.start()
    cp_bot.start()

    w1 = w1_ref[...]
    s1 = s1_ref[...]
    b1 = b1_ref[...]

    def conv1_rows(rows2d):  # (R, Cp) -> (R, Chp): 1x1 conv + folded BN + Mish
        h = jnp.dot(rows2d.astype(cdtype), w1,
                    preferred_element_type=jnp.float32)
        return _mish(h * s1 + b1).astype(cdtype)

    # ---- Core band: 1x1 conv (overlaps the halo DMAs), centre (kw=1) block --
    xb = x_ref[...]                                         # (TH, Wp, Cp) f32
    core = conv1_rows(xb.reshape(m, cinp)).reshape(th, wp, chidp)
    slab[1:th + 1, :, c1:c2] = core

    # ---- Halo rows: recompute the cheap 1x1 conv; image boundaries are the
    #      3x3 conv's zero padding of the *hidden* tensor (exactly zero). -----
    cp_top.wait()
    cp_bot.wait()

    @pl.when(i > 0)
    def _():
        slab[0, :, c1:c2] = conv1_rows(halo[0])

    @pl.when(i == 0)
    def _():
        slab[0, :, c1:c2] = jnp.zeros((wp, chidp), cdtype)

    @pl.when(i < nb - 1)
    def _():
        slab[th + 1, :, c1:c2] = conv1_rows(halo[1])

    @pl.when(i == nb - 1)
    def _():
        slab[th + 1, :, c1:c2] = jnp.zeros((wp, chidp), cdtype)

    if w_valid != wp:
        # Zero the hidden of the W-padding columns (static branch; keeps the
        # right-edge zero padding exact when W was padded up to a multiple of 8).
        slab[:, w_valid:wp, c1:c2] = jnp.zeros((th + 2, wp - w_valid, chidp),
                                               cdtype)

    # ---- kw shifts hoisted: build the kw=0 / kw=2 blocks once from the centre
    #      block, so the 3x3 conv becomes 3 matmuls with K = 3*Chid. ----------
    slab[:, 0:1, c0:c1] = jnp.zeros((th + 2, 1, chidp), cdtype)      # left pad
    slab[:, 1:wp, c0:c1] = slab[:, 0:wp - 1, c1:c2]
    slab[:, wp - 1:wp, c2:c3] = jnp.zeros((th + 2, 1, chidp), cdtype)  # right pad
    slab[:, 0:wp - 1, c2:c3] = slab[:, 1:wp, c1:c2]

    # ---- 3x3 conv: 3 MXU matmuls, value-level f32 accumulator. --------------
    acc = jnp.dot(slab[0:th].reshape(m, c3), w2_ref[0],
                  preferred_element_type=jnp.float32)
    acc = acc + jnp.dot(slab[1:th + 1].reshape(m, c3), w2_ref[1],
                        preferred_element_type=jnp.float32)
    acc = acc + jnp.dot(slab[2:th + 2].reshape(m, c3), w2_ref[2],
                        preferred_element_type=jnp.float32)

    # ---- Folded BN + Mish + residual; aligned, lane-dense store. ------------
    y = _mish(acc * s2_ref[...] + b2_ref[...])              # (M, Cop) f32
    o_ref[...] = (y.reshape(th, wp, coutp) + xb).astype(o_ref.dtype)


def _vmem_limit_bytes():
    """Generation-aware VMEM budget: ~3/4 of per-core VMEM.

    v5e/v6e: 128 MiB -> 96 MiB;  v7x: 64 MiB (per TensorCore) -> 48 MiB.
    Falls back to the conservative 64 MiB assumption if the query fails.
    """
    cap = 64 * 1024 * 1024
    try:
        info = pltpu.get_tpu_info()
        cap = int(getattr(info, "vmem_capacity_bytes", cap)) or cap
    except Exception:
        pass
    cap = max(32 * 1024 * 1024, min(cap, 128 * 1024 * 1024))
    return (cap * 3) // 4


def _pick_tile_h(n_images, h, wp, cinp, chidp, coutp, cbytes, budget):
    """Largest divisor of H that fits the VMEM budget; stop growing once the
    matmul M-dim (tile_h * W) reaches ~512 rows so the grid keeps >= 2 steps
    (v7x megacore) and pipelining stays deep."""
    target_rows = max(1, pl.cdiv(512, wp))

    def band_bytes(th):
        m = th * wp
        pipe = 2 * m * (cinp + coutp) * 4                 # double-buffered bands
        slab = (th + 2) * wp * 3 * chidp * cbytes         # kw-folded hidden slab
        vals = m * chidp * (cbytes + 4)                   # core + conv1 f32 acc
        vals += m * (cinp + 2 * coutp) * 4                # xb + acc + y
        return pipe + slab + vals + 2 * wp * cinp * 4     # + halo scratch

    best = 1
    for d in range(1, h + 1):
        if h % d:
            continue
        if band_bytes(d) > budget:
            break
        best = d
        if d >= target_rows:
            break
    # Keep at least 2 grid steps when possible (v7x has 2 TensorCores).
    if n_images * (h // best) < 2:
        for d in range(best - 1, 0, -1):
            if h % d == 0:
                best = d
                break
    return best


def csp_block(x_nchw, params, tile_h=None, compute_dtype=None):
    """Forward of CSPBlock; input/output in NCHW like PyTorch.

    compute_dtype defaults to bf16 (MXU throughput on v5e/v6e/v7x); both conv
    accumulations and all VPU math (BN, Mish, residual) stay f32. Pass
    compute_dtype=jnp.float32 for bit-accurate-to-f32 behaviour.
    """
    if compute_dtype is None:
        compute_dtype = jnp.bfloat16

    x = jnp.transpose(x_nchw, (0, 2, 3, 1)).astype(jnp.float32)   # -> NHWC
    n, h, w, cin = x.shape
    w1 = params["w1"]
    chid = w1.shape[1]
    w2 = params["w2"]
    cout = w2.shape[3]
    if cin != cout:
        raise ValueError("CSPBlock residual requires in_channels == out_channels")

    lane = 128
    cinp = _round_up(cin, lane)
    chidp = _round_up(chid, lane)
    coutp = _round_up(cout, lane)
    wp = _round_up(w, 8)          # sublane-aligned W
    cbytes = jnp.dtype(compute_dtype).itemsize

    # Lane-pad channels, sublane-pad W (zeros), flatten pixels to (N*H, Wp, C).
    xf = jnp.pad(x, ((0, 0), (0, 0), (0, wp - w), (0, cinp - cin)))
    xf = xf.reshape(n * h, wp, cinp)
    w1p = jnp.pad(w1, ((0, cinp - cin), (0, chidp - chid))).astype(compute_dtype)
    s1p = jnp.pad(params["s1"], ((0, 0), (0, chidp - chid)))
    b1p = jnp.pad(params["b1"], ((0, 0), (0, chidp - chid)))
    w2p = jnp.pad(w2, ((0, 0), (0, 0), (0, chidp - chid),
                       (0, coutp - cout))).astype(compute_dtype)
    w2r = w2p.reshape(3, 3 * chidp, coutp)     # fold kw into the contraction dim
    s2p = jnp.pad(params["s2"], ((0, 0), (0, coutp - cout)))
    b2p = jnp.pad(params["b2"], ((0, 0), (0, coutp - cout)))

    vmem_limit = _vmem_limit_bytes()
    if tile_h is None:
        wbytes = 2 * cbytes * (cinp * chidp + 9 * chidp * coutp)  # double-buffered
        tile_h = _pick_tile_h(n, h, wp, cinp, chidp, coutp, cbytes,
                              vmem_limit - wbytes)
    if h % tile_h:
        raise ValueError("tile_h must divide H")
    nb = h // tile_h

    kernel = functools.partial(_csp_fused_kernel, w_valid=w,
                               cdtype=compute_dtype)

    # TODO(synk): on v7x, pl.Buffered(1) on the constant-index weight specs
    # would save a redundant double-buffer copy of w2 at large channel counts.
    out_flat = pl.pallas_call(
        kernel,
        out_shape=jax.ShapeDtypeStruct((n * h, wp, coutp), jnp.float32),
        grid=(n, nb),
        in_specs=[
            pl.BlockSpec((tile_h, wp, cinp), lambda bb, ii: (bb * nb + ii, 0, 0)),
            pl.BlockSpec(memory_space=pl.ANY),                 # full x (halo DMA)
            pl.BlockSpec((cinp, chidp), lambda bb, ii: (0, 0)),
            pl.BlockSpec((1, chidp), lambda bb, ii: (0, 0)),
            pl.BlockSpec((1, chidp), lambda bb, ii: (0, 0)),
            pl.BlockSpec((3, 3 * chidp, coutp), lambda bb, ii: (0, 0, 0)),
            pl.BlockSpec((1, coutp), lambda bb, ii: (0, 0)),
            pl.BlockSpec((1, coutp), lambda bb, ii: (0, 0)),
        ],
        out_specs=pl.BlockSpec((tile_h, wp, coutp),
                               lambda bb, ii: (bb * nb + ii, 0, 0)),
        scratch_shapes=[
            pltpu.VMEM((tile_h + 2, wp, 3 * chidp), compute_dtype),  # kw slab
            pltpu.VMEM((2, wp, cinp), jnp.float32),                  # halo rows
            pltpu.SemaphoreType.DMA((2,)),
        ],
        compiler_params=pltpu.CompilerParams(
            dimension_semantics=("parallel", "parallel"),
            vmem_limit_bytes=int(vmem_limit),
        ),
    )(xf, xf, w1p, s1p, b1p, w2r, s2p, b2p)

    y = out_flat.reshape(n, h, wp, coutp)[:, :, :w, :cout]
    return jnp.transpose(y, (0, 3, 1, 2))                    # -> NCHW


def make_params(key, in_channels, out_channels, hidden_channels=None):
    if hidden_channels is None:
        hidden_channels = out_channels
    ks = jax.random.split(key, 10)
    eps = 1e-5
    # Conv1: PyTorch weight (Chid, Cin, 1, 1) -> (Cin, Chid)
    w1 = 0.1 * jax.random.normal(ks[0], (in_channels, hidden_channels), jnp.float32)
    g1 = 1.0 + 0.1 * jax.random.normal(ks[1], (hidden_channels,), jnp.float32)
    be1 = 0.1 * jax.random.normal(ks[2], (hidden_channels,), jnp.float32)
    m1 = 0.1 * jax.random.normal(ks[3], (hidden_channels,), jnp.float32)
    v1 = jnp.abs(jax.random.normal(ks[4], (hidden_channels,), jnp.float32)) + 0.5
    s1 = g1 / jnp.sqrt(v1 + eps)
    b1 = be1 - m1 * s1
    # Conv2: PyTorch weight (Cout, Chid, 3, 3) -> (3, 3, Chid, Cout) (HWIO)
    w2 = 0.1 * jax.random.normal(ks[5], (3, 3, hidden_channels, out_channels),
                                 jnp.float32)
    g2 = 1.0 + 0.1 * jax.random.normal(ks[6], (out_channels,), jnp.float32)
    be2 = 0.1 * jax.random.normal(ks[7], (out_channels,), jnp.float32)
    m2 = 0.1 * jax.random.normal(ks[8], (out_channels,), jnp.float32)
    v2 = jnp.abs(jax.random.normal(ks[9], (out_channels,), jnp.float32)) + 0.5
    s2 = g2 / jnp.sqrt(v2 + eps)
    b2 = be2 - m2 * s2
    return {
        "w1": w1, "s1": s1.reshape(1, -1), "b1": b1.reshape(1, -1),
        "w2": w2, "s2": s2.reshape(1, -1), "b2": b2.reshape(1, -1),
    }


def csp_block_ref(x_nchw, params):
    """Pure-JAX reference (same inference-mode BN folding, plain Mish form)."""
    x = jnp.transpose(x_nchw, (0, 2, 3, 1)).astype(jnp.float32)
    dn = lax.conv_dimension_numbers(x.shape, (1, 1, 1, 1), ("NHWC", "HWIO", "NHWC"))
    w1 = params["w1"][None, None]                       # (1,1,Cin,Chid)
    h = lax.conv_general_dilated(x, w1, (1, 1), "SAME", dimension_numbers=dn)
    h = h * params["s1"][0] + params["b1"][0]
    h = _mish_ref(h)
    w2 = params["w2"]                                   # (3,3,Chid,Cout)
    dn2 = lax.conv_dimension_numbers(h.shape, w2.shape, ("NHWC", "HWIO", "NHWC"))
    y = lax.conv_general_dilated(h, w2, (1, 1), "SAME", dimension_numbers=dn2)
    y = y * params["s2"][0] + params["b2"][0]
    y = _mish_ref(y)
    y = x + y
    return jnp.transpose(y, (0, 3, 1, 2))


if __name__ == "__main__":
    key = jax.random.PRNGKey(0)
    kx, kp = jax.random.split(key)
    N, C, H, W = 2, 4, 16, 16           # in_channels == out_channels (residual)
    x = jax.random.normal(kx, (N, C, H, W), jnp.float32)
    params = make_params(kp, in_channels=C, out_channels=C)

    ref = jax.block_until_ready(csp_block_ref(x, params))

    # Exact f32 path; tile_h=8 -> grid (2, 2): exercises both the
    # image-boundary and the interior halo-DMA paths.
    out = jax.block_until_ready(
        csp_block(x, params, tile_h=8, compute_dtype=jnp.float32))
    assert out.shape == (N, C, H, W)
    err = float(jnp.max(jnp.abs(out - ref)))
    assert jnp.allclose(out, ref, rtol=1e-4, atol=1e-4), err

    # Default path: generation-aware auto tile sizing + bf16 MXU compute with
    # f32 accumulation; checked at a bf16-appropriate tolerance.
    out_bf = jax.block_until_ready(csp_block(x, params))
    err_bf = float(jnp.max(jnp.abs(out_bf - ref)))
    assert jnp.allclose(out_bf, ref, rtol=5e-2, atol=5e-2), err_bf

    print("KERNEL_OK")
</pallas_src>

<mosaic_0001>
module attributes {stable_mosaic.version = 11 : i64} {
  func.func @_csp_fused_kernel(%arg0: i32, %arg1: i32, %arg2: memref<8x16x128xf32, #tpu.memory_space<vmem>>, %arg3: memref<32x16x128xf32, #tpu.memory_space<any>>, %arg4: memref<128x128xf32, #tpu.memory_space<vmem>>, %arg5: memref<1x128xf32, #tpu.memory_space<vmem>>, %arg6: memref<1x128xf32, #tpu.memory_space<vmem>>, %arg7: memref<3x384x128xf32, #tpu.memory_space<vmem>>, %arg8: memref<1x128xf32, #tpu.memory_space<vmem>>, %arg9: memref<1x128xf32, #tpu.memory_space<vmem>>, %arg10: memref<8x16x128xf32, #tpu.memory_space<vmem>>, %arg11: memref<10x16x384xf32, #tpu.memory_space<vmem>>, %arg12: memref<2x16x128xf32, #tpu.memory_space<vmem>>, %arg13: memref<2x!tpu.dma_semaphore, #tpu.memory_space<semaphore_mem>>) attributes {dimension_semantics = [#tpu.dimension_semantics<parallel>, #tpu.dimension_semantics<parallel>], iteration_bounds = array<i64: 2, 2>, scalar_prefetch = 0 : i64, scratch_operands = 3 : i64, tpu.core_type = #tpu.core_type<tc>, window_params = [{transform_indices = @transform_0, window_bounds = array<i64: 8, 16, 128>}, {}, {pipeline_mode = #tpu.pipeline_mode<synchronous>, transform_indices = @transform_2, window_bounds = array<i64: 128, 128>}, {pipeline_mode = #tpu.pipeline_mode<synchronous>, transform_indices = @transform_3, window_bounds = array<i64: 1, 128>}, {pipeline_mode = #tpu.pipeline_mode<synchronous>, transform_indices = @transform_4, window_bounds = array<i64: 1, 128>}, {pipeline_mode = #tpu.pipeline_mode<synchronous>, transform_indices = @transform_5, window_bounds = array<i64: 3, 384, 128>}, {pipeline_mode = #tpu.pipeline_mode<synchronous>, transform_indices = @transform_6, window_bounds = array<i64: 1, 128>}, {pipeline_mode = #tpu.pipeline_mode<synchronous>, transform_indices = @transform_7, window_bounds = array<i64: 1, 128>}, {transform_indices = @transform_8, window_bounds = array<i64: 8, 16, 128>}]} {
    %c2_i32 = arith.constant 2 : i32
    %0 = arith.muli %arg0, %c2_i32 : i32
    %1 = arith.addi %0, %arg1 : i32
    %c8_i32 = arith.constant 8 : i32
    %2 = arith.muli %1, %c8_i32 : i32
    %c1_i32 = arith.constant 1 : i32
    %3 = arith.subi %2, %c1_i32 : i32
    %c0_i32 = arith.constant 0 : i32
    %4 = arith.maxsi %3, %c0_i32 : i32
    %c8_i32_0 = arith.constant 8 : i32
    %5 = arith.addi %2, %c8_i32_0 : i32
    %c31_i32 = arith.constant 31 : i32
    %6 = arith.minsi %5, %c31_i32 : i32
    %c0_i32_1 = arith.constant 0 : i32
    %c0_i32_2 = arith.constant 0 : i32
    %c0_i32_3 = arith.constant 0 : i32
    %c0_i32_4 = arith.constant 0 : i32
    %7 = tpu.memref_slice %arg3[%4, %c0_i32_3, %c0_i32_4] : memref<32x16x128xf32, #tpu.memory_space<any>> -> memref<1x16x128xf32, #tpu.memory_space<any>>
    %8 = tpu.memref_squeeze %7 : memref<1x16x128xf32, #tpu.memory_space<any>> -> memref<16x128xf32, #tpu.memory_space<any>>
    %c0_i32_5 = arith.constant 0 : i32
    %c0_i32_6 = arith.constant 0 : i32
    %9 = tpu.memref_slice %arg12[%c0_i32_1, %c0_i32_5, %c0_i32_6] : memref<2x16x128xf32, #tpu.memory_space<vmem>> -> memref<1x16x128xf32, #tpu.memory_space<vmem>>
    %10 = tpu.memref_squeeze %9 : memref<1x16x128xf32, #tpu.memory_space<vmem>> -> memref<16x128xf32, #tpu.memory_space<vmem>>
    %11 = tpu.memref_slice %arg13[%c0_i32_2] : memref<2x!tpu.dma_semaphore, #tpu.memory_space<semaphore_mem>> -> memref<1x!tpu.dma_semaphore, #tpu.memory_space<semaphore_mem>>
    %12 = tpu.memref_squeeze %11 : memref<1x!tpu.dma_semaphore, #tpu.memory_space<semaphore_mem>> -> memref<!tpu.dma_semaphore, #tpu.memory_space<semaphore_mem>>
    tpu.enqueue_dma source(%8 : memref<16x128xf32, #tpu.memory_space<any>>) target(%10 : memref<16x128xf32, #tpu.memory_space<vmem>>) target_semaphore(%12 : memref<!tpu.dma_semaphore, #tpu.memory_space<semaphore_mem>>)
    %c1_i32_7 = arith.constant 1 : i32
    %c1_i32_8 = arith.constant 1 : i32
    %c0_i32_9 = arith.constant 0 : i32
    %c0_i32_10 = arith.constant 0 : i32
    %13 = tpu.memref_slice %arg3[%6, %c0_i32_9, %c0_i32_10] : memref<32x16x128xf32, #tpu.memory_space<any>> -> memref<1x16x128xf32, #tpu.memory_space<any>>
    %14 = tpu.memref_squeeze %13 : memref<1x16x128xf32, #tpu.memory_space<any>> -> memref<16x128xf32, #tpu.memory_space<any>>
    %c0_i32_11 = arith.constant 0 : i32
    %c0_i32_12 = arith.constant 0 : i32
    %15 = tpu.memref_slice %arg12[%c1_i32_7, %c0_i32_11, %c0_i32_12] : memref<2x16x128xf32, #tpu.memory_space<vmem>> -> memref<1x16x128xf32, #tpu.memory_space<vmem>>
    %16 = tpu.memref_squeeze %15 : memref<1x16x128xf32, #tpu.memory_space<vmem>> -> memref<16x128xf32, #tpu.memory_space<vmem>>
    %17 = tpu.memref_slice %arg13[%c1_i32_8] : memref<2x!tpu.dma_semaphore, #tpu.memory_space<semaphore_mem>> -> memref<1x!tpu.dma_semaphore, #tpu.memory_space<semaphore_mem>>
    %18 = tpu.memref_squeeze %17 : memref<1x!tpu.dma_semaphore, #tpu.memory_space<semaphore_mem>> -> memref<!tpu.dma_semaphore, #tpu.memory_space<semaphore_mem>>
    tpu.enqueue_dma source(%14 : memref<16x128xf32, #tpu.memory_space<any>>) target(%16 : memref<16x128xf32, #tpu.memory_space<vmem>>) target_semaphore(%18 : memref<!tpu.dma_semaphore, #tpu.memory_space<semaphore_mem>>)
    %c0 = arith.constant 0 : index
    %c0_13 = arith.constant 0 : index
    %19 = vector.load %arg4[%c0, %c0_13] : memref<128x128xf32, #tpu.memory_space<vmem>>, vector<128x128xf32>
    %c0_14 = arith.constant 0 : index
    %c0_15 = arith.constant 0 : index
    %20 = vector.load %arg5[%c0_14, %c0_15] : memref<1x128xf32, #tpu.memory_space<vmem>>, vector<1x128xf32>
    %c0_16 = arith.constant 0 : index
    %c0_17 = arith.constant 0 : index
    %21 = vector.load %arg6[%c0_16, %c0_17] : memref<1x128xf32, #tpu.memory_space<vmem>>, vector<1x128xf32>
    %c0_18 = arith.constant 0 : index
    %c0_19 = arith.constant 0 : index
    %c0_20 = arith.constant 0 : index
    %22 = vector.load %arg2[%c0_18, %c0_19, %c0_20] : memref<8x16x128xf32, #tpu.memory_space<vmem>>, vector<8x16x128xf32>
    %23 = vector.shape_cast %22 : vector<8x16x128xf32> to vector<128x128xf32>
    %cst = arith.constant dense<0.000000e+00> : vector<128x128xf32>
    %24 = tpu.matmul %23, %19, %cst {dimension_numbers = #tpu.dot_dimension_numbers<[1], [0], [0], [1], [0, 0, 1, 1], [], []>} : vector<128x128xf32>, vector<128x128xf32>, vector<128x128xf32> -> vector<128x128xf32>
    %25 = vector.broadcast %20 : vector<1x128xf32> to vector<128x128xf32>
    %26 = arith.mulf %24, %25 : vector<128x128xf32>
    %27 = vector.broadcast %21 : vector<1x128xf32> to vector<128x128xf32>
    %28 = arith.addf %26, %27 : vector<128x128xf32>
    %cst_21 = arith.constant 2.000000e+01 : f32
    %29 = vector.broadcast %cst_21 : f32 to vector<128x128xf32>
    %30 = arith.minimumf %28, %29 : vector<128x128xf32>
    %31 = math.exp %30 : vector<128x128xf32>
    %cst_22 = arith.constant 2.000000e+00 : f32
    %32 = vector.broadcast %cst_22 : f32 to vector<128x128xf32>
    %33 = arith.addf %31, %32 : vector<128x128xf32>
    %34 = arith.mulf %31, %33 : vector<128x128xf32>
    %cst_23 = arith.constant 2.000000e+00 : f32
    %35 = vector.broadcast %cst_23 : f32 to vector<128x128xf32>
    %36 = arith.addf %34, %35 : vector<128x128xf32>
    %37 = arith.divf %34, %36 : vector<128x128xf32>
    %cst_24 = arith.constant 2.000000e+01 : f32
    %38 = vector.broadcast %cst_24 : f32 to vector<128x128xf32>
    %39 = arith.cmpf ogt, %28, %38 : vector<128x128xf32>
    %40 = arith.mulf %28, %37 : vector<128x128xf32>
    %41 = arith.select %39, %28, %40 : vector<128x128xi1>, vector<128x128xf32>
    %42 = vector.shape_cast %41 : vector<128x128xf32> to vector<8x16x128xf32>
    %c1 = arith.constant 1 : index
    %c0_25 = arith.constant 0 : index
    %c128 = arith.constant 128 : index
    %43 = vector.load %arg11[%c1, %c0_25, %c128] : memref<10x16x384xf32, #tpu.memory_space<vmem>>, vector<8x16x128xf32>
    tpu.vector_store %arg11[%c1, %c0_25, %c128], %42 {strides = array<i32>} : memref<10x16x384xf32, #tpu.memory_space<vmem>>, vector<8x16x128xf32>,
    %c0_i32_26 = arith.constant 0 : i32
    %c0_i32_27 = arith.constant 0 : i32
    %c0_i32_28 = arith.constant 0 : i32
    %c0_i32_29 = arith.constant 0 : i32
    %44 = tpu.memref_slice %arg3[%4, %c0_i32_28, %c0_i32_29] : memref<32x16x128xf32, #tpu.memory_space<any>> -> memref<1x16x128xf32, #tpu.memory_space<any>>
    %45 = tpu.memref_squeeze %44 : memref<1x16x128xf32, #tpu.memory_space<any>> -> memref<16x128xf32, #tpu.memory_space<any>>
    %c0_i32_30 = arith.constant 0 : i32
    %c0_i32_31 = arith.constant 0 : i32
    %46 = tpu.memref_slice %arg12[%c0_i32_26, %c0_i32_30, %c0_i32_31] : memref<2x16x128xf32, #tpu.memory_space<vmem>> -> memref<1x16x128xf32, #tpu.memory_space<vmem>>
    %47 = tpu.memref_squeeze %46 : memref<1x16x128xf32, #tpu.memory_space<vmem>> -> memref<16x128xf32, #tpu.memory_space<vmem>>
    %48 = tpu.memref_slice %arg13[%c0_i32_27] : memref<2x!tpu.dma_semaphore, #tpu.memory_space<semaphore_mem>> -> memref<1x!tpu.dma_semaphore, #tpu.memory_space<semaphore_mem>>
    %49 = tpu.memref_squeeze %48 : memref<1x!tpu.dma_semaphore, #tpu.memory_space<semaphore_mem>> -> memref<!tpu.dma_semaphore, #tpu.memory_space<semaphore_mem>>
    tpu.wait_dma2 semaphore(%49 : memref<!tpu.dma_semaphore, #tpu.memory_space<semaphore_mem>>) src(%45 : memref<16x128xf32, #tpu.memory_space<any>>) dst(%47 : memref<16x128xf32, #tpu.memory_space<vmem>>)
    %c1_i32_32 = arith.constant 1 : i32
    %c1_i32_33 = arith.constant 1 : i32
    %c0_i32_34 = arith.constant 0 : i32
    %c0_i32_35 = arith.constant 0 : i32
    %50 = tpu.memref_slice %arg3[%6, %c0_i32_34, %c0_i32_35] : memref<32x16x128xf32, #tpu.memory_space<any>> -> memref<1x16x128xf32, #tpu.memory_space<any>>
    %51 = tpu.memref_squeeze %50 : memref<1x16x128xf32, #tpu.memory_space<any>> -> memref<16x128xf32, #tpu.memory_space<any>>
    %c0_i32_36 = arith.constant 0 : i32
    %c0_i32_37 = arith.constant 0 : i32
    %52 = tpu.memref_slice %arg12[%c1_i32_32, %c0_i32_36, %c0_i32_37] : memref<2x16x128xf32, #tpu.memory_space<vmem>> -> memref<1x16x128xf32, #tpu.memory_space<vmem>>
    %53 = tpu.memref_squeeze %52 : memref<1x16x128xf32, #tpu.memory_space<vmem>> -> memref<16x128xf32, #tpu.memory_space<vmem>>
    %54 = tpu.memref_slice %arg13[%c1_i32_33] : memref<2x!tpu.dma_semaphore, #tpu.memory_space<semaphore_mem>> -> memref<1x!tpu.dma_semaphore, #tpu.memory_space<semaphore_mem>>
    %55 = tpu.memref_squeeze %54 : memref<1x!tpu.dma_semaphore, #tpu.memory_space<semaphore_mem>> -> memref<!tpu.dma_semaphore, #tpu.memory_space<semaphore_mem>>
    tpu.wait_dma2 semaphore(%55 : memref<!tpu.dma_semaphore, #tpu.memory_space<semaphore_mem>>) src(%51 : memref<16x128xf32, #tpu.memory_space<any>>) dst(%53 : memref<16x128xf32, #tpu.memory_space<vmem>>)
    %c0_i32_38 = arith.constant 0 : i32
    %56 = arith.cmpi sgt, %arg1, %c0_i32_38 : i32
    %57 = arith.extui %56 : i1 to i32
    %c0_i32_39 = arith.constant 0 : i32
    %58 = arith.cmpi ne, %57, %c0_i32_39 : i32
    scf.if %58 {
      %c0_95 = arith.constant 0 : index
      %c0_96 = arith.constant 0 : index
      %c0_97 = arith.constant 0 : index
      %115 = vector.load %arg12[%c0_95, %c0_96, %c0_97] : memref<2x16x128xf32, #tpu.memory_space<vmem>>, vector<1x16x128xf32>
      %116 = vector.shape_cast %115 : vector<1x16x128xf32> to vector<16x128xf32>
      %cst_98 = arith.constant dense<0.000000e+00> : vector<16x128xf32>
      %117 = tpu.matmul %116, %19, %cst_98 {dimension_numbers = #tpu.dot_dimension_numbers<[1], [0], [0], [1], [0, 0, 1, 1], [], []>} : vector<16x128xf32>, vector<128x128xf32>, vector<16x128xf32> -> vector<16x128xf32>
      %118 = vector.broadcast %20 : vector<1x128xf32> to vector<16x128xf32>
      %119 = arith.mulf %117, %118 : vector<16x128xf32>
      %120 = vector.broadcast %21 : vector<1x128xf32> to vector<16x128xf32>
      %121 = arith.addf %119, %120 : vector<16x128xf32>
      %cst_99 = arith.constant 2.000000e+01 : f32
      %122 = vector.broadcast %cst_99 : f32 to vector<16x128xf32>
      %123 = arith.minimumf %121, %122 : vector<16x128xf32>
      %124 = math.exp %123 : vector<16x128xf32>
      %cst_100 = arith.constant 2.000000e+00 : f32
      %125 = vector.broadcast %cst_100 : f32 to vector<16x128xf32>
      %126 = arith.addf %124, %125 : vector<16x128xf32>
      %127 = arith.mulf %124, %126 : vector<16x128xf32>
      %cst_101 = arith.constant 2.000000e+00 : f32
      %128 = vector.broadcast %cst_101 : f32 to vector<16x128xf32>
      %129 = arith.addf %127, %128 : vector<16x128xf32>
      %130 = arith.divf %127, %129 : vector<16x128xf32>
      %cst_102 = arith.constant 2.000000e+01 : f32
      %131 = vector.broadcast %cst_102 : f32 to vector<16x128xf32>
      %132 = arith.cmpf ogt, %121, %131 : vector<16x128xf32>
      %133 = arith.mulf %121, %130 : vector<16x128xf32>
      %134 = arith.select %132, %121, %133 : vector<16x128xi1>, vector<16x128xf32>
      %c0_103 = arith.constant 0 : index
      %c0_104 = arith.constant 0 : index
      %c128_105 = arith.constant 128 : index
      %135 = vector.load %arg11[%c0_103, %c0_104, %c128_105] : memref<10x16x384xf32, #tpu.memory_space<vmem>>, vector<1x16x128xf32>
      %136 = vector.shape_cast %135 : vector<1x16x128xf32> to vector<16x128xf32>
      %137 = vector.shape_cast %134 : vector<16x128xf32> to vector<1x16x128xf32>
      tpu.vector_store %arg11[%c0_103, %c0_104, %c128_105], %137 {strides = array<i32>} : memref<10x16x384xf32, #tpu.memory_space<vmem>>, vector<1x16x128xf32>,
    } else {
    }
    %c0_i32_40 = arith.constant 0 : i32
    %59 = arith.cmpi eq, %arg1, %c0_i32_40 : i32
    %60 = arith.extui %59 : i1 to i32
    %c0_i32_41 = arith.constant 0 : i32
    %61 = arith.cmpi ne, %60, %c0_i32_41 : i32
    scf.if %61 {
      %cst_95 = arith.constant 0.000000e+00 : f32
      %115 = vector.broadcast %cst_95 : f32 to vector<16x128xf32>
      %c0_96 = arith.constant 0 : index
      %c0_97 = arith.constant 0 : index
      %c128_98 = arith.constant 128 : index
      %116 = vector.load %arg11[%c0_96, %c0_97, %c128_98] : memref<10x16x384xf32, #tpu.memory_space<vmem>>, vector<1x16x128xf32>
      %117 = vector.shape_cast %116 : vector<1x16x128xf32> to vector<16x128xf32>
      %118 = vector.shape_cast %115 : vector<16x128xf32> to vector<1x16x128xf32>
      tpu.vector_store %arg11[%c0_96, %c0_97, %c128_98], %118 {strides = array<i32>} : memref<10x16x384xf32, #tpu.memory_space<vmem>>, vector<1x16x128xf32>,
    } else {
    }
    %c1_i32_42 = arith.constant 1 : i32
    %62 = arith.cmpi slt, %arg1, %c1_i32_42 : i32
    %63 = arith.extui %62 : i1 to i32
    %c0_i32_43 = arith.constant 0 : i32
    %64 = arith.cmpi ne, %63, %c0_i32_43 : i32
    scf.if %64 {
      %c1_95 = arith.constant 1 : index
      %c0_96 = arith.constant 0 : index
      %c0_97 = arith.constant 0 : index
      %115 = vector.load %arg12[%c1_95, %c0_96, %c0_97] : memref<2x16x128xf32, #tpu.memory_space<vmem>>, vector<1x16x128xf32>
      %116 = vector.shape_cast %115 : vector<1x16x128xf32> to vector<16x128xf32>
      %cst_98 = arith.constant dense<0.000000e+00> : vector<16x128xf32>
      %117 = tpu.matmul %116, %19, %cst_98 {dimension_numbers = #tpu.dot_dimension_numbers<[1], [0], [0], [1], [0, 0, 1, 1], [], []>} : vector<16x128xf32>, vector<128x128xf32>, vector<16x128xf32> -> vector<16x128xf32>
      %118 = vector.broadcast %20 : vector<1x128xf32> to vector<16x128xf32>
      %119 = arith.mulf %117, %118 : vector<16x128xf32>
      %120 = vector.broadcast %21 : vector<1x128xf32> to vector<16x128xf32>
      %121 = arith.addf %119, %120 : vector<16x128xf32>
      %cst_99 = arith.constant 2.000000e+01 : f32
      %122 = vector.broadcast %cst_99 : f32 to vector<16x128xf32>
      %123 = arith.minimumf %121, %122 : vector<16x128xf32>
      %124 = math.exp %123 : vector<16x128xf32>
      %cst_100 = arith.constant 2.000000e+00 : f32
      %125 = vector.broadcast %cst_100 : f32 to vector<16x128xf32>
      %126 = arith.addf %124, %125 : vector<16x128xf32>
      %127 = arith.mulf %124, %126 : vector<16x128xf32>
      %cst_101 = arith.constant 2.000000e+00 : f32
      %128 = vector.broadcast %cst_101 : f32 to vector<16x128xf32>
      %129 = arith.addf %127, %128 : vector<16x128xf32>
      %130 = arith.divf %127, %129 : vector<16x128xf32>
      %cst_102 = arith.constant 2.000000e+01 : f32
      %131 = vector.broadcast %cst_102 : f32 to vector<16x128xf32>
      %132 = arith.cmpf ogt, %121, %131 : vector<16x128xf32>
      %133 = arith.mulf %121, %130 : vector<16x128xf32>
      %134 = arith.select %132, %121, %133 : vector<16x128xi1>, vector<16x128xf32>
      %c9 = arith.constant 9 : index
      %c0_103 = arith.constant 0 : index
      %c128_104 = arith.constant 128 : index
      %135 = vector.load %arg11[%c9, %c0_103, %c128_104] : memref<10x16x384xf32, #tpu.memory_space<vmem>>, vector<1x16x128xf32>
      %136 = vector.shape_cast %135 : vector<1x16x128xf32> to vector<16x128xf32>
      %137 = vector.shape_cast %134 : vector<16x128xf32> to vector<1x16x128xf32>
      tpu.vector_store %arg11[%c9, %c0_103, %c128_104], %137 {strides = array<i32>} : memref<10x16x384xf32, #tpu.memory_space<vmem>>, vector<1x16x128xf32>,
    } else {
    }
    %c1_i32_44 = arith.constant 1 : i32
    %65 = arith.cmpi eq, %arg1, %c1_i32_44 : i32
    %66 = arith.extui %65 : i1 to i32
    %c0_i32_45 = arith.constant 0 : i32
    %67 = arith.cmpi ne, %66, %c0_i32_45 : i32
    scf.if %67 {
      %cst_95 = arith.constant 0.000000e+00 : f32
      %115 = vector.broadcast %cst_95 : f32 to vector<16x128xf32>
      %c9 = arith.constant 9 : index
      %c0_96 = arith.constant 0 : index
      %c128_97 = arith.constant 128 : index
      %116 = vector.load %arg11[%c9, %c0_96, %c128_97] : memref<10x16x384xf32, #tpu.memory_space<vmem>>, vector<1x16x128xf32>
      %117 = vector.shape_cast %116 : vector<1x16x128xf32> to vector<16x128xf32>
      %118 = vector.shape_cast %115 : vector<16x128xf32> to vector<1x16x128xf32>
      tpu.vector_store %arg11[%c9, %c0_96, %c128_97], %118 {strides = array<i32>} : memref<10x16x384xf32, #tpu.memory_space<vmem>>, vector<1x16x128xf32>,
    } else {
    }
    %cst_46 = arith.constant 0.000000e+00 : f32
    %68 = vector.broadcast %cst_46 : f32 to vector<10x1x128xf32>
    %c0_47 = arith.constant 0 : index
    %c0_48 = arith.constant 0 : index
    %c0_49 = arith.constant 0 : index
    %69 = vector.load %arg11[%c0_47, %c0_48, %c0_49] : memref<10x16x384xf32, #tpu.memory_space<vmem>>, vector<10x1x128xf32>
    tpu.vector_store %arg11[%c0_47, %c0_48, %c0_49], %68 {strides = array<i32>} : memref<10x16x384xf32, #tpu.memory_space<vmem>>, vector<10x1x128xf32>,
    %c0_50 = arith.constant 0 : index
    %c0_51 = arith.constant 0 : index
    %c128_52 = arith.constant 128 : index
    %70 = vector.load %arg11[%c0_50, %c0_51, %c128_52] : memref<10x16x384xf32, #tpu.memory_space<vmem>>, vector<10x15x128xf32>
    %c0_53 = arith.constant 0 : index
    %c1_54 = arith.constant 1 : index
    %c0_55 = arith.constant 0 : index
    %71 = vector.load %arg11[%c0_53, %c1_54, %c0_55] : memref<10x16x384xf32, #tpu.memory_space<vmem>>, vector<10x15x128xf32>
    tpu.vector_store %arg11[%c0_53, %c1_54, %c0_55], %70 {strides = array<i32>} : memref<10x16x384xf32, #tpu.memory_space<vmem>>, vector<10x15x128xf32>,
    %cst_56 = arith.constant 0.000000e+00 : f32
    %72 = vector.broadcast %cst_56 : f32 to vector<10x1x128xf32>
    %c0_57 = arith.constant 0 : index
    %c15 = arith.constant 15 : index
    %c256 = arith.constant 256 : index
    %73 = vector.load %arg11[%c0_57, %c15, %c256] : memref<10x16x384xf32, #tpu.memory_space<vmem>>, vector<10x1x128xf32>
    tpu.vector_store %arg11[%c0_57, %c15, %c256], %72 {strides = array<i32>} : memref<10x16x384xf32, #tpu.memory_space<vmem>>, vector<10x1x128xf32>,
    %c0_58 = arith.constant 0 : index
    %c1_59 = arith.constant 1 : index
    %c128_60 = arith.constant 128 : index
    %74 = vector.load %arg11[%c0_58, %c1_59, %c128_60] : memref<10x16x384xf32, #tpu.memory_space<vmem>>, vector<10x15x128xf32>
    %c0_61 = arith.constant 0 : index
    %c0_62 = arith.constant 0 : index
    %c256_63 = arith.constant 256 : index
    %75 = vector.load %arg11[%c0_61, %c0_62, %c256_63] : memref<10x16x384xf32, #tpu.memory_space<vmem>>, vector<10x15x128xf32>
    tpu.vector_store %arg11[%c0_61, %c0_62, %c256_63], %74 {strides = array<i32>} : memref<10x16x384xf32, #tpu.memory_space<vmem>>, vector<10x15x128xf32>,
    %c0_64 = arith.constant 0 : index
    %c0_65 = arith.constant 0 : index
    %c0_66 = arith.constant 0 : index
    %76 = vector.load %arg11[%c0_64, %c0_65, %c0_66] : memref<10x16x384xf32, #tpu.memory_space<vmem>>, vector<8x16x384xf32>
    %77 = vector.shape_cast %76 : vector<8x16x384xf32> to vector<128x384xf32>
    %c0_67 = arith.constant 0 : index
    %c0_68 = arith.constant 0 : index
    %c0_69 = arith.constant 0 : index
    %78 = vector.load %arg7[%c0_67, %c0_68, %c0_69] : memref<3x384x128xf32, #tpu.memory_space<vmem>>, vector<1x384x128xf32>
    %79 = vector.shape_cast %78 : vector<1x384x128xf32> to vector<384x128xf32>
    %cst_70 = arith.constant dense<0.000000e+00> : vector<128x128xf32>
    %80 = tpu.matmul %77, %79, %cst_70 {dimension_numbers = #tpu.dot_dimension_numbers<[1], [0], [0], [1], [0, 0, 1, 1], [], []>} : vector<128x384xf32>, vector<384x128xf32>, vector<128x128xf32> -> vector<128x128xf32>
    %c1_71 = arith.constant 1 : index
    %c0_72 = arith.constant 0 : index
    %c0_73 = arith.constant 0 : index
    %81 = vector.load %arg11[%c1_71, %c0_72, %c0_73] : memref<10x16x384xf32, #tpu.memory_space<vmem>>, vector<8x16x384xf32>
    %82 = vector.shape_cast %81 : vector<8x16x384xf32> to vector<128x384xf32>
    %c1_74 = arith.constant 1 : index
    %c0_75 = arith.constant 0 : index
    %c0_76 = arith.constant 0 : index
    %83 = vector.load %arg7[%c1_74, %c0_75, %c0_76] : memref<3x384x128xf32, #tpu.memory_space<vmem>>, vector<1x384x128xf32>
    %84 = vector.shape_cast %83 : vector<1x384x128xf32> to vector<384x128xf32>
    %cst_77 = arith.constant dense<0.000000e+00> : vector<128x128xf32>
    %85 = tpu.matmul %82, %84, %cst_77 {dimension_numbers = #tpu.dot_dimension_numbers<[1], [0], [0], [1], [0, 0, 1, 1], [], []>} : vector<128x384xf32>, vector<384x128xf32>, vector<128x128xf32> -> vector<128x128xf32>
    %86 = arith.addf %80, %85 : vector<128x128xf32>
    %c2 = arith.constant 2 : index
    %c0_78 = arith.constant 0 : index
    %c0_79 = arith.constant 0 : index
    %87 = vector.load %arg11[%c2, %c0_78, %c0_79] : memref<10x16x384xf32, #tpu.memory_space<vmem>>, vector<8x16x384xf32>
    %88 = vector.shape_cast %87 : vector<8x16x384xf32> to vector<128x384xf32>
    %c2_80 = arith.constant 2 : index
    %c0_81 = arith.constant 0 : index
    %c0_82 = arith.constant 0 : index
    %89 = vector.load %arg7[%c2_80, %c0_81, %c0_82] : memref<3x384x128xf32, #tpu.memory_space<vmem>>, vector<1x384x128xf32>
    %90 = vector.shape_cast %89 : vector<1x384x128xf32> to vector<384x128xf32>
    %cst_83 = arith.constant dense<0.000000e+00> : vector<128x128xf32>
    %91 = tpu.matmul %88, %90, %cst_83 {dimension_numbers = #tpu.dot_dimension_numbers<[1], [0], [0], [1], [0, 0, 1, 1], [], []>} : vector<128x384xf32>, vector<384x128xf32>, vector<128x128xf32> -> vector<128x128xf32>
    %92 = arith.addf %86, %91 : vector<128x128xf32>
    %c0_84 = arith.constant 0 : index
    %c0_85 = arith.constant 0 : index
    %93 = vector.load %arg8[%c0_84, %c0_85] : memref<1x128xf32, #tpu.memory_space<vmem>>, vector<1x128xf32>
    %94 = vector.broadcast %93 : vector<1x128xf32> to vector<128x128xf32>
    %95 = arith.mulf %92, %94 : vector<128x128xf32>
    %c0_86 = arith.constant 0 : index
    %c0_87 = arith.constant 0 : index
    %96 = vector.load %arg9[%c0_86, %c0_87] : memref<1x128xf32, #tpu.memory_space<vmem>>, vector<1x128xf32>
    %97 = vector.broadcast %96 : vector<1x128xf32> to vector<128x128xf32>
    %98 = arith.addf %95, %97 : vector<128x128xf32>
    %cst_88 = arith.constant 2.000000e+01 : f32
    %99 = vector.broadcast %cst_88 : f32 to vector<128x128xf32>
    %100 = arith.minimumf %98, %99 : vector<128x128xf32>
    %101 = math.exp %100 : vector<128x128xf32>
    %cst_89 = arith.constant 2.000000e+00 : f32
    %102 = vector.broadcast %cst_89 : f32 to vector<128x128xf32>
    %103 = arith.addf %101, %102 : vector<128x128xf32>
    %104 = arith.mulf %101, %103 : vector<128x128xf32>
    %cst_90 = arith.constant 2.000000e+00 : f32
    %105 = vector.broadcast %cst_90 : f32 to vector<128x128xf32>
    %106 = arith.addf %104, %105 : vector<128x128xf32>
    %107 = arith.divf %104, %106 : vector<128x128xf32>
    %cst_91 = arith.constant 2.000000e+01 : f32
    %108 = vector.broadcast %cst_91 : f32 to vector<128x128xf32>
    %109 = arith.cmpf ogt, %98, %108 : vector<128x128xf32>
    %110 = arith.mulf %98, %107 : vector<128x128xf32>
    %111 = arith.select %109, %98, %110 : vector<128x128xi1>, vector<128x128xf32>
    %112 = vector.shape_cast %111 : vector<128x128xf32> to vector<8x16x128xf32>
    %113 = arith.addf %112, %22 : vector<8x16x128xf32>
    %c0_92 = arith.constant 0 : index
    %c0_93 = arith.constant 0 : index
    %c0_94 = arith.constant 0 : index
    %114 = vector.load %arg10[%c0_92, %c0_93, %c0_94] : memref<8x16x128xf32, #tpu.memory_space<vmem>>, vector<8x16x128xf32>
    tpu.vector_store %arg10[%c0_92, %c0_93, %c0_94], %113 {strides = array<i32>} : memref<8x16x128xf32, #tpu.memory_space<vmem>>, vector<8x16x128xf32>,
    return
  }
  func.func @transform_0(%arg0: i32, %arg1: i32) -> (i32, i32, i32) {
    %c2_i32 = arith.constant 2 : i32
    %0 = arith.muli %arg0, %c2_i32 : i32
    %1 = arith.addi %0, %arg1 : i32
    %c0_i32 = arith.constant 0 : i32
    %c0_i32_0 = arith.constant 0 : i32
    %c0_i32_1 = arith.constant 0 : i32
    return %1, %c0_i32, %c0_i32_0 : i32, i32, i32
  }
  func.func @transform_2(%arg0: i32, %arg1: i32) -> (i32, i32) {
    %c0_i32 = arith.constant 0 : i32
    %c0_i32_0 = arith.constant 0 : i32
    %c0_i32_1 = arith.constant 0 : i32
    return %c0_i32, %c0_i32_0 : i32, i32
  }
  func.func @transform_3(%arg0: i32, %arg1: i32) -> (i32, i32) {
    %c0_i32 = arith.constant 0 : i32
    %c0_i32_0 = arith.constant 0 : i32
    %c0_i32_1 = arith.constant 0 : i32
    return %c0_i32, %c0_i32_0 : i32, i32
  }
  func.func @transform_4(%arg0: i32, %arg1: i32) -> (i32, i32) {
    %c0_i32 = arith.constant 0 : i32
    %c0_i32_0 = arith.constant 0 : i32
    %c0_i32_1 = arith.constant 0 : i32
    return %c0_i32, %c0_i32_0 : i32, i32
  }
  func.func @transform_5(%arg0: i32, %arg1: i32) -> (i32, i32, i32) {
    %c0_i32 = arith.constant 0 : i32
    %c0_i32_0 = arith.constant 0 : i32
    %c0_i32_1 = arith.constant 0 : i32
    %c0_i32_2 = arith.constant 0 : i32
    return %c0_i32, %c0_i32_0, %c0_i32_1 : i32, i32, i32
  }
  func.func @transform_6(%arg0: i32, %arg1: i32) -> (i32, i32) {
    %c0_i32 = arith.constant 0 : i32
    %c0_i32_0 = arith.constant 0 : i32
    %c0_i32_1 = arith.constant 0 : i32
    return %c0_i32, %c0_i32_0 : i32, i32
  }
  func.func @transform_7(%arg0: i32, %arg1: i32) -> (i32, i32) {
    %c0_i32 = arith.constant 0 : i32
    %c0_i32_0 = arith.constant 0 : i32
    %c0_i32_1 = arith.constant 0 : i32
    return %c0_i32, %c0_i32_0 : i32, i32
  }
  func.func @transform_8(%arg0: i32, %arg1: i32) -> (i32, i32, i32) {
    %c2_i32 = arith.constant 2 : i32
    %0 = arith.muli %arg0, %c2_i32 : i32
    %1 = arith.addi %0, %arg1 : i32
    %c0_i32 = arith.constant 0 : i32
    %c0_i32_0 = arith.constant 0 : i32
    %c0_i32_1 = arith.constant 0 : i32
    return %1, %c0_i32, %c0_i32_0 : i32, i32, i32
  }
}

</mosaic_0001>

<llo_original>
// kernel: tpu_custom_call.1
$region0: #{tpu_custom_call.1}
  #allocation0 [shape = 'u32[]', space=smem, size = 0x4, offset = 0x4, fixed_abs, tag = 'smem constant byte address 0x4 - core index']
  #allocation1 [shape = 'u32[72,128]{1,0:T(1,128)}', space=vmem, size = 0x9000, scoped, tag = 'internal scratch']
  #allocation2 [shape = 'f32[10,16,384]{2,1,0:T(8,128)}', space=vmem, size = 0x3c000, scoped, tag = 'scratch operand']
  #allocation3 [shape = 'f32[2,16,128]{2,1,0:T(8,128)}', space=vmem, size = 0x4000, scoped, tag = 'scratch operand']
  #allocation4 [shape = 's32[2]{0}', space=sflag, size = 0x8, scoped, tag = 'scratch operand']
  #allocation12 [shape = 's32[]', space=sflag, size = 0x4, offset = 0, fixed_abs, tag = 'sflag constant byte address 0x0 - dummy sync flag']
  #allocation13 [shape = 's32[]', space=sflag, size = 0x4, offset = 0, fixed_abs, tag = 'sflag constant byte address 0x0 - dummy sync flag']
  #allocation14 [shape = 'u32[]', space=smem, size = 0x4, offset = 0x44, fixed_abs, tag = 'smem constant byte address 0x44 - assertion arg 0']
  #allocation15 [shape = 'u32[]', space=smem, size = 0x4, offset = 0x48, fixed_abs, tag = 'smem constant byte address 0x48 - assertion arg 1']
  #allocation16 [shape = 's32[]', space=sflag, size = 0x4, offset = 0, fixed_abs, tag = 'sflag constant byte address 0x0 - dummy sync flag']
  #allocation17 [shape = 's32[]', space=sflag, size = 0x4, offset = 0, fixed_abs, tag = 'sflag constant byte address 0x0 - dummy sync flag']
  %s0 = inlined_call_operand.hbm [shape: f32[32,16,128], index: 0, kind: input, shape index: {}]
  %s1 = inlined_call_operand.hbm [shape: f32[32,16,128], index: 1, kind: input, shape index: {}]
  %s2 = inlined_call_operand.hbm [shape: f32[128,128], index: 2, kind: input, shape index: {}]
  %s3 = inlined_call_operand.vmem [shape: f32[1,128], index: 3, kind: input, shape index: {}]
  %s4 = inlined_call_operand.vmem [shape: f32[1,128], index: 4, kind: input, shape index: {}]
  %s5 = inlined_call_operand.hbm [shape: f32[3,384,128], index: 5, kind: input, shape index: {}]
  %s6 = inlined_call_operand.vmem [shape: f32[1,128], index: 6, kind: input, shape index: {}]
  %s7 = inlined_call_operand.vmem [shape: f32[1,128], index: 7, kind: input, shape index: {}]
  %s8 = inlined_call_operand.hbm [shape: f32[32,16,128], index: 8, kind: output, shape index: {}]
  %s9 = sld [smem:[#allocation0]]
  $region97: #{tpu_custom_call.1} parent=0
    _
  %s11 = ssub.s32 1, %s9
  %s12 = scalar_select 0, %s11, %s9
  $region1: #{tpu_custom_call.1} parent=0
    #allocation5 [shape = 'u8[131072]{0}', space=vmem, size = 0x20000, scoped, tag = 'input window, operand 0']
    #allocation6 [shape = 's32[2]{0}', space=sflag, size = 0x8, scoped, tag = 'scoped memory for tpu_custom_call.1']
    #allocation7 [shape = 's32[2]{0}', space=sflag, size = 0x8, scoped, tag = 'scoped memory for tpu_custom_call.1']
    #allocation8 [shape = 'u8[65536]{0}', space=vmem, size = 0x10000, scoped, tag = 'input window, operand 2, single buffered']
    #allocation9 [shape = 's32[1]{0}', space=sflag, size = 0x4, scoped, tag = 'scoped memory for tpu_custom_call.1']
    #allocation10 [shape = 'u8[589824]{0}', space=vmem, size = 0x90000, scoped, tag = 'input window, operand 5, single buffered']
    #allocation11 [shape = 'u8[131072]{0}', space=vmem, size = 0x20000, scoped, tag = 'output window, operand 0']
    %13 = vsyncpa [#allocation6], 0
    %s14 = scalar_lea.sflag [#allocation6], 1
    %15 = vsyncpa %s14, 0
    %16 = vsyncpa [#allocation9], 0
    %17 = vsyncpa [#allocation7], 0
    %s18 = scalar_lea.sflag [#allocation7], 1
    %19 = vsyncpa %s18, 0
    loop: start=0, step=1, limit=6
    $region2: #{tpu_custom_call.1} parent=1 // loop_pre_header
      _
    $region3: #{tpu_custom_call.1} parent=1 // loop_header
      %s21 = sphi 0, %s25
      %p22 = scmp.ge.s32.totalorder %s21, 6
      %s28 = sphi 0, %s40
      %s29 = sphi 0, %s36
      %s30 = sphi 0, %s28
      %s31 = sphi 0, %s29
      %s32 = sphi 0, %s30
      %s33 = sphi 0, %s31
      %s47 = sphi 0, %s49
      %s50 = sphi 0, %s47
      %s51 = sphi 0, %s50
      %s67 = sphi 0, %s51
      %s71 = sphi 0, %s71
      %s73 = sphi 0, %s71
      %s74 = sphi 0, %s73
      %s88 = sphi 0, %s74
      %s92 = sphi 0, %s92
      %s94 = sphi 0, %s92
      %s95 = sphi 0, %s94
      %s109 = sphi 0, %s95
      %s113 = sphi 0, %s113
      %s115 = sphi 0, %s113
      %s116 = sphi 0, %s115
      %s130 = sphi 0, %s116
      %s134 = sphi 0, %s134
      %s136 = sphi 0, %s134
      %s137 = sphi 0, %s136
      %s151 = sphi 0, %s137
      %s155 = sphi 0, %s155
      %s157 = sphi 0, %s155
      %s158 = sphi 0, %s157
      %s172 = sphi 0, %s158
      %s176 = sphi 0, %s176
      %s178 = sphi 0, %s176
      %s179 = sphi 0, %s178
      %s193 = sphi 0, %s179
      %s203 = sphi 0, %s205
      %s206 = sphi 0, %s203
      %s207 = sphi 0, %s206
      %s223 = sphi 0, %s207
    $region4: #{tpu_custom_call.1} parent=1 // loop_header_branch
      %24 = sbr.rel (%p22) target = $region8
    $region5: #{tpu_custom_call.1} parent=1 // loop_body
      %s26 = ssub.s32 %s21, 1
      %s27 = ssub.s32 %s21, 2
      %s34 = sadd.s32 1, %s29
      %p35 = scmp.ge.s32.totalorder %s34, 2
      %s36 = scalar_select %p35, 0, %s34
      %s37 = sadd.s32 1, %s28
      %s38 = scalar_select %p35, %s37, %s28
      %p39 = scmp.ge.s32.totalorder %s38, 2
      %s40 = scalar_select %p39, 0, %s38
      %s41 = smul.u32 %s28, 2
      %s42 = sadd.s32 %s41, %s29
      %s43 = smul.u32 %s40, 2
      %s44 = sadd.s32 %s43, %s36
      %s45 = ssub.s32 %s42, %s44
      %p46 = scmp.eq.s32.totalorder %s45, 0
      %s48 = sadd.s32 %s47, 1
      %s49 = scalar_select %p46, %s47, %s48
      %p52 = pneg %p46
      %p53 = scmp.eq.s32.totalorder %s21, 3
      %p54 = por %p52, %p53
      %p55 = scmp.ne.s32.totalorder %s47, %s50
      %p56 = scmp.eq.s32.totalorder %s21, 0
      %p57 = por %p55, %p56
      %p58 = scmp.ne.s32.totalorder %s47, %s50
      %p59 = scmp.eq.s32.totalorder %s26, 3
      %p60 = por %p58, %p59
      %p61 = scmp.ne.s32.totalorder %s50, %s51
      %p62 = scmp.eq.s32.totalorder %s26, 0
      %p63 = por %p61, %p62
      %p64 = scmp.ne.s32.totalorder %s50, %s51
      %p65 = scmp.eq.s32.totalorder %s27, 3
      %p66 = por %p64, %p65
      %p68 = scmp.ne.s32.totalorder %s51, %s67
      %p69 = scmp.eq.s32.totalorder %s27, 0
      %p70 = por %p68, %p69
      %s72 = sadd.s32 %s71, 1
      %p75 = scmp.eq.s32.totalorder %s21, 3
      %p76 = scmp.ne.s32.totalorder %s71, %s73
      %p77 = scmp.eq.s32.totalorder %s21, 0
      %p78 = por %p76, %p77
      %p79 = scmp.ne.s32.totalorder %s71, %s73
      %p80 = scmp.eq.s32.totalorder %s26, 3
      %p81 = por %p79, %p80
      %p82 = scmp.ne.s32.totalorder %s73, %s74
      %p83 = scmp.eq.s32.totalorder %s26, 0
      %p84 = por %p82, %p83
      %p85 = scmp.ne.s32.totalorder %s73, %s74
      %p86 = scmp.eq.s32.totalorder %s27, 3
      %p87 = por %p85, %p86
      %p89 = scmp.ne.s32.totalorder %s74, %s88
      %p90 = scmp.eq.s32.totalorder %s27, 0
      %p91 = por %p89, %p90
      %s93 = sadd.s32 %s92, 1
      %p96 = scmp.eq.s32.totalorder %s21, 3
      %p97 = scmp.ne.s32.totalorder %s92, %s94
      %p98 = scmp.eq.s32.totalorder %s21, 0
      %p99 = por %p97, %p98
      %p100 = scmp.ne.s32.totalorder %s92, %s94
      %p101 = scmp.eq.s32.totalorder %s26, 3
      %p102 = por %p100, %p101
      %p103 = scmp.ne.s32.totalorder %s94, %s95
      %p104 = scmp.eq.s32.totalorder %s26, 0
      %p105 = por %p103, %p104
      %p106 = scmp.ne.s32.totalorder %s94, %s95
      %p107 = scmp.eq.s32.totalorder %s27, 3
      %p108 = por %p106, %p107
      %p110 = scmp.ne.s32.totalorder %s95, %s109
      %p111 = scmp.eq.s32.totalorder %s27, 0
      %p112 = por %p110, %p111
      %s114 = sadd.s32 %s113, 1
      %p117 = scmp.eq.s32.totalorder %s21, 3
      %p118 = scmp.ne.s32.totalorder %s113, %s115
      %p119 = scmp.eq.s32.totalorder %s21, 0
      %p120 = por %p118, %p119
      %p121 = scmp.ne.s32.totalorder %s113, %s115
      %p122 = scmp.eq.s32.totalorder %s26, 3
      %p123 = por %p121, %p122
      %p124 = scmp.ne.s32.totalorder %s115, %s116
      %p125 = scmp.eq.s32.totalorder %s26, 0
      %p126 = por %p124, %p125
      %p127 = scmp.ne.s32.totalorder %s115, %s116
      %p128 = scmp.eq.s32.totalorder %s27, 3
      %p129 = por %p127, %p128
      %p131 = scmp.ne.s32.totalorder %s116, %s130
      %p132 = scmp.eq.s32.totalorder %s27, 0
      %p133 = por %p131, %p132
      %s135 = sadd.s32 %s134, 1
      %p138 = scmp.eq.s32.totalorder %s21, 3
      %p139 = scmp.ne.s32.totalorder %s134, %s136
      %p140 = scmp.eq.s32.totalorder %s21, 0
      %p141 = por %p139, %p140
      %p142 = scmp.ne.s32.totalorder %s134, %s136
      %p143 = scmp.eq.s32.totalorder %s26, 3
      %p144 = por %p142, %p143
      %p145 = scmp.ne.s32.totalorder %s136, %s137
      %p146 = scmp.eq.s32.totalorder %s26, 0
      %p147 = por %p145, %p146
      %p148 = scmp.ne.s32.totalorder %s136, %s137
      %p149 = scmp.eq.s32.totalorder %s27, 3
      %p150 = por %p148, %p149
      %p152 = scmp.ne.s32.totalorder %s137, %s151
      %p153 = scmp.eq.s32.totalorder %s27, 0
      %p154 = por %p152, %p153
      %s156 = sadd.s32 %s155, 1
      %p159 = scmp.eq.s32.totalorder %s21, 3
      %p160 = scmp.ne.s32.totalorder %s155, %s157
      %p161 = scmp.eq.s32.totalorder %s21, 0
      %p162 = por %p160, %p161
      %p163 = scmp.ne.s32.totalorder %s155, %s157
      %p164 = scmp.eq.s32.totalorder %s26, 3
      %p165 = por %p163, %p164
      %p166 = scmp.ne.s32.totalorder %s157, %s158
      %p167 = scmp.eq.s32.totalorder %s26, 0
      %p168 = por %p166, %p167
      %p169 = scmp.ne.s32.totalorder %s157, %s158
      %p170 = scmp.eq.s32.totalorder %s27, 3
      %p171 = por %p169, %p170
      %p173 = scmp.ne.s32.totalorder %s158, %s172
      %p174 = scmp.eq.s32.totalorder %s27, 0
      %p175 = por %p173, %p174
      %s177 = sadd.s32 %s176, 1
      %p180 = scmp.eq.s32.totalorder %s21, 3
      %p181 = scmp.ne.s32.totalorder %s176, %s178
      %p182 = scmp.eq.s32.totalorder %s21, 0
      %p183 = por %p181, %p182
      %p184 = scmp.ne.s32.totalorder %s176, %s178
      %p185 = scmp.eq.s32.totalorder %s26, 3
      %p186 = por %p184, %p185
      %p187 = scmp.ne.s32.totalorder %s178, %s179
      %p188 = scmp.eq.s32.totalorder %s26, 0
      %p189 = por %p187, %p188
      %p190 = scmp.ne.s32.totalorder %s178, %s179
      %p191 = scmp.eq.s32.totalorder %s27, 3
      %p192 = por %p190, %p191
      %p194 = scmp.ne.s32.totalorder %s179, %s193
      %p195 = scmp.eq.s32.totalorder %s27, 0
      %p196 = por %p194, %p195
      %s197 = smul.u32 %s28, 2
      %s198 = sadd.s32 %s197, %s29
      %s199 = smul.u32 %s40, 2
      %s200 = sadd.s32 %s199, %s36
      %s201 = ssub.s32 %s198, %s200
      %p202 = scmp.eq.s32.totalorder %s201, 0
      %s204 = sadd.s32 %s203, 1
      %s205 = scalar_select %p202, %s203, %s204
      %p208 = pneg %p202
      %p209 = scmp.eq.s32.totalorder %s21, 3
      %p210 = por %p208, %p209
      %p211 = scmp.ne.s32.totalorder %s203, %s206
      %p212 = scmp.eq.s32.totalorder %s21, 0
      %p213 = por %p211, %p212
      %p214 = scmp.ne.s32.totalorder %s203, %s206
      %p215 = scmp.eq.s32.totalorder %s26, 3
      %p216 = por %p214, %p215
      %p217 = scmp.ne.s32.totalorder %s206, %s207
      %p218 = scmp.eq.s32.totalorder %s26, 0
      %p219 = por %p217, %p218
      %p220 = scmp.ne.s32.totalorder %s206, %s207
      %p221 = scmp.eq.s32.totalorder %s27, 3
      %p222 = por %p220, %p221
      %p224 = scmp.ne.s32.totalorder %s207, %s223
      %p225 = scmp.eq.s32.totalorder %s27, 0
      %p226 = por %p224, %p225
      %p227 = scmp.le.s32.totalorder 1, %s21
      %p228 = scmp.lt.s32.totalorder %s21, 5
      %p229 = pnand %p227, %p228
      %p230 = pneg %p229
      // Predicated region
      $region9: #{tpu_custom_call.1} parent=5 // pred_check
        _
      $region10: #{tpu_custom_call.1} parent=5 // pred_check_branch
        %232 = sbr.rel (%p229) target = $region12
      $region11: #{tpu_custom_call.1} parent=5 // pred_region
        %s233 = ssub.s32 %s21, 1
        // Predicated region
        $region13: #{tpu_custom_call.1} parent=11 // pred_check
          %p234 = pneg %p84
        $region14: #{tpu_custom_call.1} parent=11 // pred_check_branch
          %236 = sbr.rel (%p234) target = $region16
        $region15: #{tpu_custom_call.1} parent=11 // pred_region
          %238 = vsyncadd [#allocation9], 0
          %s239 = sshll.u32 %s2, 4
          %s240 = int_to_ptr.hbm [resolvable:$true] %s239
          %s241 = sshll.u32 [#allocation8], 4
          %s242 = int_to_ptr.vmem [resolvable:$true] %s241
          %247 = dma.hbm_to_vmem [thread:$0]  %s240, 2048, %s242, [#allocation9], 128, 128, 8
        $region16: #{tpu_custom_call.1} parent=11 // pred_fallthru
          _
        // Predicated region
        $region17: #{tpu_custom_call.1} parent=11 // pred_check
          %p248 = pneg %p105
        $region18: #{tpu_custom_call.1} parent=11 // pred_check_branch
          %250 = sbr.rel (%p248) target = $region20
        $region19: #{tpu_custom_call.1} parent=11 // pred_region
          _
        $region20: #{tpu_custom_call.1} parent=11 // pred_fallthru
          _
        // Predicated region
        $region21: #{tpu_custom_call.1} parent=11 // pred_check
          %p251 = pneg %p126
        $region22: #{tpu_custom_call.1} parent=11 // pred_check_branch
          %253 = sbr.rel (%p251) target = $region24
        $region23: #{tpu_custom_call.1} parent=11 // pred_region
          _
        $region24: #{tpu_custom_call.1} parent=11 // pred_fallthru
          _
        // Predicated region
        $region25: #{tpu_custom_call.1} parent=11 // pred_check
          %p254 = pneg %p147
        $region26: #{tpu_custom_call.1} parent=11 // pred_check_branch
          %256 = sbr.rel (%p254) target = $region28
        $region27: #{tpu_custom_call.1} parent=11 // pred_region
          %258 = vsyncadd [#allocation9], 0
          %s259 = sshll.u32 %s5, 4
          %s260 = int_to_ptr.hbm [resolvable:$true] %s259
          %s261 = sshll.u32 [#allocation10], 4
          %s262 = int_to_ptr.vmem [resolvable:$true] %s261
          %267 = dma.hbm_to_vmem [thread:$0]  %s260, 18432, %s262, [#allocation9], 128, 128, 8
        $region28: #{tpu_custom_call.1} parent=11 // pred_fallthru
          _
        // Predicated region
        $region29: #{tpu_custom_call.1} parent=11 // pred_check
          %p268 = pneg %p168
        $region30: #{tpu_custom_call.1} parent=11 // pred_check_branch
          %270 = sbr.rel (%p268) target = $region32
        $region31: #{tpu_custom_call.1} parent=11 // pred_region
          _
        $region32: #{tpu_custom_call.1} parent=11 // pred_fallthru
          _
        // Predicated region
        $region33: #{tpu_custom_call.1} parent=11 // pred_check
          %p271 = pneg %p189
        $region34: #{tpu_custom_call.1} parent=11 // pred_check_branch
          %273 = sbr.rel (%p271) target = $region36
        $region35: #{tpu_custom_call.1} parent=11 // pred_region
          _
        $region36: #{tpu_custom_call.1} parent=11 // pred_fallthru
          _
      $region12: #{tpu_custom_call.1} parent=5 // pred_fallthru
        _
      %p274 = scmp.lt.s32.totalorder %s21, 4
      // Predicated region
      $region37: #{tpu_custom_call.1} parent=5 // pred_check
        %p275 = pneg %p274
      $region38: #{tpu_custom_call.1} parent=5 // pred_check_branch
        %277 = sbr.rel (%p275) target = $region40
      $region39: #{tpu_custom_call.1} parent=5 // pred_region
        // Predicated region
        $region41: #{tpu_custom_call.1} parent=39 // pred_check
          %p278 = pneg %p57
        $region42: #{tpu_custom_call.1} parent=39 // pred_check_branch
          %280 = sbr.rel (%p278) target = $region44
        $region43: #{tpu_custom_call.1} parent=39 // pred_region
          %s281 = sand.u32 %s47, 1
          %s282 = scalar_lea.sflag [#allocation6], %s281
          %s283 = sand.u32 %s47, 1
          %s284 = smul.addr %s283, 128
          %s285 = scalar_lea.vmem [#allocation5], %s284
          %s286 = smul.u32 %s28, 2
          %s287 = sadd.s32 %s286, %s29
          %s288 = smul.u32 8, %s287
          %290 = vsyncadd %s282, 0
          %s291 = smul.addr %s288, 2
          %s292 = smul.addr %s291, 8
          %s293 = scalar_lea.hbm %s0, %s292
          %s294 = sshll.u32 %s293, 4
          %s295 = int_to_ptr.hbm [resolvable:$true] %s294
          %s296 = sshll.u32 %s285, 4
          %s297 = int_to_ptr.vmem [resolvable:$true] %s296
          %302 = dma.hbm_to_vmem [thread:$0]  %s295, 2048, %s297, %s282, 128, 128, 8
        $region44: #{tpu_custom_call.1} parent=39 // pred_fallthru
          _
      $region40: #{tpu_custom_call.1} parent=5 // pred_fallthru
        _
      %p303 = scmp.le.s32.totalorder 1, %s21
      %p304 = scmp.lt.s32.totalorder %s21, 5
      %p305 = pnand %p303, %p304
      %p306 = pneg %p305
      // Predicated region
      $region45: #{tpu_custom_call.1} parent=5 // pred_check
        _
      $region46: #{tpu_custom_call.1} parent=5 // pred_check_branch
        %308 = sbr.rel (%p305) target = $region48
      $region47: #{tpu_custom_call.1} parent=5 // pred_region
        %s309 = ssub.s32 %s21, 1
        %s310 = sand.u32 %s50, 1
        %s311 = scalar_lea.sflag [#allocation6], %s310
        %s312 = sand.u32 %s50, 1
        %s313 = smul.addr %s312, 128
        %s314 = scalar_lea.vmem [#allocation5], %s313
        // Predicated region
        $region49: #{tpu_custom_call.1} parent=47 // pred_check
          %p315 = pneg %p63
        $region50: #{tpu_custom_call.1} parent=47 // pred_check_branch
          %317 = sbr.rel (%p315) target = $region52
        $region51: #{tpu_custom_call.1} parent=47 // pred_region
          %319 = dma.done %s311, 2048
        $region52: #{tpu_custom_call.1} parent=47 // pred_fallthru
          _
        // Predicated region
        $region53: #{tpu_custom_call.1} parent=47 // pred_check
          %p320 = pneg %p84
        $region54: #{tpu_custom_call.1} parent=47 // pred_check_branch
          %322 = sbr.rel (%p320) target = $region56
        $region55: #{tpu_custom_call.1} parent=47 // pred_region
          %324 = dma.done [#allocation9], 2048
        $region56: #{tpu_custom_call.1} parent=47 // pred_fallthru
          _
        // Predicated region
        $region57: #{tpu_custom_call.1} parent=47 // pred_check
          %p325 = pneg %p147
        $region58: #{tpu_custom_call.1} parent=47 // pred_check_branch
          %327 = sbr.rel (%p325) target = $region60
        $region59: #{tpu_custom_call.1} parent=47 // pred_region
          %329 = dma.done [#allocation9], 18432
        $region60: #{tpu_custom_call.1} parent=47 // pred_fallthru
          _
        %s330 = sand.u32 %s50, 1
        %s331 = scalar_lea.sflag [#allocation6], %s330
        %s332 = sand.u32 %s50, 1
        %s333 = smul.addr %s332, 128
        %s334 = scalar_lea.vmem [#allocation5], %s333
        %p335 = pneg %p63
        %p336 = pneg %p60
        %p337 = pneg %p84
        %p338 = pneg %p81
        %p339 = pneg %p105
        %p340 = pneg %p102
        %p341 = pneg %p126
        %p342 = pneg %p123
        %p343 = pneg %p147
        %p344 = pneg %p144
        %p345 = pneg %p168
        %p346 = pneg %p165
        %p347 = pneg %p189
        %p348 = pneg %p186
        %p349 = pneg %p219
        %p350 = pneg %p216
        %s351 = sand.u32 %s206, 1
        %s352 = scalar_lea.sflag [#allocation7], %s351
        %s353 = sand.u32 %s206, 1
        %s354 = smul.addr %s353, 128
        %s355 = scalar_lea.vmem [#allocation11], %s354
        %s356 = smul.u32 %s30, 2
        %s357 = sadd.s32 %s356, %s31
        %s358 = smul.u32 8, %s357
        %s359 = smul.u32 %s30, 2
        %s360 = sadd.s32 %s359, %s31
        %s361 = smul.u32 8, %s360
        %s362 = smul.u32 %s30, 2
        %s363 = sadd.s32 %s362, %s31
        %s364 = smul.u32 %s363, 8
        %s365 = ssub.s32 %s364, 1
        %p366 = scmp.gt.s32.totalorder %s365, 0
        %s367 = scalar_select %p366, %s365, 0
        %s368 = sadd.s32 %s364, 8
        %p369 = scmp.lt.s32.totalorder %s368, 31
        %s370 = scalar_select %p369, %s368, 31
        %s371 = smul.u32 %s367, 16
        %s372 = scalar_lea.hbm %s1, %s371
        // Predicated region
        $region61: #{tpu_custom_call.1} parent=47 // pred_check
          _
        $region62: #{tpu_custom_call.1} parent=47 // pred_check_branch
          %374 = sbr.rel target = $region64
        $region63: #{tpu_custom_call.1} parent=47 // pred_region
          %375 = sst [smem:[#allocation14]] [#allocation13]
          %376 = sst [smem:[#allocation15]] [#allocation12]
        $region64: #{tpu_custom_call.1} parent=47 // pred_fallthru
          _
        %378 = shalt.err (0)
        %s380 = sshll.u32 %s372, 4
        %s381 = int_to_ptr.hbm [resolvable:$true] %s380
        %s382 = sshll.u32 [#allocation3], 4
        %s383 = int_to_ptr.vmem [resolvable:$true] %s382
        %385 = dma.hbm_to_vmem [thread:$0]  %s381, 256, %s383, [#allocation4]
        %s386 = smul.u32 %s370, 16
        %s387 = scalar_lea.hbm %s1, %s386
        %s388 = scalar_lea.vmem [#allocation3], 16
        %s389 = scalar_lea.sflag [#allocation4], 1
        // Predicated region
        $region65: #{tpu_custom_call.1} parent=47 // pred_check
          _
        $region66: #{tpu_custom_call.1} parent=47 // pred_check_branch
          %391 = sbr.rel target = $region68
        $region67: #{tpu_custom_call.1} parent=47 // pred_region
          %392 = sst [smem:[#allocation14]] [#allocation17]
          %393 = sst [smem:[#allocation15]] [#allocation16]
        $region68: #{tpu_custom_call.1} parent=47 // pred_fallthru
          _
        %395 = shalt.err (0)
        %s397 = sshll.u32 %s387, 4
        %s398 = int_to_ptr.hbm [resolvable:$true] %s397
        %s399 = sshll.u32 %s388, 4
        %s400 = int_to_ptr.vmem [resolvable:$true] %s399
        %402 = dma.hbm_to_vmem [thread:$0]  %s398, 256, %s400, %s389
        %v403 = vld [vmem:[#allocation8] sm:$0xff]
        %v404 = vld [vmem:[#allocation8 + $0x8] sm:$0xff]
        %v405 = vld [vmem:[#allocation8 + $0x10] sm:$0xff]
        %v406 = vld [vmem:[#allocation8 + $0x18] sm:$0xff]
        %v407 = vld [vmem:[#allocation8 + $0x20] sm:$0xff]
        %v408 = vld [vmem:[#allocation8 + $0x28] sm:$0xff]
        %v409 = vld [vmem:[#allocation8 + $0x30] sm:$0xff]
        %v410 = vld [vmem:[#allocation8 + $0x38] sm:$0xff]
        %v411 = vld [vmem:[#allocation8 + $0x40] sm:$0xff]
        %v412 = vld [vmem:[#allocation8 + $0x48] sm:$0xff]
        %v413 = vld [vmem:[#allocation8 + $0x50] sm:$0xff]
        %v414 = vld [vmem:[#allocation8 + $0x58] sm:$0xff]
        %v415 = vld [vmem:[#allocation8 + $0x60] sm:$0xff]
        %v416 = vld [vmem:[#allocation8 + $0x68] sm:$0xff]
        %v417 = vld [vmem:[#allocation8 + $0x70] sm:$0xff]
        %v418 = vld [vmem:[#allocation8 + $0x78] sm:$0xff]
        %v419 = vld [vmem:[%s3] sm:$0x1]
        %v420 = vld [vmem:[%s4] sm:$0x1]
        %v421 = vld [vmem:[%s314] sm:$0xff]
        %v422 = vld [vmem:[%s314 + $0x8] sm:$0xff]
        %v423 = vld [vmem:[%s314 + $0x10] sm:$0xff]
        %v424 = vld [vmem:[%s314 + $0x18] sm:$0xff]
        %v425 = vld [vmem:[%s314 + $0x20] sm:$0xff]
        %v426 = vld [vmem:[%s314 + $0x28] sm:$0xff]
        %v427 = vld [vmem:[%s314 + $0x30] sm:$0xff]
        %v428 = vld [vmem:[%s314 + $0x38] sm:$0xff]
        %v429 = vld [vmem:[%s314 + $0x40] sm:$0xff]
        %v430 = vld [vmem:[%s314 + $0x48] sm:$0xff]
        %v431 = vld [vmem:[%s314 + $0x50] sm:$0xff]
        %v432 = vld [vmem:[%s314 + $0x58] sm:$0xff]
        %v433 = vld [vmem:[%s314 + $0x60] sm:$0xff]
        %v434 = vld [vmem:[%s314 + $0x68] sm:$0xff]
        %v435 = vld [vmem:[%s314 + $0x70] sm:$0xff]
        %v436 = vld [vmem:[%s314 + $0x78] sm:$0xff]
        %437 = vmatpush.msra.mxu0 %v418
        %438 = vmatpush.msra.mxu0 %v417
        %439 = vmatpush.msra.mxu0 %v416
        %440 = vmatpush.msra.mxu0 %v415
        %441 = vmatpush.msra.mxu0 %v414
        %442 = vmatpush.msra.mxu0 %v413
        %443 = vmatpush.msra.mxu0 %v412
        %444 = vmatpush.msra.mxu0 %v411
        %445 = vmatpush.msra.mxu0 %v410
        %446 = vmatpush.msra.mxu0 %v409
        %447 = vmatpush.msra.mxu0 %v408
        %448 = vmatpush.msra.mxu0 %v407
        %449 = vmatpush.msra.mxu0 %v406
        %450 = vmatpush.msra.mxu0 %v405
        %451 = vmatpush.msra.mxu0 %v404
        %452 = vmatpush.msra.mxu0 %v403
        %453 = vmatmul.f32.gmra.mxu0 %v421
        %v454 = vpop.f32.mrf.mxu0
        %v455 = vadd.f32 0.0, %v454
        %456 = vmatmul.f32.gmra.mxu0 %v422
        %v457 = vpop.f32.mrf.mxu0
        %v458 = vadd.f32 0.0, %v457
        %459 = vmatmul.f32.gmra.mxu0 %v423
        %v460 = vpop.f32.mrf.mxu0
        %v461 = vadd.f32 0.0, %v460
        %462 = vmatmul.f32.gmra.mxu0 %v424
        %v463 = vpop.f32.mrf.mxu0
        %v464 = vadd.f32 0.0, %v463
        %465 = vmatmul.f32.gmra.mxu0 %v425
        %v466 = vpop.f32.mrf.mxu0
        %v467 = vadd.f32 0.0, %v466
        %468 = vmatmul.f32.gmra.mxu0 %v426
        %v469 = vpop.f32.mrf.mxu0
        %v470 = vadd.f32 0.0, %v469
        %471 = vmatmul.f32.gmra.mxu0 %v427
        %v472 = vpop.f32.mrf.mxu0
        %v473 = vadd.f32 0.0, %v472
        %474 = vmatmul.f32.gmra.mxu0 %v428
        %v475 = vpop.f32.mrf.mxu0
        %v476 = vadd.f32 0.0, %v475
        %477 = vmatmul.f32.gmra.mxu0 %v429
        %v478 = vpop.f32.mrf.mxu0
        %v479 = vadd.f32 0.0, %v478
        %480 = vmatmul.f32.gmra.mxu0 %v430
        %v481 = vpop.f32.mrf.mxu0
        %v482 = vadd.f32 0.0, %v481
        %483 = vmatmul.f32.gmra.mxu0 %v431
        %v484 = vpop.f32.mrf.mxu0
        %v485 = vadd.f32 0.0, %v484
        %486 = vmatmul.f32.gmra.mxu0 %v432
        %v487 = vpop.f32.mrf.mxu0
        %v488 = vadd.f32 0.0, %v487
        %489 = vmatmul.f32.gmra.mxu0 %v433
        %v490 = vpop.f32.mrf.mxu0
        %v491 = vadd.f32 0.0, %v490
        %492 = vmatmul.f32.gmra.mxu0 %v434
        %v493 = vpop.f32.mrf.mxu0
        %v494 = vadd.f32 0.0, %v493
        %495 = vmatmul.f32.gmra.mxu0 %v435
        %v496 = vpop.f32.mrf.mxu0
        %v497 = vadd.f32 0.0, %v496
        %498 = vmatmul.f32.gmra.mxu0 %v436
        %v499 = vpop.f32.mrf.mxu0
        %v500 = vadd.f32 0.0, %v499
        %501 = vdwg.mxu0
        %v503 = vperm.slane %v419, 0
        %v505 = vmul.f32 %v455, %v503
        %v506 = vmul.f32 %v458, %v503
        %v507 = vmul.f32 %v461, %v503
        %v508 = vmul.f32 %v464, %v503
        %v509 = vmul.f32 %v467, %v503
        %v510 = vmul.f32 %v470, %v503
        %v511 = vmul.f32 %v473, %v503
        %v512 = vmul.f32 %v476, %v503
        %v513 = vmul.f32 %v479, %v503
        %v514 = vmul.f32 %v482, %v503
        %v515 = vmul.f32 %v485, %v503
        %v516 = vmul.f32 %v488, %v503
        %v517 = vmul.f32 %v491, %v503
        %v518 = vmul.f32 %v494, %v503
        %v519 = vmul.f32 %v497, %v503
        %v520 = vmul.f32 %v500, %v503
        %v522 = vperm.slane %v420, 0
        %v524 = vadd.f32 %v505, %v522
        %v525 = vadd.f32 %v506, %v522
        %v526 = vadd.f32 %v507, %v522
        %v527 = vadd.f32 %v508, %v522
        %v528 = vadd.f32 %v509, %v522
        %v529 = vadd.f32 %v510, %v522
        %v530 = vadd.f32 %v511, %v522
        %v531 = vadd.f32 %v512, %v522
        %v532 = vadd.f32 %v513, %v522
        %v533 = vadd.f32 %v514, %v522
        %v534 = vadd.f32 %v515, %v522
        %v535 = vadd.f32 %v516, %v522
        %v536 = vadd.f32 %v517, %v522
        %v537 = vadd.f32 %v518, %v522
        %v538 = vadd.f32 %v519, %v522
        %v539 = vadd.f32 %v520, %v522
        %v540 = vmin.f32 %v524, 20.0
        %v541 = vmin.f32 %v525, 20.0
        %v542 = vmin.f32 %v526, 20.0
        %v543 = vmin.f32 %v527, 20.0
        %v544 = vmin.f32 %v528, 20.0
        %v545 = vmin.f32 %v529, 20.0
        %v546 = vmin.f32 %v530, 20.0
        %v547 = vmin.f32 %v531, 20.0
        %v548 = vmin.f32 %v532, 20.0
        %v549 = vmin.f32 %v533, 20.0
        %v550 = vmin.f32 %v534, 20.0
        %v551 = vmin.f32 %v535, 20.0
        %v552 = vmin.f32 %v536, 20.0
        %v553 = vmin.f32 %v537, 20.0
        %v554 = vmin.f32 %v538, 20.0
        %v555 = vmin.f32 %v539, 20.0
        %v556 = vmul.f32 %v540, 1.442695
        %v557 = vpow.pop %v556
        %v558 = vmul.f32 %v541, 1.442695
        %v559 = vpow.pop %v558
        %v560 = vmul.f32 %v542, 1.442695
        %v561 = vpow.pop %v560
        %v562 = vmul.f32 %v543, 1.442695
        %v563 = vpow.pop %v562
        %v564 = vmul.f32 %v544, 1.442695
        %v565 = vpow.pop %v564
        %v566 = vmul.f32 %v545, 1.442695
        %v567 = vpow.pop %v566
        %v568 = vmul.f32 %v546, 1.442695
        %v569 = vpow.pop %v568
        %v570 = vmul.f32 %v547, 1.442695
        %v571 = vpow.pop %v570
        %v572 = vmul.f32 %v548, 1.442695
        %v573 = vpow.pop %v572
        %v574 = vmul.f32 %v549, 1.442695
        %v575 = vpow.pop %v574
        %v576 = vmul.f32 %v550, 1.442695
        %v577 = vpow.pop %v576
        %v578 = vmul.f32 %v551, 1.442695
        %v579 = vpow.pop %v578
        %v580 = vmul.f32 %v552, 1.442695
        %v581 = vpow.pop %v580
        %v582 = vmul.f32 %v553, 1.442695
        %v583 = vpow.pop %v582
        %v584 = vmul.f32 %v554, 1.442695
        %v585 = vpow.pop %v584
        %v586 = vmul.f32 %v555, 1.442695
        %v587 = vpow.pop %v586
        %v588 = vadd.f32 %v557, 2.0
        %v589 = vadd.f32 %v559, 2.0
        %v590 = vadd.f32 %v561, 2.0
        %v591 = vadd.f32 %v563, 2.0
        %v592 = vadd.f32 %v565, 2.0
        %v593 = vadd.f32 %v567, 2.0
        %v594 = vadd.f32 %v569, 2.0
        %v595 = vadd.f32 %v571, 2.0
        %v596 = vadd.f32 %v573, 2.0
        %v597 = vadd.f32 %v575, 2.0
        %v598 = vadd.f32 %v577, 2.0
        %v599 = vadd.f32 %v579, 2.0
        %v600 = vadd.f32 %v581, 2.0
        %v601 = vadd.f32 %v583, 2.0
        %v602 = vadd.f32 %v585, 2.0
        %v603 = vadd.f32 %v587, 2.0
        %v604 = vmul.f32 %v557, %v588
        %v605 = vmul.f32 %v559, %v589
        %v606 = vmul.f32 %v561, %v590
        %v607 = vmul.f32 %v563, %v591
        %v608 = vmul.f32 %v565, %v592
        %v609 = vmul.f32 %v567, %v593
        %v610 = vmul.f32 %v569, %v594
        %v611 = vmul.f32 %v571, %v595
        %v612 = vmul.f32 %v573, %v596
        %v613 = vmul.f32 %v575, %v597
        %v614 = vmul.f32 %v577, %v598
        %v615 = vmul.f32 %v579, %v599
        %v616 = vmul.f32 %v581, %v600
        %v617 = vmul.f32 %v583, %v601
        %v618 = vmul.f32 %v585, %v602
        %v619 = vmul.f32 %v587, %v603
        %v620 = vadd.f32 %v604, 2.0
        %v621 = vadd.f32 %v605, 2.0
        %v622 = vadd.f32 %v606, 2.0
        %v623 = vadd.f32 %v607, 2.0
        %v624 = vadd.f32 %v608, 2.0
        %v625 = vadd.f32 %v609, 2.0
        %v626 = vadd.f32 %v610, 2.0
        %v627 = vadd.f32 %v611, 2.0
        %v628 = vadd.f32 %v612, 2.0
        %v629 = vadd.f32 %v613, 2.0
        %v630 = vadd.f32 %v614, 2.0
        %v631 = vadd.f32 %v615, 2.0
        %v632 = vadd.f32 %v616, 2.0
        %v633 = vadd.f32 %v617, 2.0
        %v634 = vadd.f32 %v618, 2.0
        %v635 = vadd.f32 %v619, 2.0
        %v636 = vrcp.pop %v620
        %v637 = vmul.f32 %v620, %v636
        %v638 = vsub.f32 1.0, %v637
        %v639 = vmul.f32 %v636, %v638
        %v640 = vadd.f32 %v636, %v639
        %vm641 = vweird.f32 %v620
        %vm642 = vweird.f32 %v636
        %vm643 = vmor %vm641, %vm642
        %v644 = vsel %vm643, %v636, %v640
        %v645 = vand.u32 2147483647, %v620
        %vm646 = vcmp.eq.f32.partialorder %v645, 8.507059e+37
        %v647 = vand.u32 %v620, 2147483648
        %v648 = vor.u32 1.1754944e-38, %v647
        %v649 = vsel %vm646, %v648, %v644
        %v650 = vmul.f32 %v604, %v649
        %v651 = vrcp.pop %v621
        %v652 = vmul.f32 %v621, %v651
        %v653 = vsub.f32 1.0, %v652
        %v654 = vmul.f32 %v651, %v653
        %v655 = vadd.f32 %v651, %v654
        %vm656 = vweird.f32 %v621
        %vm657 = vweird.f32 %v651
        %vm658 = vmor %vm656, %vm657
        %v659 = vsel %vm658, %v651, %v655
        %v660 = vand.u32 2147483647, %v621
        %vm661 = vcmp.eq.f32.partialorder %v660, 8.507059e+37
        %v662 = vand.u32 %v621, 2147483648
        %v663 = vor.u32 1.1754944e-38, %v662
        %v664 = vsel %vm661, %v663, %v659
        %v665 = vmul.f32 %v605, %v664
        %v666 = vrcp.pop %v622
        %v667 = vmul.f32 %v622, %v666
        %v668 = vsub.f32 1.0, %v667
        %v669 = vmul.f32 %v666, %v668
        %v670 = vadd.f32 %v666, %v669
        %vm671 = vweird.f32 %v622
        %vm672 = vweird.f32 %v666
        %vm673 = vmor %vm671, %vm672
        %v674 = vsel %vm673, %v666, %v670
        %v675 = vand.u32 2147483647, %v622
        %vm676 = vcmp.eq.f32.partialorder %v675, 8.507059e+37
        %v677 = vand.u32 %v622, 2147483648
        %v678 = vor.u32 1.1754944e-38, %v677
        %v679 = vsel %vm676, %v678, %v674
        %v680 = vmul.f32 %v606, %v679
        %v681 = vrcp.pop %v623
        %v682 = vmul.f32 %v623, %v681
        %v683 = vsub.f32 1.0, %v682
        %v684 = vmul.f32 %v681, %v683
        %v685 = vadd.f32 %v681, %v684
        %vm686 = vweird.f32 %v623
        %vm687 = vweird.f32 %v681
        %vm688 = vmor %vm686, %vm687
        %v689 = vsel %vm688, %v681, %v685
        %v690 = vand.u32 2147483647, %v623
        %vm691 = vcmp.eq.f32.partialorder %v690, 8.507059e+37
        %v692 = vand.u32 %v623, 2147483648
        %v693 = vor.u32 1.1754944e-38, %v692
        %v694 = vsel %vm691, %v693, %v689
        %v695 = vmul.f32 %v607, %v694
        %v696 = vrcp.pop %v624
        %v697 = vmul.f32 %v624, %v696
        %v698 = vsub.f32 1.0, %v697
        %v699 = vmul.f32 %v696, %v698
        %v700 = vadd.f32 %v696, %v699
        %vm701 = vweird.f32 %v624
        %vm702 = vweird.f32 %v696
        %vm703 = vmor %vm701, %vm702
        %v704 = vsel %vm703, %v696, %v700
        %v705 = vand.u32 2147483647, %v624
        %vm706 = vcmp.eq.f32.partialorder %v705, 8.507059e+37
        %v707 = vand.u32 %v624, 2147483648
        %v708 = vor.u32 1.1754944e-38, %v707
        %v709 = vsel %vm706, %v708, %v704
        %v710 = vmul.f32 %v608, %v709
        %v711 = vrcp.pop %v625
        %v712 = vmul.f32 %v625, %v711
        %v713 = vsub.f32 1.0, %v712
        %v714 = vmul.f32 %v711, %v713
        %v715 = vadd.f32 %v711, %v714
        %vm716 = vweird.f32 %v625
        %vm717 = vweird.f32 %v711
        %vm718 = vmor %vm716, %vm717
        %v719 = vsel %vm718, %v711, %v715
        %v720 = vand.u32 2147483647, %v625
        %vm721 = vcmp.eq.f32.partialorder %v720, 8.507059e+37
        %v722 = vand.u32 %v625, 2147483648
        %v723 = vor.u32 1.1754944e-38, %v722
        %v724 = vsel %vm721, %v723, %v719
        %v725 = vmul.f32 %v609, %v724
        %v726 = vrcp.pop %v626
        %v727 = vmul.f32 %v626, %v726
        %v728 = vsub.f32 1.0, %v727
        %v729 = vmul.f32 %v726, %v728
        %v730 = vadd.f32 %v726, %v729
        %vm731 = vweird.f32 %v626
        %vm732 = vweird.f32 %v726
        %vm733 = vmor %vm731, %vm732
        %v734 = vsel %vm733, %v726, %v730
        %v735 = vand.u32 2147483647, %v626
        %vm736 = vcmp.eq.f32.partialorder %v735, 8.507059e+37
        %v737 = vand.u32 %v626, 2147483648
        %v738 = vor.u32 1.1754944e-38, %v737
        %v739 = vsel %vm736, %v738, %v734
        %v740 = vmul.f32 %v610, %v739
        %v741 = vrcp.pop %v627
        %v742 = vmul.f32 %v627, %v741
        %v743 = vsub.f32 1.0, %v742
        %v744 = vmul.f32 %v741, %v743
        %v745 = vadd.f32 %v741, %v744
        %vm746 = vweird.f32 %v627
        %vm747 = vweird.f32 %v741
        %vm748 = vmor %vm746, %vm747
        %v749 = vsel %vm748, %v741, %v745
        %v750 = vand.u32 2147483647, %v627
        %vm751 = vcmp.eq.f32.partialorder %v750, 8.507059e+37
        %v752 = vand.u32 %v627, 2147483648
        %v753 = vor.u32 1.1754944e-38, %v752
        %v754 = vsel %vm751, %v753, %v749
        %v755 = vmul.f32 %v611, %v754
        %v756 = vrcp.pop %v628
        %v757 = vmul.f32 %v628, %v756
        %v758 = vsub.f32 1.0, %v757
        %v759 = vmul.f32 %v756, %v758
        %v760 = vadd.f32 %v756, %v759
        %vm761 = vweird.f32 %v628
        %vm762 = vweird.f32 %v756
        %vm763 = vmor %vm761, %vm762
        %v764 = vsel %vm763, %v756, %v760
        %v765 = vand.u32 2147483647, %v628
        %vm766 = vcmp.eq.f32.partialorder %v765, 8.507059e+37
        %v767 = vand.u32 %v628, 2147483648
        %v768 = vor.u32 1.1754944e-38, %v767
        %v769 = vsel %vm766, %v768, %v764
        %v770 = vmul.f32 %v612, %v769
        %v771 = vrcp.pop %v629
        %v772 = vmul.f32 %v629, %v771
        %v773 = vsub.f32 1.0, %v772
        %v774 = vmul.f32 %v771, %v773
        %v775 = vadd.f32 %v771, %v774
        %vm776 = vweird.f32 %v629
        %vm777 = vweird.f32 %v771
        %vm778 = vmor %vm776, %vm777
        %v779 = vsel %vm778, %v771, %v775
        %v780 = vand.u32 2147483647, %v629
        %vm781 = vcmp.eq.f32.partialorder %v780, 8.507059e+37
        %v782 = vand.u32 %v629, 2147483648
        %v783 = vor.u32 1.1754944e-38, %v782
        %v784 = vsel %vm781, %v783, %v779
        %v785 = vmul.f32 %v613, %v784
        %v786 = vrcp.pop %v630
        %v787 = vmul.f32 %v630, %v786
        %v788 = vsub.f32 1.0, %v787
        %v789 = vmul.f32 %v786, %v788
        %v790 = vadd.f32 %v786, %v789
        %vm791 = vweird.f32 %v630
        %vm792 = vweird.f32 %v786
        %vm793 = vmor %vm791, %vm792
        %v794 = vsel %vm793, %v786, %v790
        %v795 = vand.u32 2147483647, %v630
        %vm796 = vcmp.eq.f32.partialorder %v795, 8.507059e+37
        %v797 = vand.u32 %v630, 2147483648
        %v798 = vor.u32 1.1754944e-38, %v797
        %v799 = vsel %vm796, %v798, %v794
        %v800 = vmul.f32 %v614, %v799
        %v801 = vrcp.pop %v631
        %v802 = vmul.f32 %v631, %v801
        %v803 = vsub.f32 1.0, %v802
        %v804 = vmul.f32 %v801, %v803
        %v805 = vadd.f32 %v801, %v804
        %vm806 = vweird.f32 %v631
        %vm807 = vweird.f32 %v801
        %vm808 = vmor %vm806, %vm807
        %v809 = vsel %vm808, %v801, %v805
        %v810 = vand.u32 2147483647, %v631
        %vm811 = vcmp.eq.f32.partialorder %v810, 8.507059e+37
        %v812 = vand.u32 %v631, 2147483648
        %v813 = vor.u32 1.1754944e-38, %v812
        %v814 = vsel %vm811, %v813, %v809
        %v815 = vmul.f32 %v615, %v814
        %v816 = vrcp.pop %v632
        %v817 = vmul.f32 %v632, %v816
        %v818 = vsub.f32 1.0, %v817
        %v819 = vmul.f32 %v816, %v818
        %v820 = vadd.f32 %v816, %v819
        %vm821 = vweird.f32 %v632
        %vm822 = vweird.f32 %v816
        %vm823 = vmor %vm821, %vm822
        %v824 = vsel %vm823, %v816, %v820
        %v825 = vand.u32 2147483647, %v632
        %vm826 = vcmp.eq.f32.partialorder %v825, 8.507059e+37
        %v827 = vand.u32 %v632, 2147483648
        %v828 = vor.u32 1.1754944e-38, %v827
        %v829 = vsel %vm826, %v828, %v824
        %v830 = vmul.f32 %v616, %v829
        %v831 = vrcp.pop %v633
        %v832 = vmul.f32 %v633, %v831
        %v833 = vsub.f32 1.0, %v832
        %v834 = vmul.f32 %v831, %v833
        %v835 = vadd.f32 %v831, %v834
        %vm836 = vweird.f32 %v633
        %vm837 = vweird.f32 %v831
        %vm838 = vmor %vm836, %vm837
        %v839 = vsel %vm838, %v831, %v835
        %v840 = vand.u32 2147483647, %v633
        %vm841 = vcmp.eq.f32.partialorder %v840, 8.507059e+37
        %v842 = vand.u32 %v633, 2147483648
        %v843 = vor.u32 1.1754944e-38, %v842
        %v844 = vsel %vm841, %v843, %v839
        %v845 = vmul.f32 %v617, %v844
        %v846 = vrcp.pop %v634
        %v847 = vmul.f32 %v634, %v846
        %v848 = vsub.f32 1.0, %v847
        %v849 = vmul.f32 %v846, %v848
        %v850 = vadd.f32 %v846, %v849
        %vm851 = vweird.f32 %v634
        %vm852 = vweird.f32 %v846
        %vm853 = vmor %vm851, %vm852
        %v854 = vsel %vm853, %v846, %v850
        %v855 = vand.u32 2147483647, %v634
        %vm856 = vcmp.eq.f32.partialorder %v855, 8.507059e+37
        %v857 = vand.u32 %v634, 2147483648
        %v858 = vor.u32 1.1754944e-38, %v857
        %v859 = vsel %vm856, %v858, %v854
        %v860 = vmul.f32 %v618, %v859
        %v861 = vrcp.pop %v635
        %v862 = vmul.f32 %v635, %v861
        %v863 = vsub.f32 1.0, %v862
        %v864 = vmul.f32 %v861, %v863
        %v865 = vadd.f32 %v861, %v864
        %vm866 = vweird.f32 %v635
        %vm867 = vweird.f32 %v861
        %vm868 = vmor %vm866, %vm867
        %v869 = vsel %vm868, %v861, %v865
        %v870 = vand.u32 2147483647, %v635
        %vm871 = vcmp.eq.f32.partialorder %v870, 8.507059e+37
        %v872 = vand.u32 %v635, 2147483648
        %v873 = vor.u32 1.1754944e-38, %v872
        %v874 = vsel %vm871, %v873, %v869
        %v875 = vmul.f32 %v619, %v874
        %vm876 = vcmp.gt.f32.partialorder %v524, 20.0
        %vm877 = vcmp.gt.f32.partialorder %v525, 20.0
        %vm878 = vcmp.gt.f32.partialorder %v526, 20.0
        %vm879 = vcmp.gt.f32.partialorder %v527, 20.0
        %vm880 = vcmp.gt.f32.partialorder %v528, 20.0
        %vm881 = vcmp.gt.f32.partialorder %v529, 20.0
        %vm882 = vcmp.gt.f32.partialorder %v530, 20.0
        %vm883 = vcmp.gt.f32.partialorder %v531, 20.0
        %vm884 = vcmp.gt.f32.partialorder %v532, 20.0
        %vm885 = vcmp.gt.f32.partialorder %v533, 20.0
        %vm886 = vcmp.gt.f32.partialorder %v534, 20.0
        %vm887 = vcmp.gt.f32.partialorder %v535, 20.0
        %vm888 = vcmp.gt.f32.partialorder %v536, 20.0
        %vm889 = vcmp.gt.f32.partialorder %v537, 20.0
        %vm890 = vcmp.gt.f32.partialorder %v538, 20.0
        %vm891 = vcmp.gt.f32.partialorder %v539, 20.0
        %v892 = vmul.f32 %v524, %v650
        %v893 = vmul.f32 %v525, %v665
        %v894 = vmul.f32 %v526, %v680
        %v895 = vmul.f32 %v527, %v695
        %v896 = vmul.f32 %v528, %v710
        %v897 = vmul.f32 %v529, %v725
        %v898 = vmul.f32 %v530, %v740
        %v899 = vmul.f32 %v531, %v755
        %v900 = vmul.f32 %v532, %v770
        %v901 = vmul.f32 %v533, %v785
        %v902 = vmul.f32 %v534, %v800
        %v903 = vmul.f32 %v535, %v815
        %v904 = vmul.f32 %v536, %v830
        %v905 = vmul.f32 %v537, %v845
        %v906 = vmul.f32 %v538, %v860
        %v907 = vmul.f32 %v539, %v875
        %v908 = vsel %vm876, %v524, %v892
        %v909 = vsel %vm877, %v525, %v893
        %v910 = vsel %vm878, %v526, %v894
        %v911 = vsel %vm879, %v527, %v895
        %v912 = vsel %vm880, %v528, %v896
        %v913 = vsel %vm881, %v529, %v897
        %v914 = vsel %vm882, %v530, %v898
        %v915 = vsel %vm883, %v531, %v899
        %v916 = vsel %vm884, %v532, %v900
        %v917 = vsel %vm885, %v533, %v901
        %v918 = vsel %vm886, %v534, %v902
        %v919 = vsel %vm887, %v535, %v903
        %v920 = vsel %vm888, %v536, %v904
        %v921 = vsel %vm889, %v537, %v905
        %v922 = vsel %vm890, %v538, %v906
        %v923 = vsel %vm891, %v539, %v907
        %s924 = scalar_lea.vmem [#allocation2], 48
        %925 = vst [vmem:[%s924 + $0x8] sm:$0xff] %v908
        %926 = vst [vmem:[%s924 + $0x20] sm:$0xff] %v909
        %927 = vst [vmem:[%s924 + $0x38] sm:$0xff] %v910
        %928 = vst [vmem:[%s924 + $0x50] sm:$0xff] %v911
        %929 = vst [vmem:[%s924 + $0x68] sm:$0xff] %v912
        %930 = vst [vmem:[%s924 + $0x80] sm:$0xff] %v913
        %931 = vst [vmem:[%s924 + $0x98] sm:$0xff] %v914
        %932 = vst [vmem:[%s924 + $0xb0] sm:$0xff] %v915
        %933 = vst [vmem:[%s924 + $0xc8] sm:$0xff] %v916
        %934 = vst [vmem:[%s924 + $0xe0] sm:$0xff] %v917
        %935 = vst [vmem:[%s924 + $0xf8] sm:$0xff] %v918
        %936 = vst [vmem:[%s924 + $0x110] sm:$0xff] %v919
        %937 = vst [vmem:[%s924 + $0x128] sm:$0xff] %v920
        %938 = vst [vmem:[%s924 + $0x140] sm:$0xff] %v921
        %939 = vst [vmem:[%s924 + $0x158] sm:$0xff] %v922
        %940 = vst [vmem:[%s924 + $0x170] sm:$0xff] %v923
        %s941 = smul.u32 16, 1
        %s942 = sshll.u32 %s941, 4
        %943 = dma.done [#allocation4], %s942
        %s944 = sshll.u32 %s941, 4
        %945 = dma.done %s389, %s944
        %p946 = scmp.gt.s32.totalorder %s31, 0
        // Predicated region
        $region69: #{tpu_custom_call.1} parent=47 // pred_check
          %p947 = pneg %p946
        $region70: #{tpu_custom_call.1} parent=47 // pred_check_branch
          %949 = sbr.rel (%p947) target = $region72
        $region71: #{tpu_custom_call.1} parent=47 // pred_region
          %v950 = vld [vmem:[#allocation3] sm:$0xff]
          %v951 = vld [vmem:[#allocation3 + $0x8] sm:$0xff]
          %952 = vmatpush.msra.mxu0 %v418
          %953 = vmatpush.msra.mxu0 %v417
          %954 = vmatpush.msra.mxu0 %v416
          %955 = vmatpush.msra.mxu0 %v415
          %956 = vmatpush.msra.mxu0 %v414
          %957 = vmatpush.msra.mxu0 %v413
          %958 = vmatpush.msra.mxu0 %v412
          %959 = vmatpush.msra.mxu0 %v411
          %960 = vmatpush.msra.mxu0 %v410
          %961 = vmatpush.msra.mxu0 %v409
          %962 = vmatpush.msra.mxu0 %v408
          %963 = vmatpush.msra.mxu0 %v407
          %964 = vmatpush.msra.mxu0 %v406
          %965 = vmatpush.msra.mxu0 %v405
          %966 = vmatpush.msra.mxu0 %v404
          %967 = vmatpush.msra.mxu0 %v403
          %968 = vmatmul.f32.gmra.mxu0 %v950
          %v969 = vpop.f32.mrf.mxu0
          %v970 = vadd.f32 0.0, %v969
          %971 = vmatmul.f32.gmra.mxu0 %v951
          %v972 = vpop.f32.mrf.mxu0
          %v973 = vadd.f32 0.0, %v972
          %974 = vdwg.mxu0
          %v975 = vmul.f32 %v970, %v503
          %v976 = vmul.f32 %v973, %v503
          %v977 = vadd.f32 %v975, %v522
          %v978 = vadd.f32 %v976, %v522
          %v979 = vmin.f32 %v977, 20.0
          %v980 = vmin.f32 %v978, 20.0
          %v981 = vmul.f32 %v979, 1.442695
          %v982 = vpow.pop %v981
          %v983 = vmul.f32 %v980, 1.442695
          %v984 = vpow.pop %v983
          %v985 = vadd.f32 %v982, 2.0
          %v986 = vadd.f32 %v984, 2.0
          %v987 = vmul.f32 %v982, %v985
          %v988 = vmul.f32 %v984, %v986
          %v989 = vadd.f32 %v987, 2.0
          %v990 = vadd.f32 %v988, 2.0
          %v991 = vrcp.pop %v989
          %v992 = vmul.f32 %v989, %v991
          %v993 = vsub.f32 1.0, %v992
          %v994 = vmul.f32 %v991, %v993
          %v995 = vadd.f32 %v991, %v994
          %vm996 = vweird.f32 %v989
          %vm997 = vweird.f32 %v991
          %vm998 = vmor %vm996, %vm997
          %v999 = vsel %vm998, %v991, %v995
          %v1000 = vand.u32 2147483647, %v989
          %vm1001 = vcmp.eq.f32.partialorder %v1000, 8.507059e+37
          %v1002 = vand.u32 %v989, 2147483648
          %v1003 = vor.u32 1.1754944e-38, %v1002
          %v1004 = vsel %vm1001, %v1003, %v999
          %v1005 = vmul.f32 %v987, %v1004
          %v1006 = vrcp.pop %v990
          %v1007 = vmul.f32 %v990, %v1006
          %v1008 = vsub.f32 1.0, %v1007
          %v1009 = vmul.f32 %v1006, %v1008
          %v1010 = vadd.f32 %v1006, %v1009
          %vm1011 = vweird.f32 %v990
          %vm1012 = vweird.f32 %v1006
          %vm1013 = vmor %vm1011, %vm1012
          %v1014 = vsel %vm1013, %v1006, %v1010
          %v1015 = vand.u32 2147483647, %v990
          %vm1016 = vcmp.eq.f32.partialorder %v1015, 8.507059e+37
          %v1017 = vand.u32 %v990, 2147483648
          %v1018 = vor.u32 1.1754944e-38, %v1017
          %v1019 = vsel %vm1016, %v1018, %v1014
          %v1020 = vmul.f32 %v988, %v1019
          %vm1021 = vcmp.gt.f32.partialorder %v977, 20.0
          %vm1022 = vcmp.gt.f32.partialorder %v978, 20.0
          %v1023 = vmul.f32 %v977, %v1005
          %v1024 = vmul.f32 %v978, %v1020
          %v1025 = vsel %vm1021, %v977, %v1023
          %v1026 = vsel %vm1022, %v978, %v1024
          %1027 = vst [vmem:[#allocation2 + $0x8] sm:$0xff] %v1025
          %1028 = vst [vmem:[#allocation2 + $0x20] sm:$0xff] %v1026
        $region72: #{tpu_custom_call.1} parent=47 // pred_fallthru
          _
        %p1029 = scmp.eq.s32.totalorder %s31, 0
        // Predicated region
        $region73: #{tpu_custom_call.1} parent=47 // pred_check
          %p1030 = pneg %p1029
        $region74: #{tpu_custom_call.1} parent=47 // pred_check_branch
          %1032 = sbr.rel (%p1030) target = $region76
        $region75: #{tpu_custom_call.1} parent=47 // pred_region
          %1033 = vst [vmem:[#allocation2 + $0x8] sm:$0xff] 0.0
          %1034 = vst [vmem:[#allocation2 + $0x20] sm:$0xff] 0.0
        $region76: #{tpu_custom_call.1} parent=47 // pred_fallthru
          _
        %p1035 = scmp.lt.s32.totalorder %s31, 1
        // Predicated region
        $region77: #{tpu_custom_call.1} parent=47 // pred_check
          %p1036 = pneg %p1035
        $region78: #{tpu_custom_call.1} parent=47 // pred_check_branch
          %1038 = sbr.rel (%p1036) target = $region80
        $region79: #{tpu_custom_call.1} parent=47 // pred_region
          %v1039 = vld [vmem:[%s388] sm:$0xff]
          %v1040 = vld [vmem:[%s388 + $0x8] sm:$0xff]
          %1041 = vmatpush.msra.mxu0 %v418
          %1042 = vmatpush.msra.mxu0 %v417
          %1043 = vmatpush.msra.mxu0 %v416
          %1044 = vmatpush.msra.mxu0 %v415
          %1045 = vmatpush.msra.mxu0 %v414
          %1046 = vmatpush.msra.mxu0 %v413
          %1047 = vmatpush.msra.mxu0 %v412
          %1048 = vmatpush.msra.mxu0 %v411
          %1049 = vmatpush.msra.mxu0 %v410
          %1050 = vmatpush.msra.mxu0 %v409
          %1051 = vmatpush.msra.mxu0 %v408
          %1052 = vmatpush.msra.mxu0 %v407
          %1053 = vmatpush.msra.mxu0 %v406
          %1054 = vmatpush.msra.mxu0 %v405
          %1055 = vmatpush.msra.mxu0 %v404
          %1056 = vmatpush.msra.mxu0 %v403
          %1057 = vmatmul.f32.gmra.mxu0 %v1039
          %v1058 = vpop.f32.mrf.mxu0
          %v1059 = vadd.f32 0.0, %v1058
          %1060 = vmatmul.f32.gmra.mxu0 %v1040
          %v1061 = vpop.f32.mrf.mxu0
          %v1062 = vadd.f32 0.0, %v1061
          %1063 = vdwg.mxu0
          %v1064 = vmul.f32 %v1059, %v503
          %v1065 = vmul.f32 %v1062, %v503
          %v1066 = vadd.f32 %v1064, %v522
          %v1067 = vadd.f32 %v1065, %v522
          %v1068 = vmin.f32 %v1066, 20.0
          %v1069 = vmin.f32 %v1067, 20.0
          %v1070 = vmul.f32 %v1068, 1.442695
          %v1071 = vpow.pop %v1070
          %v1072 = vmul.f32 %v1069, 1.442695
          %v1073 = vpow.pop %v1072
          %v1074 = vadd.f32 %v1071, 2.0
          %v1075 = vadd.f32 %v1073, 2.0
          %v1076 = vmul.f32 %v1071, %v1074
          %v1077 = vmul.f32 %v1073, %v1075
          %v1078 = vadd.f32 %v1076, 2.0
          %v1079 = vadd.f32 %v1077, 2.0
          %v1080 = vrcp.pop %v1078
          %v1081 = vmul.f32 %v1078, %v1080
          %v1082 = vsub.f32 1.0, %v1081
          %v1083 = vmul.f32 %v1080, %v1082
          %v1084 = vadd.f32 %v1080, %v1083
          %vm1085 = vweird.f32 %v1078
          %vm1086 = vweird.f32 %v1080
          %vm1087 = vmor %vm1085, %vm1086
          %v1088 = vsel %vm1087, %v1080, %v1084
          %v1089 = vand.u32 2147483647, %v1078
          %vm1090 = vcmp.eq.f32.partialorder %v1089, 8.507059e+37
          %v1091 = vand.u32 %v1078, 2147483648
          %v1092 = vor.u32 1.1754944e-38, %v1091
          %v1093 = vsel %vm1090, %v1092, %v1088
          %v1094 = vmul.f32 %v1076, %v1093
          %v1095 = vrcp.pop %v1079
          %v1096 = vmul.f32 %v1079, %v1095
          %v1097 = vsub.f32 1.0, %v1096
          %v1098 = vmul.f32 %v1095, %v1097
          %v1099 = vadd.f32 %v1095, %v1098
          %vm1100 = vweird.f32 %v1079
          %vm1101 = vweird.f32 %v1095
          %vm1102 = vmor %vm1100, %vm1101
          %v1103 = vsel %vm1102, %v1095, %v1099
          %v1104 = vand.u32 2147483647, %v1079
          %vm1105 = vcmp.eq.f32.partialorder %v1104, 8.507059e+37
          %v1106 = vand.u32 %v1079, 2147483648
          %v1107 = vor.u32 1.1754944e-38, %v1106
          %v1108 = vsel %vm1105, %v1107, %v1103
          %v1109 = vmul.f32 %v1077, %v1108
          %vm1110 = vcmp.gt.f32.partialorder %v1066, 20.0
          %vm1111 = vcmp.gt.f32.partialorder %v1067, 20.0
          %v1112 = vmul.f32 %v1066, %v1094
          %v1113 = vmul.f32 %v1067, %v1109
          %v1114 = vsel %vm1110, %v1066, %v1112
          %v1115 = vsel %vm1111, %v1067, %v1113
          %s1116 = scalar_lea.vmem [#allocation2], 432
          %1117 = vst [vmem:[%s1116 + $0x8] sm:$0xff] %v1114
          %1118 = vst [vmem:[%s1116 + $0x20] sm:$0xff] %v1115
        $region80: #{tpu_custom_call.1} parent=47 // pred_fallthru
          _
        %p1119 = scmp.eq.s32.totalorder %s31, 1
        // Predicated region
        $region81: #{tpu_custom_call.1} parent=47 // pred_check
          %p1120 = pneg %p1119
        $region82: #{tpu_custom_call.1} parent=47 // pred_check_branch
          %1122 = sbr.rel (%p1120) target = $region84
        $region83: #{tpu_custom_call.1} parent=47 // pred_region
          %s1123 = scalar_lea.vmem [#allocation2], 432
          %1124 = vst [vmem:[%s1123 + $0x8] sm:$0xff] 0.0
          %1125 = vst [vmem:[%s1123 + $0x20] sm:$0xff] 0.0
        $region84: #{tpu_custom_call.1} parent=47 // pred_fallthru
          _
        %1126 = vst [vmem:[#allocation2] sm:$0x1] 0.0
        %1127 = vst [vmem:[#allocation2 + $0x30] sm:$0x1] 0.0
        %1128 = vst [vmem:[#allocation2 + $0x60] sm:$0x1] 0.0
        %1129 = vst [vmem:[#allocation2 + $0x90] sm:$0x1] 0.0
        %1130 = vst [vmem:[#allocation2 + $0xc0] sm:$0x1] 0.0
        %1131 = vst [vmem:[#allocation2 + $0xf0] sm:$0x1] 0.0
        %1132 = vst [vmem:[#allocation2 + $0x120] sm:$0x1] 0.0
        %1133 = vst [vmem:[#allocation2 + $0x150] sm:$0x1] 0.0
        %1134 = vst [vmem:[#allocation2 + $0x180] sm:$0x1] 0.0
        %1135 = vst [vmem:[#allocation2 + $0x1b0] sm:$0x1] 0.0
        %v1136 = vld [vmem:[#allocation2 + $0x8] sm:$0xff]
        %v1137 = vld [vmem:[#allocation2 + $0x20] sm:$0x7f]
        %v1138 = vld [vmem:[#allocation2 + $0x38] sm:$0xff]
        %v1139 = vld [vmem:[#allocation2 + $0x50] sm:$0x7f]
        %v1140 = vld [vmem:[#allocation2 + $0x68] sm:$0xff]
        %v1141 = vld [vmem:[#allocation2 + $0x80] sm:$0x7f]
        %v1142 = vld [vmem:[#allocation2 + $0x98] sm:$0xff]
        %v1143 = vld [vmem:[#allocation2 + $0xb0] sm:$0x7f]
        %v1144 = vld [vmem:[#allocation2 + $0xc8] sm:$0xff]
        %v1145 = vld [vmem:[#allocation2 + $0xe0] sm:$0x7f]
        %v1146 = vld [vmem:[#allocation2 + $0xf8] sm:$0xff]
        %v1147 = vld [vmem:[#allocation2 + $0x110] sm:$0x7f]
        %v1148 = vld [vmem:[#allocation2 + $0x128] sm:$0xff]
        %v1149 = vld [vmem:[#allocation2 + $0x140] sm:$0x7f]
        %v1150 = vld [vmem:[#allocation2 + $0x158] sm:$0xff]
        %v1151 = vld [vmem:[#allocation2 + $0x170] sm:$0x7f]
        %v1152 = vld [vmem:[#allocation2 + $0x188] sm:$0xff]
        %v1153 = vld [vmem:[#allocation2 + $0x1a0] sm:$0x7f]
        %v1154 = vld [vmem:[#allocation2 + $0x1b8] sm:$0xff]
        %v1155 = vld [vmem:[#allocation2 + $0x1d0] sm:$0x7f]
        %vm1176 = vcmask 1040384
        %v1177 = vrot.slane %v1136, 7
        %v1178 = vrot.slane %v1137, 7
        %v1179 = vsel %vm1176, %v1177, %v1178
        %v1180 = vrot.slane %v1138, 7
        %v1181 = vrot.slane %v1139, 7
        %v1182 = vsel %vm1176, %v1180, %v1181
        %v1183 = vrot.slane %v1140, 7
        %v1184 = vrot.slane %v1141, 7
        %v1185 = vsel %vm1176, %v1183, %v1184
        %v1186 = vrot.slane %v1142, 7
        %v1187 = vrot.slane %v1143, 7
        %v1188 = vsel %vm1176, %v1186, %v1187
        %v1189 = vrot.slane %v1144, 7
        %v1190 = vrot.slane %v1145, 7
        %v1191 = vsel %vm1176, %v1189, %v1190
        %v1192 = vrot.slane %v1146, 7
        %v1193 = vrot.slane %v1147, 7
        %v1194 = vsel %vm1176, %v1192, %v1193
        %v1195 = vrot.slane %v1148, 7
        %v1196 = vrot.slane %v1149, 7
        %v1197 = vsel %vm1176, %v1195, %v1196
        %v1198 = vrot.slane %v1150, 7
        %v1199 = vrot.slane %v1151, 7
        %v1200 = vsel %vm1176, %v1198, %v1199
        %v1201 = vrot.slane %v1152, 7
        %v1202 = vrot.slane %v1153, 7
        %v1203 = vsel %vm1176, %v1201, %v1202
        %v1204 = vrot.slane %v1154, 7
        %v1205 = vrot.slane %v1155, 7
        %v1206 = vsel %vm1176, %v1204, %v1205
        %1227 = vst [vmem:[#allocation2] sm:$0xfe] %v1177
        %1228 = vst [vmem:[#allocation2 + $0x18] sm:$0xff] %v1179
        %1229 = vst [vmem:[#allocation2 + $0x30] sm:$0xfe] %v1180
        %1230 = vst [vmem:[#allocation2 + $0x48] sm:$0xff] %v1182
        %1231 = vst [vmem:[#allocation2 + $0x60] sm:$0xfe] %v1183
        %1232 = vst [vmem:[#allocation2 + $0x78] sm:$0xff] %v1185
        %1233 = vst [vmem:[#allocation2 + $0x90] sm:$0xfe] %v1186
        %1234 = vst [vmem:[#allocation2 + $0xa8] sm:$0xff] %v1188
        %1235 = vst [vmem:[#allocation2 + $0xc0] sm:$0xfe] %v1189
        %1236 = vst [vmem:[#allocation2 + $0xd8] sm:$0xff] %v1191
        %1237 = vst [vmem:[#allocation2 + $0xf0] sm:$0xfe] %v1192
        %1238 = vst [vmem:[#allocation2 + $0x108] sm:$0xff] %v1194
        %1239 = vst [vmem:[#allocation2 + $0x120] sm:$0xfe] %v1195
        %1240 = vst [vmem:[#allocation2 + $0x138] sm:$0xff] %v1197
        %1241 = vst [vmem:[#allocation2 + $0x150] sm:$0xfe] %v1198
        %1242 = vst [vmem:[#allocation2 + $0x168] sm:$0xff] %v1200
        %1243 = vst [vmem:[#allocation2 + $0x180] sm:$0xfe] %v1201
        %1244 = vst [vmem:[#allocation2 + $0x198] sm:$0xff] %v1203
        %1245 = vst [vmem:[#allocation2 + $0x1b0] sm:$0xfe] %v1204
        %1246 = vst [vmem:[#allocation2 + $0x1c8] sm:$0xff] %v1206
        %1247 = vst [vmem:[#allocation2 + $0x2f] sm:$0x1] 0.0
        %1248 = vst [vmem:[#allocation2 + $0x5f] sm:$0x1] 0.0
        %1249 = vst [vmem:[#allocation2 + $0x8f] sm:$0x1] 0.0
        %1250 = vst [vmem:[#allocation2 + $0xbf] sm:$0x1] 0.0
        %1251 = vst [vmem:[#allocation2 + $0xef] sm:$0x1] 0.0
        %1252 = vst [vmem:[#allocation2 + $0x11f] sm:$0x1] 0.0
        %1253 = vst [vmem:[#allocation2 + $0x14f] sm:$0x1] 0.0
        %1254 = vst [vmem:[#allocation2 + $0x17f] sm:$0x1] 0.0
        %1255 = vst [vmem:[#allocation2 + $0x1af] sm:$0x1] 0.0
        %1256 = vst [vmem:[#allocation2 + $0x1df] sm:$0x1] 0.0
        %v1257 = vld [vmem:[#allocation2 + $0x8] sm:$0xfe]
        %v1258 = vld [vmem:[#allocation2 + $0x20] sm:$0xff]
        %v1259 = vld [vmem:[#allocation2 + $0x38] sm:$0xfe]
        %v1260 = vld [vmem:[#allocation2 + $0x50] sm:$0xff]
        %v1261 = vld [vmem:[#allocation2 + $0x68] sm:$0xfe]
        %v1262 = vld [vmem:[#allocation2 + $0x80] sm:$0xff]
        %v1263 = vld [vmem:[#allocation2 + $0x98] sm:$0xfe]
        %v1264 = vld [vmem:[#allocation2 + $0xb0] sm:$0xff]
        %v1265 = vld [vmem:[#allocation2 + $0xc8] sm:$0xfe]
        %v1266 = vld [vmem:[#allocation2 + $0xe0] sm:$0xff]
        %v1267 = vld [vmem:[#allocation2 + $0xf8] sm:$0xfe]
        %v1268 = vld [vmem:[#allocation2 + $0x110] sm:$0xff]
        %v1269 = vld [vmem:[#allocation2 + $0x128] sm:$0xfe]
        %v1270 = vld [vmem:[#allocation2 + $0x140] sm:$0xff]
        %v1271 = vld [vmem:[#allocation2 + $0x158] sm:$0xfe]
        %v1272 = vld [vmem:[#allocation2 + $0x170] sm:$0xff]
        %v1273 = vld [vmem:[#allocation2 + $0x188] sm:$0xfe]
        %v1274 = vld [vmem:[#allocation2 + $0x1a0] sm:$0xff]
        %v1275 = vld [vmem:[#allocation2 + $0x1b8] sm:$0xfe]
        %v1276 = vld [vmem:[#allocation2 + $0x1d0] sm:$0xff]
        %vm1297 = vcmask 1046528
        %v1298 = vrot.slane %v1257, 1
        %v1299 = vrot.slane %v1258, 1
        %v1300 = vsel %vm1297, %v1298, %v1299
        %v1301 = vrot.slane %v1259, 1
        %v1302 = vrot.slane %v1260, 1
        %v1303 = vsel %vm1297, %v1301, %v1302
        %v1304 = vrot.slane %v1261, 1
        %v1305 = vrot.slane %v1262, 1
        %v1306 = vsel %vm1297, %v1304, %v1305
        %v1307 = vrot.slane %v1263, 1
        %v1308 = vrot.slane %v1264, 1
        %v1309 = vsel %vm1297, %v1307, %v1308
        %v1310 = vrot.slane %v1265, 1
        %v1311 = vrot.slane %v1266, 1
        %v1312 = vsel %vm1297, %v1310, %v1311
        %v1313 = vrot.slane %v1267, 1
        %v1314 = vrot.slane %v1268, 1
        %v1315 = vsel %vm1297, %v1313, %v1314
        %v1316 = vrot.slane %v1269, 1
        %v1317 = vrot.slane %v1270, 1
        %v1318 = vsel %vm1297, %v1316, %v1317
        %v1319 = vrot.slane %v1271, 1
        %v1320 = vrot.slane %v1272, 1
        %v1321 = vsel %vm1297, %v1319, %v1320
        %v1322 = vrot.slane %v1273, 1
        %v1323 = vrot.slane %v1274, 1
        %v1324 = vsel %vm1297, %v1322, %v1323
        %v1325 = vrot.slane %v1275, 1
        %v1326 = vrot.slane %v1276, 1
        %v1327 = vsel %vm1297, %v1325, %v1326
        %1348 = vst [vmem:[#allocation2 + $0x10] sm:$0xff] %v1300
        %1349 = vst [vmem:[#allocation2 + $0x28] sm:$0x7f] %v1299
        %1350 = vst [vmem:[#allocation2 + $0x40] sm:$0xff] %v1303
        %1351 = vst [vmem:[#allocation2 + $0x58] sm:$0x7f] %v1302
        %1352 = vst [vmem:[#allocation2 + $0x70] sm:$0xff] %v1306
        %1353 = vst [vmem:[#allocation2 + $0x88] sm:$0x7f] %v1305
        %1354 = vst [vmem:[#allocation2 + $0xa0] sm:$0xff] %v1309
        %1355 = vst [vmem:[#allocation2 + $0xb8] sm:$0x7f] %v1308
        %1356 = vst [vmem:[#allocation2 + $0xd0] sm:$0xff] %v1312
        %1357 = vst [vmem:[#allocation2 + $0xe8] sm:$0x7f] %v1311
        %1358 = vst [vmem:[#allocation2 + $0x100] sm:$0xff] %v1315
        %1359 = vst [vmem:[#allocation2 + $0x118] sm:$0x7f] %v1314
        %1360 = vst [vmem:[#allocation2 + $0x130] sm:$0xff] %v1318
        %1361 = vst [vmem:[#allocation2 + $0x148] sm:$0x7f] %v1317
        %1362 = vst [vmem:[#allocation2 + $0x160] sm:$0xff] %v1321
        %1363 = vst [vmem:[#allocation2 + $0x178] sm:$0x7f] %v1320
        %1364 = vst [vmem:[#allocation2 + $0x190] sm:$0xff] %v1324
        %1365 = vst [vmem:[#allocation2 + $0x1a8] sm:$0x7f] %v1323
        %1366 = vst [vmem:[#allocation2 + $0x1c0] sm:$0xff] %v1327
        %1367 = vst [vmem:[#allocation2 + $0x1d8] sm:$0x7f] %v1326
        %v1368 = vld [vmem:[#allocation2] sm:$0xff]
        %v1369 = vld [vmem:[#allocation2 + $0x8] sm:$0xff]
        %v1370 = vld [vmem:[#allocation2 + $0x10] sm:$0xff]
        %v1371 = vld [vmem:[#allocation2 + $0x18] sm:$0xff]
        %v1372 = vld [vmem:[#allocation2 + $0x20] sm:$0xff]
        %v1373 = vld [vmem:[#allocation2 + $0x28] sm:$0xff]
        %v1374 = vld [vmem:[#allocation2 + $0x30] sm:$0xff]
        %v1375 = vld [vmem:[#allocation2 + $0x38] sm:$0xff]
        %v1376 = vld [vmem:[#allocation2 + $0x40] sm:$0xff]
        %v1377 = vld [vmem:[#allocation2 + $0x48] sm:$0xff]
        %v1378 = vld [vmem:[#allocation2 + $0x50] sm:$0xff]
        %v1379 = vld [vmem:[#allocation2 + $0x58] sm:$0xff]
        %v1380 = vld [vmem:[#allocation2 + $0x60] sm:$0xff]
        %v1381 = vld [vmem:[#allocation2 + $0x68] sm:$0xff]
        %v1382 = vld [vmem:[#allocation2 + $0x70] sm:$0xff]
        %v1383 = vld [vmem:[#allocation2 + $0x78] sm:$0xff]
        %v1384 = vld [vmem:[#allocation2 + $0x80] sm:$0xff]
        %v1385 = vld [vmem:[#allocation2 + $0x88] sm:$0xff]
        %v1386 = vld [vmem:[#allocation2 + $0x90] sm:$0xff]
        %v1387 = vld [vmem:[#allocation2 + $0x98] sm:$0xff]
        %v1388 = vld [vmem:[#allocation2 + $0xa0] sm:$0xff]
        %v1389 = vld [vmem:[#allocation2 + $0xa8] sm:$0xff]
        %v1390 = vld [vmem:[#allocation2 + $0xb0] sm:$0xff]
        %v1391 = vld [vmem:[#allocation2 + $0xb8] sm:$0xff]
        %v1392 = vld [vmem:[#allocation2 + $0xc0] sm:$0xff]
        %v1393 = vld [vmem:[#allocation2 + $0xc8] sm:$0xff]
        %v1394 = vld [vmem:[#allocation2 + $0xd0] sm:$0xff]
        %v1395 = vld [vmem:[#allocation2 + $0xd8] sm:$0xff]
        %v1396 = vld [vmem:[#allocation2 + $0xe0] sm:$0xff]
        %v1397 = vld [vmem:[#allocation2 + $0xe8] sm:$0xff]
        %v1398 = vld [vmem:[#allocation2 + $0xf0] sm:$0xff]
        %v1399 = vld [vmem:[#allocation2 + $0xf8] sm:$0xff]
        %v1400 = vld [vmem:[#allocation2 + $0x100] sm:$0xff]
        %v1401 = vld [vmem:[#allocation2 + $0x108] sm:$0xff]
        %v1402 = vld [vmem:[#allocation2 + $0x110] sm:$0xff]
        %v1403 = vld [vmem:[#allocation2 + $0x118] sm:$0xff]
        %v1404 = vld [vmem:[#allocation2 + $0x120] sm:$0xff]
        %v1405 = vld [vmem:[#allocation2 + $0x128] sm:$0xff]
        %v1406 = vld [vmem:[#allocation2 + $0x130] sm:$0xff]
        %v1407 = vld [vmem:[#allocation2 + $0x138] sm:$0xff]
        %v1408 = vld [vmem:[#allocation2 + $0x140] sm:$0xff]
        %v1409 = vld [vmem:[#allocation2 + $0x148] sm:$0xff]
        %v1410 = vld [vmem:[#allocation2 + $0x150] sm:$0xff]
        %v1411 = vld [vmem:[#allocation2 + $0x158] sm:$0xff]
        %v1412 = vld [vmem:[#allocation2 + $0x160] sm:$0xff]
        %v1413 = vld [vmem:[#allocation2 + $0x168] sm:$0xff]
        %v1414 = vld [vmem:[#allocation2 + $0x170] sm:$0xff]
        %v1415 = vld [vmem:[#allocation2 + $0x178] sm:$0xff]
        %v1416 = vld [vmem:[#allocation10] sm:$0xff]
        %v1417 = vld [vmem:[#allocation10 + $0x8] sm:$0xff]
        %v1418 = vld [vmem:[#allocation10 + $0x10] sm:$0xff]
        %v1419 = vld [vmem:[#allocation10 + $0x18] sm:$0xff]
        %v1420 = vld [vmem:[#allocation10 + $0x20] sm:$0xff]
        %v1421 = vld [vmem:[#allocation10 + $0x28] sm:$0xff]
        %v1422 = vld [vmem:[#allocation10 + $0x30] sm:$0xff]
        %v1423 = vld [vmem:[#allocation10 + $0x38] sm:$0xff]
        %v1424 = vld [vmem:[#allocation10 + $0x40] sm:$0xff]
        %v1425 = vld [vmem:[#allocation10 + $0x48] sm:$0xff]
        %v1426 = vld [vmem:[#allocation10 + $0x50] sm:$0xff]
        %v1427 = vld [vmem:[#allocation10 + $0x58] sm:$0xff]
        %v1428 = vld [vmem:[#allocation10 + $0x60] sm:$0xff]
        %v1429 = vld [vmem:[#allocation10 + $0x68] sm:$0xff]
        %v1430 = vld [vmem:[#allocation10 + $0x70] sm:$0xff]
        %v1431 = vld [vmem:[#allocation10 + $0x78] sm:$0xff]
        %v1432 = vld [vmem:[#allocation10 + $0x80] sm:$0xff]
        %v1433 = vld [vmem:[#allocation10 + $0x88] sm:$0xff]
        %v1434 = vld [vmem:[#allocation10 + $0x90] sm:$0xff]
        %v1435 = vld [vmem:[#allocation10 + $0x98] sm:$0xff]
        %v1436 = vld [vmem:[#allocation10 + $0xa0] sm:$0xff]
        %v1437 = vld [vmem:[#allocation10 + $0xa8] sm:$0xff]
        %v1438 = vld [vmem:[#allocation10 + $0xb0] sm:$0xff]
        %v1439 = vld [vmem:[#allocation10 + $0xb8] sm:$0xff]
        %v1440 = vld [vmem:[#allocation10 + $0xc0] sm:$0xff]
        %v1441 = vld [vmem:[#allocation10 + $0xc8] sm:$0xff]
        %v1442 = vld [vmem:[#allocation10 + $0xd0] sm:$0xff]
        %v1443 = vld [vmem:[#allocation10 + $0xd8] sm:$0xff]
        %v1444 = vld [vmem:[#allocation10 + $0xe0] sm:$0xff]
        %v1445 = vld [vmem:[#allocation10 + $0xe8] sm:$0xff]
        %v1446 = vld [vmem:[#allocation10 + $0xf0] sm:$0xff]
        %v1447 = vld [vmem:[#allocation10 + $0xf8] sm:$0xff]
        %v1448 = vld [vmem:[#allocation10 + $0x100] sm:$0xff]
        %v1449 = vld [vmem:[#allocation10 + $0x108] sm:$0xff]
        %v1450 = vld [vmem:[#allocation10 + $0x110] sm:$0xff]
        %v1451 = vld [vmem:[#allocation10 + $0x118] sm:$0xff]
        %v1452 = vld [vmem:[#allocation10 + $0x120] sm:$0xff]
        %v1453 = vld [vmem:[#allocation10 + $0x128] sm:$0xff]
        %v1454 = vld [vmem:[#allocation10 + $0x130] sm:$0xff]
        %v1455 = vld [vmem:[#allocation10 + $0x138] sm:$0xff]
        %v1456 = vld [vmem:[#allocation10 + $0x140] sm:$0xff]
        %v1457 = vld [vmem:[#allocation10 + $0x148] sm:$0xff]
        %v1458 = vld [vmem:[#allocation10 + $0x150] sm:$0xff]
        %v1459 = vld [vmem:[#allocation10 + $0x158] sm:$0xff]
        %v1460 = vld [vmem:[#allocation10 + $0x160] sm:$0xff]
        %v1461 = vld [vmem:[#allocation10 + $0x168] sm:$0xff]
        %v1462 = vld [vmem:[#allocation10 + $0x170] sm:$0xff]
        %v1463 = vld [vmem:[#allocation10 + $0x178] sm:$0xff]
        %v1464 = vld [vmem:[%s924] sm:$0xff]
        %v1465 = vld [vmem:[%s924 + $0x8] sm:$0xff]
        %v1466 = vld [vmem:[%s924 + $0x10] sm:$0xff]
        %v1467 = vld [vmem:[%s924 + $0x18] sm:$0xff]
        %v1468 = vld [vmem:[%s924 + $0x20] sm:$0xff]
        %v1469 = vld [vmem:[%s924 + $0x28] sm:$0xff]
        %v1470 = vld [vmem:[%s924 + $0x30] sm:$0xff]
        %v1471 = vld [vmem:[%s924 + $0x38] sm:$0xff]
        %v1472 = vld [vmem:[%s924 + $0x40] sm:$0xff]
        %v1473 = vld [vmem:[%s924 + $0x48] sm:$0xff]
        %v1474 = vld [vmem:[%s924 + $0x50] sm:$0xff]
        %v1475 = vld [vmem:[%s924 + $0x58] sm:$0xff]
        %v1476 = vld [vmem:[%s924 + $0x60] sm:$0xff]
        %v1477 = vld [vmem:[%s924 + $0x68] sm:$0xff]
        %v1478 = vld [vmem:[%s924 + $0x70] sm:$0xff]
        %v1479 = vld [vmem:[%s924 + $0x78] sm:$0xff]
        %v1480 = vld [vmem:[%s924 + $0x80] sm:$0xff]
        %v1481 = vld [vmem:[%s924 + $0x88] sm:$0xff]
        %v1482 = vld [vmem:[%s924 + $0x90] sm:$0xff]
        %v1483 = vld [vmem:[%s924 + $0x98] sm:$0xff]
        %v1484 = vld [vmem:[%s924 + $0xa0] sm:$0xff]
        %v1485 = vld [vmem:[%s924 + $0xa8] sm:$0xff]
        %v1486 = vld [vmem:[%s924 + $0xb0] sm:$0xff]
        %v1487 = vld [vmem:[%s924 + $0xb8] sm:$0xff]
        %v1488 = vld [vmem:[%s924 + $0xc0] sm:$0xff]
        %v1489 = vld [vmem:[%s924 + $0xc8] sm:$0xff]
        %v1490 = vld [vmem:[%s924 + $0xd0] sm:$0xff]
        %v1491 = vld [vmem:[%s924 + $0xd8] sm:$0xff]
        %v1492 = vld [vmem:[%s924 + $0xe0] sm:$0xff]
        %v1493 = vld [vmem:[%s924 + $0xe8] sm:$0xff]
        %v1494 = vld [vmem:[%s924 + $0xf0] sm:$0xff]
        %v1495 = vld [vmem:[%s924 + $0xf8] sm:$0xff]
        %v1496 = vld [vmem:[%s924 + $0x100] sm:$0xff]
        %v1497 = vld [vmem:[%s924 + $0x108] sm:$0xff]
        %v1498 = vld [vmem:[%s924 + $0x110] sm:$0xff]
        %v1499 = vld [vmem:[%s924 + $0x118] sm:$0xff]
        %v1500 = vld [vmem:[%s924 + $0x120] sm:$0xff]
        %v1501 = vld [vmem:[%s924 + $0x128] sm:$0xff]
        %v1502 = vld [vmem:[%s924 + $0x130] sm:$0xff]
        %v1503 = vld [vmem:[%s924 + $0x138] sm:$0xff]
        %v1504 = vld [vmem:[%s924 + $0x140] sm:$0xff]
        %v1505 = vld [vmem:[%s924 + $0x148] sm:$0xff]
        %v1506 = vld [vmem:[%s924 + $0x150] sm:$0xff]
        %v1507 = vld [vmem:[%s924 + $0x158] sm:$0xff]
        %v1508 = vld [vmem:[%s924 + $0x160] sm:$0xff]
        %v1509 = vld [vmem:[%s924 + $0x168] sm:$0xff]
        %v1510 = vld [vmem:[%s924 + $0x170] sm:$0xff]
        %v1511 = vld [vmem:[%s924 + $0x178] sm:$0xff]
        %s1512 = scalar_lea.vmem [#allocation10], 384
        %v1513 = vld [vmem:[%s1512] sm:$0xff]
        %v1514 = vld [vmem:[%s1512 + $0x8] sm:$0xff]
        %v1515 = vld [vmem:[%s1512 + $0x10] sm:$0xff]
        %v1516 = vld [vmem:[%s1512 + $0x18] sm:$0xff]
        %v1517 = vld [vmem:[%s1512 + $0x20] sm:$0xff]
        %v1518 = vld [vmem:[%s1512 + $0x28] sm:$0xff]
        %v1519 = vld [vmem:[%s1512 + $0x30] sm:$0xff]
        %v1520 = vld [vmem:[%s1512 + $0x38] sm:$0xff]
        %v1521 = vld [vmem:[%s1512 + $0x40] sm:$0xff]
        %v1522 = vld [vmem:[%s1512 + $0x48] sm:$0xff]
        %v1523 = vld [vmem:[%s1512 + $0x50] sm:$0xff]
        %v1524 = vld [vmem:[%s1512 + $0x58] sm:$0xff]
        %v1525 = vld [vmem:[%s1512 + $0x60] sm:$0xff]
        %v1526 = vld [vmem:[%s1512 + $0x68] sm:$0xff]
        %v1527 = vld [vmem:[%s1512 + $0x70] sm:$0xff]
        %v1528 = vld [vmem:[%s1512 + $0x78] sm:$0xff]
        %v1529 = vld [vmem:[%s1512 + $0x80] sm:$0xff]
        %v1530 = vld [vmem:[%s1512 + $0x88] sm:$0xff]
        %v1531 = vld [vmem:[%s1512 + $0x90] sm:$0xff]
        %v1532 = vld [vmem:[%s1512 + $0x98] sm:$0xff]
        %v1533 = vld [vmem:[%s1512 + $0xa0] sm:$0xff]
        %v1534 = vld [vmem:[%s1512 + $0xa8] sm:$0xff]
        %v1535 = vld [vmem:[%s1512 + $0xb0] sm:$0xff]
        %v1536 = vld [vmem:[%s1512 + $0xb8] sm:$0xff]
        %v1537 = vld [vmem:[%s1512 + $0xc0] sm:$0xff]
        %v1538 = vld [vmem:[%s1512 + $0xc8] sm:$0xff]
        %v1539 = vld [vmem:[%s1512 + $0xd0] sm:$0xff]
        %v1540 = vld [vmem:[%s1512 + $0xd8] sm:$0xff]
        %v1541 = vld [vmem:[%s1512 + $0xe0] sm:$0xff]
        %v1542 = vld [vmem:[%s1512 + $0xe8] sm:$0xff]
        %v1543 = vld [vmem:[%s1512 + $0xf0] sm:$0xff]
        %v1544 = vld [vmem:[%s1512 + $0xf8] sm:$0xff]
        %v1545 = vld [vmem:[%s1512 + $0x100] sm:$0xff]
        %v1546 = vld [vmem:[%s1512 + $0x108] sm:$0xff]
        %v1547 = vld [vmem:[%s1512 + $0x110] sm:$0xff]
        %v1548 = vld [vmem:[%s1512 + $0x118] sm:$0xff]
        %v1549 = vld [vmem:[%s1512 + $0x120] sm:$0xff]
        %v1550 = vld [vmem:[%s1512 + $0x128] sm:$0xff]
        %v1551 = vld [vmem:[%s1512 + $0x130] sm:$0xff]
        %v1552 = vld [vmem:[%s1512 + $0x138] sm:$0xff]
        %v1553 = vld [vmem:[%s1512 + $0x140] sm:$0xff]
        %v1554 = vld [vmem:[%s1512 + $0x148] sm:$0xff]
        %v1555 = vld [vmem:[%s1512 + $0x150] sm:$0xff]
        %v1556 = vld [vmem:[%s1512 + $0x158] sm:$0xff]
        %v1557 = vld [vmem:[%s1512 + $0x160] sm:$0xff]
        %v1558 = vld [vmem:[%s1512 + $0x168] sm:$0xff]
        %v1559 = vld [vmem:[%s1512 + $0x170] sm:$0xff]
        %v1560 = vld [vmem:[%s1512 + $0x178] sm:$0xff]
        %1561 = vmatpush.msra.mxu0 %v1528
        %1562 = vmatpush.msra.mxu0 %v1527
        %1563 = vmatpush.msra.mxu0 %v1526
        %1564 = vmatpush.msra.mxu0 %v1525
        %1565 = vmatpush.msra.mxu0 %v1524
        %1566 = vmatpush.msra.mxu0 %v1523
        %1567 = vmatpush.msra.mxu0 %v1522
        %1568 = vmatpush.msra.mxu0 %v1521
        %1569 = vmatpush.msra.mxu0 %v1520
        %1570 = vmatpush.msra.mxu0 %v1519
        %1571 = vmatpush.msra.mxu0 %v1518
        %1572 = vmatpush.msra.mxu0 %v1517
        %1573 = vmatpush.msra.mxu0 %v1516
        %1574 = vmatpush.msra.mxu0 %v1515
        %1575 = vmatpush.msra.mxu0 %v1514
        %1576 = vmatpush.msra.mxu0 %v1513
        %1577 = vmatmul.f32.gmra.mxu0 %v1464
        %v1578 = vpop.f32.mrf.mxu0
        %v1579 = vadd.f32 0.0, %v1578
        %1580 = vmatmul.f32.gmra.mxu0 %v1467
        %v1581 = vpop.f32.mrf.mxu0
        %v1582 = vadd.f32 0.0, %v1581
        %1583 = vmatmul.f32.gmra.mxu0 %v1470
        %v1584 = vpop.f32.mrf.mxu0
        %v1585 = vadd.f32 0.0, %v1584
        %1586 = vmatmul.f32.gmra.mxu0 %v1473
        %v1587 = vpop.f32.mrf.mxu0
        %v1588 = vadd.f32 0.0, %v1587
        %1589 = vmatmul.f32.gmra.mxu0 %v1476
        %v1590 = vpop.f32.mrf.mxu0
        %v1591 = vadd.f32 0.0, %v1590
        %1592 = vmatmul.f32.gmra.mxu0 %v1479
        %v1593 = vpop.f32.mrf.mxu0
        %v1594 = vadd.f32 0.0, %v1593
        %1595 = vmatmul.f32.gmra.mxu0 %v1482
        %v1596 = vpop.f32.mrf.mxu0
        %v1597 = vadd.f32 0.0, %v1596
        %1598 = vmatmul.f32.gmra.mxu0 %v1485
        %v1599 = vpop.f32.mrf.mxu0
        %v1600 = vadd.f32 0.0, %v1599
        %1601 = vmatmul.f32.gmra.mxu0 %v1488
        %v1602 = vpop.f32.mrf.mxu0
        %v1603 = vadd.f32 0.0, %v1602
        %1604 = vmatmul.f32.gmra.mxu0 %v1491
        %v1605 = vpop.f32.mrf.mxu0
        %v1606 = vadd.f32 0.0, %v1605
        %1607 = vmatmul.f32.gmra.mxu0 %v1494
        %v1608 = vpop.f32.mrf.mxu0
        %v1609 = vadd.f32 0.0, %v1608
        %1610 = vmatmul.f32.gmra.mxu0 %v1497
        %v1611 = vpop.f32.mrf.mxu0
        %v1612 = vadd.f32 0.0, %v1611
        %1613 = vmatmul.f32.gmra.mxu0 %v1500
        %v1614 = vpop.f32.mrf.mxu0
        %v1615 = vadd.f32 0.0, %v1614
        %1616 = vmatmul.f32.gmra.mxu0 %v1503
        %v1617 = vpop.f32.mrf.mxu0
        %v1618 = vadd.f32 0.0, %v1617
        %1619 = vmatmul.f32.gmra.mxu0 %v1506
        %v1620 = vpop.f32.mrf.mxu0
        %v1621 = vadd.f32 0.0, %v1620
        %1622 = vmatmul.f32.gmra.mxu0 %v1509
        %v1623 = vpop.f32.mrf.mxu0
        %v1624 = vadd.f32 0.0, %v1623
        %1625 = vdwg.mxu0
        %1626 = vmatpush.msra.mxu0 %v1544
        %1627 = vmatpush.msra.mxu0 %v1543
        %1628 = vmatpush.msra.mxu0 %v1542
        %1629 = vmatpush.msra.mxu0 %v1541
        %1630 = vmatpush.msra.mxu0 %v1540
        %1631 = vmatpush.msra.mxu0 %v1539
        %1632 = vmatpush.msra.mxu0 %v1538
        %1633 = vmatpush.msra.mxu0 %v1537
        %1634 = vmatpush.msra.mxu0 %v1536
        %1635 = vmatpush.msra.mxu0 %v1535
        %1636 = vmatpush.msra.mxu0 %v1534
        %1637 = vmatpush.msra.mxu0 %v1533
        %1638 = vmatpush.msra.mxu0 %v1532
        %1639 = vmatpush.msra.mxu0 %v1531
        %1640 = vmatpush.msra.mxu0 %v1530
        %1641 = vmatpush.msra.mxu0 %v1529
        %1642 = vmatmul.f32.gmra.mxu0 %v1465
        %v1643 = vpop.f32.mrf.mxu0
        %v1644 = vadd.f32 %v1579, %v1643
        %1645 = vmatmul.f32.gmra.mxu0 %v1468
        %v1646 = vpop.f32.mrf.mxu0
        %v1647 = vadd.f32 %v1582, %v1646
        %1648 = vmatmul.f32.gmra.mxu0 %v1471
        %v1649 = vpop.f32.mrf.mxu0
        %v1650 = vadd.f32 %v1585, %v1649
        %1651 = vmatmul.f32.gmra.mxu0 %v1474
        %v1652 = vpop.f32.mrf.mxu0
        %v1653 = vadd.f32 %v1588, %v1652
        %1654 = vmatmul.f32.gmra.mxu0 %v1477
        %v1655 = vpop.f32.mrf.mxu0
        %v1656 = vadd.f32 %v1591, %v1655
        %1657 = vmatmul.f32.gmra.mxu0 %v1480
        %v1658 = vpop.f32.mrf.mxu0
        %v1659 = vadd.f32 %v1594, %v1658
        %1660 = vmatmul.f32.gmra.mxu0 %v1483
        %v1661 = vpop.f32.mrf.mxu0
        %v1662 = vadd.f32 %v1597, %v1661
        %1663 = vmatmul.f32.gmra.mxu0 %v1486
        %v1664 = vpop.f32.mrf.mxu0
        %v1665 = vadd.f32 %v1600, %v1664
        %1666 = vmatmul.f32.gmra.mxu0 %v1489
        %v1667 = vpop.f32.mrf.mxu0
        %v1668 = vadd.f32 %v1603, %v1667
        %1669 = vmatmul.f32.gmra.mxu0 %v1492
        %v1670 = vpop.f32.mrf.mxu0
        %v1671 = vadd.f32 %v1606, %v1670
        %1672 = vmatmul.f32.gmra.mxu0 %v1495
        %v1673 = vpop.f32.mrf.mxu0
        %v1674 = vadd.f32 %v1609, %v1673
        %1675 = vmatmul.f32.gmra.mxu0 %v1498
        %v1676 = vpop.f32.mrf.mxu0
        %v1677 = vadd.f32 %v1612, %v1676
        %1678 = vmatmul.f32.gmra.mxu0 %v1501
        %v1679 = vpop.f32.mrf.mxu0
        %v1680 = vadd.f32 %v1615, %v1679
        %1681 = vmatmul.f32.gmra.mxu0 %v1504
        %v1682 = vpop.f32.mrf.mxu0
        %v1683 = vadd.f32 %v1618, %v1682
        %1684 = vmatmul.f32.gmra.mxu0 %v1507
        %v1685 = vpop.f32.mrf.mxu0
        %v1686 = vadd.f32 %v1621, %v1685
        %1687 = vmatmul.f32.gmra.mxu0 %v1510
        %v1688 = vpop.f32.mrf.mxu0
        %v1689 = vadd.f32 %v1624, %v1688
        %1690 = vdwg.mxu0
        %1691 = vmatpush.msra.mxu0 %v1560
        %1692 = vmatpush.msra.mxu0 %v1559
        %1693 = vmatpush.msra.mxu0 %v1558
        %1694 = vmatpush.msra.mxu0 %v1557
        %1695 = vmatpush.msra.mxu0 %v1556
        %1696 = vmatpush.msra.mxu0 %v1555
        %1697 = vmatpush.msra.mxu0 %v1554
        %1698 = vmatpush.msra.mxu0 %v1553
        %1699 = vmatpush.msra.mxu0 %v1552
        %1700 = vmatpush.msra.mxu0 %v1551
        %1701 = vmatpush.msra.mxu0 %v1550
        %1702 = vmatpush.msra.mxu0 %v1549
        %1703 = vmatpush.msra.mxu0 %v1548
        %1704 = vmatpush.msra.mxu0 %v1547
        %1705 = vmatpush.msra.mxu0 %v1546
        %1706 = vmatpush.msra.mxu0 %v1545
        %1707 = vmatmul.f32.gmra.mxu0 %v1466
        %v1708 = vpop.f32.mrf.mxu0
        %v1709 = vadd.f32 %v1644, %v1708
        %1710 = vmatmul.f32.gmra.mxu0 %v1469
        %v1711 = vpop.f32.mrf.mxu0
        %v1712 = vadd.f32 %v1647, %v1711
        %1713 = vmatmul.f32.gmra.mxu0 %v1472
        %v1714 = vpop.f32.mrf.mxu0
        %v1715 = vadd.f32 %v1650, %v1714
        %1716 = vmatmul.f32.gmra.mxu0 %v1475
        %v1717 = vpop.f32.mrf.mxu0
        %v1718 = vadd.f32 %v1653, %v1717
        %1719 = vmatmul.f32.gmra.mxu0 %v1478
        %v1720 = vpop.f32.mrf.mxu0
        %v1721 = vadd.f32 %v1656, %v1720
        %1722 = vmatmul.f32.gmra.mxu0 %v1481
        %v1723 = vpop.f32.mrf.mxu0
        %v1724 = vadd.f32 %v1659, %v1723
        %1725 = vmatmul.f32.gmra.mxu0 %v1484
        %v1726 = vpop.f32.mrf.mxu0
        %v1727 = vadd.f32 %v1662, %v1726
        %1728 = vmatmul.f32.gmra.mxu0 %v1487
        %v1729 = vpop.f32.mrf.mxu0
        %v1730 = vadd.f32 %v1665, %v1729
        %1731 = vmatmul.f32.gmra.mxu0 %v1490
        %v1732 = vpop.f32.mrf.mxu0
        %v1733 = vadd.f32 %v1668, %v1732
        %1734 = vmatmul.f32.gmra.mxu0 %v1493
        %v1735 = vpop.f32.mrf.mxu0
        %v1736 = vadd.f32 %v1671, %v1735
        %1737 = vmatmul.f32.gmra.mxu0 %v1496
        %v1738 = vpop.f32.mrf.mxu0
        %v1739 = vadd.f32 %v1674, %v1738
        %1740 = vmatmul.f32.gmra.mxu0 %v1499
        %v1741 = vpop.f32.mrf.mxu0
        %v1742 = vadd.f32 %v1677, %v1741
        %1743 = vmatmul.f32.gmra.mxu0 %v1502
        %v1744 = vpop.f32.mrf.mxu0
        %v1745 = vadd.f32 %v1680, %v1744
        %1746 = vmatmul.f32.gmra.mxu0 %v1505
        %v1747 = vpop.f32.mrf.mxu0
        %v1748 = vadd.f32 %v1683, %v1747
        %1749 = vmatmul.f32.gmra.mxu0 %v1508
        %v1750 = vpop.f32.mrf.mxu0
        %v1751 = vadd.f32 %v1686, %v1750
        %1752 = vmatmul.f32.gmra.mxu0 %v1511
        %v1753 = vpop.f32.mrf.mxu0
        %v1754 = vadd.f32 %v1689, %v1753
        %1755 = vdwg.mxu0
        %1756 = vmatpush.msra.mxu0 %v1431
        %1757 = vmatpush.msra.mxu0 %v1430
        %1758 = vmatpush.msra.mxu0 %v1429
        %1759 = vmatpush.msra.mxu0 %v1428
        %1760 = vmatpush.msra.mxu0 %v1427
        %1761 = vmatpush.msra.mxu0 %v1426
        %1762 = vmatpush.msra.mxu0 %v1425
        %1763 = vmatpush.msra.mxu0 %v1424
        %1764 = vmatpush.msra.mxu0 %v1423
        %1765 = vmatpush.msra.mxu0 %v1422
        %1766 = vmatpush.msra.mxu0 %v1421
        %1767 = vmatpush.msra.mxu0 %v1420
        %1768 = vmatpush.msra.mxu0 %v1419
        %1769 = vmatpush.msra.mxu0 %v1418
        %1770 = vmatpush.msra.mxu0 %v1417
        %1771 = vmatpush.msra.mxu0 %v1416
        %1772 = vmatmul.f32.gmra.mxu0 %v1368
        %v1773 = vpop.f32.mrf.mxu0
        %v1774 = vadd.f32 %v1709, %v1773
        %1775 = vmatmul.f32.gmra.mxu0 %v1371
        %v1776 = vpop.f32.mrf.mxu0
        %v1777 = vadd.f32 %v1712, %v1776
        %1778 = vmatmul.f32.gmra.mxu0 %v1374
        %v1779 = vpop.f32.mrf.mxu0
        %v1780 = vadd.f32 %v1715, %v1779
        %1781 = vmatmul.f32.gmra.mxu0 %v1377
        %v1782 = vpop.f32.mrf.mxu0
        %v1783 = vadd.f32 %v1718, %v1782
        %1784 = vmatmul.f32.gmra.mxu0 %v1380
        %v1785 = vpop.f32.mrf.mxu0
        %v1786 = vadd.f32 %v1721, %v1785
        %1787 = vmatmul.f32.gmra.mxu0 %v1383
        %v1788 = vpop.f32.mrf.mxu0
        %v1789 = vadd.f32 %v1724, %v1788
        %1790 = vmatmul.f32.gmra.mxu0 %v1386
        %v1791 = vpop.f32.mrf.mxu0
        %v1792 = vadd.f32 %v1727, %v1791
        %1793 = vmatmul.f32.gmra.mxu0 %v1389
        %v1794 = vpop.f32.mrf.mxu0
        %v1795 = vadd.f32 %v1730, %v1794
        %1796 = vmatmul.f32.gmra.mxu0 %v1392
        %v1797 = vpop.f32.mrf.mxu0
        %v1798 = vadd.f32 %v1733, %v1797
        %1799 = vmatmul.f32.gmra.mxu0 %v1395
        %v1800 = vpop.f32.mrf.mxu0
        %v1801 = vadd.f32 %v1736, %v1800
        %1802 = vmatmul.f32.gmra.mxu0 %v1398
        %v1803 = vpop.f32.mrf.mxu0
        %v1804 = vadd.f32 %v1739, %v1803
        %1805 = vmatmul.f32.gmra.mxu0 %v1401
        %v1806 = vpop.f32.mrf.mxu0
        %v1807 = vadd.f32 %v1742, %v1806
        %1808 = vmatmul.f32.gmra.mxu0 %v1404
        %v1809 = vpop.f32.mrf.mxu0
        %v1810 = vadd.f32 %v1745, %v1809
        %1811 = vmatmul.f32.gmra.mxu0 %v1407
        %v1812 = vpop.f32.mrf.mxu0
        %v1813 = vadd.f32 %v1748, %v1812
        %1814 = vmatmul.f32.gmra.mxu0 %v1410
        %v1815 = vpop.f32.mrf.mxu0
        %v1816 = vadd.f32 %v1751, %v1815
        %1817 = vmatmul.f32.gmra.mxu0 %v1413
        %v1818 = vpop.f32.mrf.mxu0
        %v1819 = vadd.f32 %v1754, %v1818
        %1820 = vdwg.mxu0
        %1821 = vmatpush.msra.mxu0 %v1447
        %1822 = vmatpush.msra.mxu0 %v1446
        %1823 = vmatpush.msra.mxu0 %v1445
        %1824 = vmatpush.msra.mxu0 %v1444
        %1825 = vmatpush.msra.mxu0 %v1443
        %1826 = vmatpush.msra.mxu0 %v1442
        %1827 = vmatpush.msra.mxu0 %v1441
        %1828 = vmatpush.msra.mxu0 %v1440
        %1829 = vmatpush.msra.mxu0 %v1439
        %1830 = vmatpush.msra.mxu0 %v1438
        %1831 = vmatpush.msra.mxu0 %v1437
        %1832 = vmatpush.msra.mxu0 %v1436
        %1833 = vmatpush.msra.mxu0 %v1435
        %1834 = vmatpush.msra.mxu0 %v1434
        %1835 = vmatpush.msra.mxu0 %v1433
        %1836 = vmatpush.msra.mxu0 %v1432
        %1837 = vmatmul.f32.gmra.mxu0 %v1369
        %v1838 = vpop.f32.mrf.mxu0
        %v1839 = vadd.f32 %v1774, %v1838
        %1840 = vmatmul.f32.gmra.mxu0 %v1372
        %v1841 = vpop.f32.mrf.mxu0
        %v1842 = vadd.f32 %v1777, %v1841
        %1843 = vmatmul.f32.gmra.mxu0 %v1375
        %v1844 = vpop.f32.mrf.mxu0
        %v1845 = vadd.f32 %v1780, %v1844
        %1846 = vmatmul.f32.gmra.mxu0 %v1378
        %v1847 = vpop.f32.mrf.mxu0
        %v1848 = vadd.f32 %v1783, %v1847
        %1849 = vmatmul.f32.gmra.mxu0 %v1381
        %v1850 = vpop.f32.mrf.mxu0
        %v1851 = vadd.f32 %v1786, %v1850
        %1852 = vmatmul.f32.gmra.mxu0 %v1384
        %v1853 = vpop.f32.mrf.mxu0
        %v1854 = vadd.f32 %v1789, %v1853
        %1855 = vmatmul.f32.gmra.mxu0 %v1387
        %v1856 = vpop.f32.mrf.mxu0
        %v1857 = vadd.f32 %v1792, %v1856
        %1858 = vmatmul.f32.gmra.mxu0 %v1390
        %v1859 = vpop.f32.mrf.mxu0
        %v1860 = vadd.f32 %v1795, %v1859
        %1861 = vmatmul.f32.gmra.mxu0 %v1393
        %v1862 = vpop.f32.mrf.mxu0
        %v1863 = vadd.f32 %v1798, %v1862
        %1864 = vmatmul.f32.gmra.mxu0 %v1396
        %v1865 = vpop.f32.mrf.mxu0
        %v1866 = vadd.f32 %v1801, %v1865
        %1867 = vmatmul.f32.gmra.mxu0 %v1399
        %v1868 = vpop.f32.mrf.mxu0
        %v1869 = vadd.f32 %v1804, %v1868
        %1870 = vmatmul.f32.gmra.mxu0 %v1402
        %v1871 = vpop.f32.mrf.mxu0
        %v1872 = vadd.f32 %v1807, %v1871
        %1873 = vmatmul.f32.gmra.mxu0 %v1405
        %v1874 = vpop.f32.mrf.mxu0
        %v1875 = vadd.f32 %v1810, %v1874
        %1876 = vmatmul.f32.gmra.mxu0 %v1408
        %v1877 = vpop.f32.mrf.mxu0
        %v1878 = vadd.f32 %v1813, %v1877
        %1879 = vmatmul.f32.gmra.mxu0 %v1411
        %v1880 = vpop.f32.mrf.mxu0
        %v1881 = vadd.f32 %v1816, %v1880
        %1882 = vmatmul.f32.gmra.mxu0 %v1414
        %v1883 = vpop.f32.mrf.mxu0
        %v1884 = vadd.f32 %v1819, %v1883
        %1885 = vdwg.mxu0
        %1886 = vmatpush.msra.mxu0 %v1463
        %1887 = vmatpush.msra.mxu0 %v1462
        %1888 = vmatpush.msra.mxu0 %v1461
        %1889 = vmatpush.msra.mxu0 %v1460
        %1890 = vmatpush.msra.mxu0 %v1459
        %1891 = vmatpush.msra.mxu0 %v1458
        %1892 = vmatpush.msra.mxu0 %v1457
        %1893 = vmatpush.msra.mxu0 %v1456
        %1894 = vmatpush.msra.mxu0 %v1455
        %1895 = vmatpush.msra.mxu0 %v1454
        %1896 = vmatpush.msra.mxu0 %v1453
        %1897 = vmatpush.msra.mxu0 %v1452
        %1898 = vmatpush.msra.mxu0 %v1451
        %1899 = vmatpush.msra.mxu0 %v1450
        %1900 = vmatpush.msra.mxu0 %v1449
        %1901 = vmatpush.msra.mxu0 %v1448
        %1902 = vmatmul.f32.gmra.mxu0 %v1370
        %v1903 = vpop.f32.mrf.mxu0
        %v1904 = vadd.f32 %v1839, %v1903
        %1905 = vmatmul.f32.gmra.mxu0 %v1373
        %v1906 = vpop.f32.mrf.mxu0
        %v1907 = vadd.f32 %v1842, %v1906
        %1908 = vmatmul.f32.gmra.mxu0 %v1376
        %v1909 = vpop.f32.mrf.mxu0
        %v1910 = vadd.f32 %v1845, %v1909
        %1911 = vmatmul.f32.gmra.mxu0 %v1379
        %v1912 = vpop.f32.mrf.mxu0
        %v1913 = vadd.f32 %v1848, %v1912
        %1914 = vmatmul.f32.gmra.mxu0 %v1382
        %v1915 = vpop.f32.mrf.mxu0
        %v1916 = vadd.f32 %v1851, %v1915
        %1917 = vmatmul.f32.gmra.mxu0 %v1385
        %v1918 = vpop.f32.mrf.mxu0
        %v1919 = vadd.f32 %v1854, %v1918
        %1920 = vmatmul.f32.gmra.mxu0 %v1388
        %v1921 = vpop.f32.mrf.mxu0
        %v1922 = vadd.f32 %v1857, %v1921
        %1923 = vmatmul.f32.gmra.mxu0 %v1391
        %v1924 = vpop.f32.mrf.mxu0
        %v1925 = vadd.f32 %v1860, %v1924
        %1926 = vmatmul.f32.gmra.mxu0 %v1394
        %v1927 = vpop.f32.mrf.mxu0
        %v1928 = vadd.f32 %v1863, %v1927
        %1929 = vmatmul.f32.gmra.mxu0 %v1397
        %v1930 = vpop.f32.mrf.mxu0
        %v1931 = vadd.f32 %v1866, %v1930
        %1932 = vmatmul.f32.gmra.mxu0 %v1400
        %v1933 = vpop.f32.mrf.mxu0
        %v1934 = vadd.f32 %v1869, %v1933
        %1935 = vmatmul.f32.gmra.mxu0 %v1403
        %v1936 = vpop.f32.mrf.mxu0
        %v1937 = vadd.f32 %v1872, %v1936
        %1938 = vmatmul.f32.gmra.mxu0 %v1406
        %v1939 = vpop.f32.mrf.mxu0
        %v1940 = vadd.f32 %v1875, %v1939
        %1941 = vmatmul.f32.gmra.mxu0 %v1409
        %v1942 = vpop.f32.mrf.mxu0
        %v1943 = vadd.f32 %v1878, %v1942
        %1944 = vmatmul.f32.gmra.mxu0 %v1412
        %v1945 = vpop.f32.mrf.mxu0
        %v1946 = vadd.f32 %v1881, %v1945
        %1947 = vmatmul.f32.gmra.mxu0 %v1415
        %v1948 = vpop.f32.mrf.mxu0
        %v1949 = vadd.f32 %v1884, %v1948
        %1950 = vdwg.mxu0
        %s1951 = scalar_lea.vmem [#allocation2], 96
        %v1952 = vld [vmem:[%s1951] sm:$0xff]
        %v1953 = vld [vmem:[%s1951 + $0x8] sm:$0xff]
        %v1954 = vld [vmem:[%s1951 + $0x10] sm:$0xff]
        %v1955 = vld [vmem:[%s1951 + $0x18] sm:$0xff]
        %v1956 = vld [vmem:[%s1951 + $0x20] sm:$0xff]
        %v1957 = vld [vmem:[%s1951 + $0x28] sm:$0xff]
        %v1958 = vld [vmem:[%s1951 + $0x30] sm:$0xff]
        %v1959 = vld [vmem:[%s1951 + $0x38] sm:$0xff]
        %v1960 = vld [vmem:[%s1951 + $0x40] sm:$0xff]
        %v1961 = vld [vmem:[%s1951 + $0x48] sm:$0xff]
        %v1962 = vld [vmem:[%s1951 + $0x50] sm:$0xff]
        %v1963 = vld [vmem:[%s1951 + $0x58] sm:$0xff]
        %v1964 = vld [vmem:[%s1951 + $0x60] sm:$0xff]
        %v1965 = vld [vmem:[%s1951 + $0x68] sm:$0xff]
        %v1966 = vld [vmem:[%s1951 + $0x70] sm:$0xff]
        %v1967 = vld [vmem:[%s1951 + $0x78] sm:$0xff]
        %v1968 = vld [vmem:[%s1951 + $0x80] sm:$0xff]
        %v1969 = vld [vmem:[%s1951 + $0x88] sm:$0xff]
        %v1970 = vld [vmem:[%s1951 + $0x90] sm:$0xff]
        %v1971 = vld [vmem:[%s1951 + $0x98] sm:$0xff]
        %v1972 = vld [vmem:[%s1951 + $0xa0] sm:$0xff]
        %v1973 = vld [vmem:[%s1951 + $0xa8] sm:$0xff]
        %v1974 = vld [vmem:[%s1951 + $0xb0] sm:$0xff]
        %v1975 = vld [vmem:[%s1951 + $0xb8] sm:$0xff]
        %v1976 = vld [vmem:[%s1951 + $0xc0] sm:$0xff]
        %v1977 = vld [vmem:[%s1951 + $0xc8] sm:$0xff]
        %v1978 = vld [vmem:[%s1951 + $0xd0] sm:$0xff]
        %v1979 = vld [vmem:[%s1951 + $0xd8] sm:$0xff]
        %v1980 = vld [vmem:[%s1951 + $0xe0] sm:$0xff]
        %v1981 = vld [vmem:[%s1951 + $0xe8] sm:$0xff]
        %v1982 = vld [vmem:[%s1951 + $0xf0] sm:$0xff]
        %v1983 = vld [vmem:[%s1951 + $0xf8] sm:$0xff]
        %v1984 = vld [vmem:[%s1951 + $0x100] sm:$0xff]
        %v1985 = vld [vmem:[%s1951 + $0x108] sm:$0xff]
        %v1986 = vld [vmem:[%s1951 + $0x110] sm:$0xff]
        %v1987 = vld [vmem:[%s1951 + $0x118] sm:$0xff]
        %v1988 = vld [vmem:[%s1951 + $0x120] sm:$0xff]
        %v1989 = vld [vmem:[%s1951 + $0x128] sm:$0xff]
        %v1990 = vld [vmem:[%s1951 + $0x130] sm:$0xff]
        %v1991 = vld [vmem:[%s1951 + $0x138] sm:$0xff]
        %v1992 = vld [vmem:[%s1951 + $0x140] sm:$0xff]
        %v1993 = vld [vmem:[%s1951 + $0x148] sm:$0xff]
        %v1994 = vld [vmem:[%s1951 + $0x150] sm:$0xff]
        %v1995 = vld [vmem:[%s1951 + $0x158] sm:$0xff]
        %v1996 = vld [vmem:[%s1951 + $0x160] sm:$0xff]
        %v1997 = vld [vmem:[%s1951 + $0x168] sm:$0xff]
        %v1998 = vld [vmem:[%s1951 + $0x170] sm:$0xff]
        %v1999 = vld [vmem:[%s1951 + $0x178] sm:$0xff]
        %s2000 = scalar_lea.vmem [#allocation10], 768
        %v2001 = vld [vmem:[%s2000] sm:$0xff]
        %v2002 = vld [vmem:[%s2000 + $0x8] sm:$0xff]
        %v2003 = vld [vmem:[%s2000 + $0x10] sm:$0xff]
        %v2004 = vld [vmem:[%s2000 + $0x18] sm:$0xff]
        %v2005 = vld [vmem:[%s2000 + $0x20] sm:$0xff]
        %v2006 = vld [vmem:[%s2000 + $0x28] sm:$0xff]
        %v2007 = vld [vmem:[%s2000 + $0x30] sm:$0xff]
        %v2008 = vld [vmem:[%s2000 + $0x38] sm:$0xff]
        %v2009 = vld [vmem:[%s2000 + $0x40] sm:$0xff]
        %v2010 = vld [vmem:[%s2000 + $0x48] sm:$0xff]
        %v2011 = vld [vmem:[%s2000 + $0x50] sm:$0xff]
        %v2012 = vld [vmem:[%s2000 + $0x58] sm:$0xff]
        %v2013 = vld [vmem:[%s2000 + $0x60] sm:$0xff]
        %v2014 = vld [vmem:[%s2000 + $0x68] sm:$0xff]
        %v2015 = vld [vmem:[%s2000 + $0x70] sm:$0xff]
        %v2016 = vld [vmem:[%s2000 + $0x78] sm:$0xff]
        %v2017 = vld [vmem:[%s2000 + $0x80] sm:$0xff]
        %v2018 = vld [vmem:[%s2000 + $0x88] sm:$0xff]
        %v2019 = vld [vmem:[%s2000 + $0x90] sm:$0xff]
        %v2020 = vld [vmem:[%s2000 + $0x98] sm:$0xff]
        %v2021 = vld [vmem:[%s2000 + $0xa0] sm:$0xff]
        %v2022 = vld [vmem:[%s2000 + $0xa8] sm:$0xff]
        %v2023 = vld [vmem:[%s2000 + $0xb0] sm:$0xff]
        %v2024 = vld [vmem:[%s2000 + $0xb8] sm:$0xff]
        %v2025 = vld [vmem:[%s2000 + $0xc0] sm:$0xff]
        %v2026 = vld [vmem:[%s2000 + $0xc8] sm:$0xff]
        %v2027 = vld [vmem:[%s2000 + $0xd0] sm:$0xff]
        %v2028 = vld [vmem:[%s2000 + $0xd8] sm:$0xff]
        %v2029 = vld [vmem:[%s2000 + $0xe0] sm:$0xff]
        %v2030 = vld [vmem:[%s2000 + $0xe8] sm:$0xff]
        %v2031 = vld [vmem:[%s2000 + $0xf0] sm:$0xff]
        %v2032 = vld [vmem:[%s2000 + $0xf8] sm:$0xff]
        %v2033 = vld [vmem:[%s2000 + $0x100] sm:$0xff]
        %v2034 = vld [vmem:[%s2000 + $0x108] sm:$0xff]
        %v2035 = vld [vmem:[%s2000 + $0x110] sm:$0xff]
        %v2036 = vld [vmem:[%s2000 + $0x118] sm:$0xff]
        %v2037 = vld [vmem:[%s2000 + $0x120] sm:$0xff]
        %v2038 = vld [vmem:[%s2000 + $0x128] sm:$0xff]
        %v2039 = vld [vmem:[%s2000 + $0x130] sm:$0xff]
        %v2040 = vld [vmem:[%s2000 + $0x138] sm:$0xff]
        %v2041 = vld [vmem:[%s2000 + $0x140] sm:$0xff]
        %v2042 = vld [vmem:[%s2000 + $0x148] sm:$0xff]
        %v2043 = vld [vmem:[%s2000 + $0x150] sm:$0xff]
        %v2044 = vld [vmem:[%s2000 + $0x158] sm:$0xff]
        %v2045 = vld [vmem:[%s2000 + $0x160] sm:$0xff]
        %v2046 = vld [vmem:[%s2000 + $0x168] sm:$0xff]
        %v2047 = vld [vmem:[%s2000 + $0x170] sm:$0xff]
        %v2048 = vld [vmem:[%s2000 + $0x178] sm:$0xff]
        %2049 = vmatpush.msra.mxu0 %v2016
        %2050 = vmatpush.msra.mxu0 %v2015
        %2051 = vmatpush.msra.mxu0 %v2014
        %2052 = vmatpush.msra.mxu0 %v2013
        %2053 = vmatpush.msra.mxu0 %v2012
        %2054 = vmatpush.msra.mxu0 %v2011
        %2055 = vmatpush.msra.mxu0 %v2010
        %2056 = vmatpush.msra.mxu0 %v2009
        %2057 = vmatpush.msra.mxu0 %v2008
        %2058 = vmatpush.msra.mxu0 %v2007
        %2059 = vmatpush.msra.mxu0 %v2006
        %2060 = vmatpush.msra.mxu0 %v2005
        %2061 = vmatpush.msra.mxu0 %v2004
        %2062 = vmatpush.msra.mxu0 %v2003
        %2063 = vmatpush.msra.mxu0 %v2002
        %2064 = vmatpush.msra.mxu0 %v2001
        %2065 = vmatmul.f32.gmra.mxu0 %v1952
        %v2066 = vpop.f32.mrf.mxu0
        %v2067 = vadd.f32 0.0, %v2066
        %2068 = vmatmul.f32.gmra.mxu0 %v1955
        %v2069 = vpop.f32.mrf.mxu0
        %v2070 = vadd.f32 0.0, %v2069
        %2071 = vmatmul.f32.gmra.mxu0 %v1958
        %v2072 = vpop.f32.mrf.mxu0
        %v2073 = vadd.f32 0.0, %v2072
        %2074 = vmatmul.f32.gmra.mxu0 %v1961
        %v2075 = vpop.f32.mrf.mxu0
        %v2076 = vadd.f32 0.0, %v2075
        %2077 = vmatmul.f32.gmra.mxu0 %v1964
        %v2078 = vpop.f32.mrf.mxu0
        %v2079 = vadd.f32 0.0, %v2078
        %2080 = vmatmul.f32.gmra.mxu0 %v1967
        %v2081 = vpop.f32.mrf.mxu0
        %v2082 = vadd.f32 0.0, %v2081
        %2083 = vmatmul.f32.gmra.mxu0 %v1970
        %v2084 = vpop.f32.mrf.mxu0
        %v2085 = vadd.f32 0.0, %v2084
        %2086 = vmatmul.f32.gmra.mxu0 %v1973
        %v2087 = vpop.f32.mrf.mxu0
        %v2088 = vadd.f32 0.0, %v2087
        %2089 = vmatmul.f32.gmra.mxu0 %v1976
        %v2090 = vpop.f32.mrf.mxu0
        %v2091 = vadd.f32 0.0, %v2090
        %2092 = vmatmul.f32.gmra.mxu0 %v1979
        %v2093 = vpop.f32.mrf.mxu0
        %v2094 = vadd.f32 0.0, %v2093
        %2095 = vmatmul.f32.gmra.mxu0 %v1982
        %v2096 = vpop.f32.mrf.mxu0
        %v2097 = vadd.f32 0.0, %v2096
        %2098 = vmatmul.f32.gmra.mxu0 %v1985
        %v2099 = vpop.f32.mrf.mxu0
        %v2100 = vadd.f32 0.0, %v2099
        %2101 = vmatmul.f32.gmra.mxu0 %v1988
        %v2102 = vpop.f32.mrf.mxu0
        %v2103 = vadd.f32 0.0, %v2102
        %2104 = vmatmul.f32.gmra.mxu0 %v1991
        %v2105 = vpop.f32.mrf.mxu0
        %v2106 = vadd.f32 0.0, %v2105
        %2107 = vmatmul.f32.gmra.mxu0 %v1994
        %v2108 = vpop.f32.mrf.mxu0
        %v2109 = vadd.f32 0.0, %v2108
        %2110 = vmatmul.f32.gmra.mxu0 %v1997
        %v2111 = vpop.f32.mrf.mxu0
        %v2112 = vadd.f32 0.0, %v2111
        %2113 = vdwg.mxu0
        %2114 = vmatpush.msra.mxu0 %v2032
        %2115 = vmatpush.msra.mxu0 %v2031
        %2116 = vmatpush.msra.mxu0 %v2030
        %2117 = vmatpush.msra.mxu0 %v2029
        %2118 = vmatpush.msra.mxu0 %v2028
        %2119 = vmatpush.msra.mxu0 %v2027
        %2120 = vmatpush.msra.mxu0 %v2026
        %2121 = vmatpush.msra.mxu0 %v2025
        %2122 = vmatpush.msra.mxu0 %v2024
        %2123 = vmatpush.msra.mxu0 %v2023
        %2124 = vmatpush.msra.mxu0 %v2022
        %2125 = vmatpush.msra.mxu0 %v2021
        %2126 = vmatpush.msra.mxu0 %v2020
        %2127 = vmatpush.msra.mxu0 %v2019
        %2128 = vmatpush.msra.mxu0 %v2018
        %2129 = vmatpush.msra.mxu0 %v2017
        %2130 = vmatmul.f32.gmra.mxu0 %v1953
        %v2131 = vpop.f32.mrf.mxu0
        %v2132 = vadd.f32 %v2067, %v2131
        %2133 = vmatmul.f32.gmra.mxu0 %v1956
        %v2134 = vpop.f32.mrf.mxu0
        %v2135 = vadd.f32 %v2070, %v2134
        %2136 = vmatmul.f32.gmra.mxu0 %v1959
        %v2137 = vpop.f32.mrf.mxu0
        %v2138 = vadd.f32 %v2073, %v2137
        %2139 = vmatmul.f32.gmra.mxu0 %v1962
        %v2140 = vpop.f32.mrf.mxu0
        %v2141 = vadd.f32 %v2076, %v2140
        %2142 = vmatmul.f32.gmra.mxu0 %v1965
        %v2143 = vpop.f32.mrf.mxu0
        %v2144 = vadd.f32 %v2079, %v2143
        %2145 = vmatmul.f32.gmra.mxu0 %v1968
        %v2146 = vpop.f32.mrf.mxu0
        %v2147 = vadd.f32 %v2082, %v2146
        %2148 = vmatmul.f32.gmra.mxu0 %v1971
        %v2149 = vpop.f32.mrf.mxu0
        %v2150 = vadd.f32 %v2085, %v2149
        %2151 = vmatmul.f32.gmra.mxu0 %v1974
        %v2152 = vpop.f32.mrf.mxu0
        %v2153 = vadd.f32 %v2088, %v2152
        %2154 = vmatmul.f32.gmra.mxu0 %v1977
        %v2155 = vpop.f32.mrf.mxu0
        %v2156 = vadd.f32 %v2091, %v2155
        %2157 = vmatmul.f32.gmra.mxu0 %v1980
        %v2158 = vpop.f32.mrf.mxu0
        %v2159 = vadd.f32 %v2094, %v2158
        %2160 = vmatmul.f32.gmra.mxu0 %v1983
        %v2161 = vpop.f32.mrf.mxu0
        %v2162 = vadd.f32 %v2097, %v2161
        %2163 = vmatmul.f32.gmra.mxu0 %v1986
        %v2164 = vpop.f32.mrf.mxu0
        %v2165 = vadd.f32 %v2100, %v2164
        %2166 = vmatmul.f32.gmra.mxu0 %v1989
        %v2167 = vpop.f32.mrf.mxu0
        %v2168 = vadd.f32 %v2103, %v2167
        %2169 = vmatmul.f32.gmra.mxu0 %v1992
        %v2170 = vpop.f32.mrf.mxu0
        %v2171 = vadd.f32 %v2106, %v2170
        %2172 = vmatmul.f32.gmra.mxu0 %v1995
        %v2173 = vpop.f32.mrf.mxu0
        %v2174 = vadd.f32 %v2109, %v2173
        %2175 = vmatmul.f32.gmra.mxu0 %v1998
        %v2176 = vpop.f32.mrf.mxu0
        %v2177 = vadd.f32 %v2112, %v2176
        %2178 = vdwg.mxu0
        %2179 = vmatpush.msra.mxu0 %v2048
        %2180 = vmatpush.msra.mxu0 %v2047
        %2181 = vmatpush.msra.mxu0 %v2046
        %2182 = vmatpush.msra.mxu0 %v2045
        %2183 = vmatpush.msra.mxu0 %v2044
        %2184 = vmatpush.msra.mxu0 %v2043
        %2185 = vmatpush.msra.mxu0 %v2042
        %2186 = vmatpush.msra.mxu0 %v2041
        %2187 = vmatpush.msra.mxu0 %v2040
        %2188 = vmatpush.msra.mxu0 %v2039
        %2189 = vmatpush.msra.mxu0 %v2038
        %2190 = vmatpush.msra.mxu0 %v2037
        %2191 = vmatpush.msra.mxu0 %v2036
        %2192 = vmatpush.msra.mxu0 %v2035
        %2193 = vmatpush.msra.mxu0 %v2034
        %2194 = vmatpush.msra.mxu0 %v2033
        %2195 = vmatmul.f32.gmra.mxu0 %v1954
        %v2196 = vpop.f32.mrf.mxu0
        %v2197 = vadd.f32 %v2132, %v2196
        %2198 = vmatmul.f32.gmra.mxu0 %v1957
        %v2199 = vpop.f32.mrf.mxu0
        %v2200 = vadd.f32 %v2135, %v2199
        %2201 = vmatmul.f32.gmra.mxu0 %v1960
        %v2202 = vpop.f32.mrf.mxu0
        %v2203 = vadd.f32 %v2138, %v2202
        %2204 = vmatmul.f32.gmra.mxu0 %v1963
        %v2205 = vpop.f32.mrf.mxu0
        %v2206 = vadd.f32 %v2141, %v2205
        %2207 = vmatmul.f32.gmra.mxu0 %v1966
        %v2208 = vpop.f32.mrf.mxu0
        %v2209 = vadd.f32 %v2144, %v2208
        %2210 = vmatmul.f32.gmra.mxu0 %v1969
        %v2211 = vpop.f32.mrf.mxu0
        %v2212 = vadd.f32 %v2147, %v2211
        %2213 = vmatmul.f32.gmra.mxu0 %v1972
        %v2214 = vpop.f32.mrf.mxu0
        %v2215 = vadd.f32 %v2150, %v2214
        %2216 = vmatmul.f32.gmra.mxu0 %v1975
        %v2217 = vpop.f32.mrf.mxu0
        %v2218 = vadd.f32 %v2153, %v2217
        %2219 = vmatmul.f32.gmra.mxu0 %v1978
        %v2220 = vpop.f32.mrf.mxu0
        %v2221 = vadd.f32 %v2156, %v2220
        %2222 = vmatmul.f32.gmra.mxu0 %v1981
        %v2223 = vpop.f32.mrf.mxu0
        %v2224 = vadd.f32 %v2159, %v2223
        %2225 = vmatmul.f32.gmra.mxu0 %v1984
        %v2226 = vpop.f32.mrf.mxu0
        %v2227 = vadd.f32 %v2162, %v2226
        %2228 = vmatmul.f32.gmra.mxu0 %v1987
        %v2229 = vpop.f32.mrf.mxu0
        %v2230 = vadd.f32 %v2165, %v2229
        %2231 = vmatmul.f32.gmra.mxu0 %v1990
        %v2232 = vpop.f32.mrf.mxu0
        %v2233 = vadd.f32 %v2168, %v2232
        %2234 = vmatmul.f32.gmra.mxu0 %v1993
        %v2235 = vpop.f32.mrf.mxu0
        %v2236 = vadd.f32 %v2171, %v2235
        %2237 = vmatmul.f32.gmra.mxu0 %v1996
        %v2238 = vpop.f32.mrf.mxu0
        %v2239 = vadd.f32 %v2174, %v2238
        %2240 = vmatmul.f32.gmra.mxu0 %v1999
        %v2241 = vpop.f32.mrf.mxu0
        %v2242 = vadd.f32 %v2177, %v2241
        %2243 = vdwg.mxu0
        %v2244 = vadd.f32 %v1904, %v2197
        %v2245 = vadd.f32 %v1907, %v2200
        %v2246 = vadd.f32 %v1910, %v2203
        %v2247 = vadd.f32 %v1913, %v2206
        %v2248 = vadd.f32 %v1916, %v2209
        %v2249 = vadd.f32 %v1919, %v2212
        %v2250 = vadd.f32 %v1922, %v2215
        %v2251 = vadd.f32 %v1925, %v2218
        %v2252 = vadd.f32 %v1928, %v2221
        %v2253 = vadd.f32 %v1931, %v2224
        %v2254 = vadd.f32 %v1934, %v2227
        %v2255 = vadd.f32 %v1937, %v2230
        %v2256 = vadd.f32 %v1940, %v2233
        %v2257 = vadd.f32 %v1943, %v2236
        %v2258 = vadd.f32 %v1946, %v2239
        %v2259 = vadd.f32 %v1949, %v2242
        %v2260 = vld [vmem:[%s6] sm:$0x1]
        %v2262 = vperm.slane %v2260, 0
        %v2264 = vmul.f32 %v2244, %v2262
        %v2265 = vmul.f32 %v2245, %v2262
        %v2266 = vmul.f32 %v2246, %v2262
        %v2267 = vmul.f32 %v2247, %v2262
        %v2268 = vmul.f32 %v2248, %v2262
        %v2269 = vmul.f32 %v2249, %v2262
        %v2270 = vmul.f32 %v2250, %v2262
        %v2271 = vmul.f32 %v2251, %v2262
        %v2272 = vmul.f32 %v2252, %v2262
        %v2273 = vmul.f32 %v2253, %v2262
        %v2274 = vmul.f32 %v2254, %v2262
        %v2275 = vmul.f32 %v2255, %v2262
        %v2276 = vmul.f32 %v2256, %v2262
        %v2277 = vmul.f32 %v2257, %v2262
        %v2278 = vmul.f32 %v2258, %v2262
        %v2279 = vmul.f32 %v2259, %v2262
        %v2280 = vld [vmem:[%s7] sm:$0x1]
        %v2282 = vperm.slane %v2280, 0
        %v2284 = vadd.f32 %v2264, %v2282
        %v2285 = vadd.f32 %v2265, %v2282
        %v2286 = vadd.f32 %v2266, %v2282
        %v2287 = vadd.f32 %v2267, %v2282
        %v2288 = vadd.f32 %v2268, %v2282
        %v2289 = vadd.f32 %v2269, %v2282
        %v2290 = vadd.f32 %v2270, %v2282
        %v2291 = vadd.f32 %v2271, %v2282
        %v2292 = vadd.f32 %v2272, %v2282
        %v2293 = vadd.f32 %v2273, %v2282
        %v2294 = vadd.f32 %v2274, %v2282
        %v2295 = vadd.f32 %v2275, %v2282
        %v2296 = vadd.f32 %v2276, %v2282
        %v2297 = vadd.f32 %v2277, %v2282
        %v2298 = vadd.f32 %v2278, %v2282
        %v2299 = vadd.f32 %v2279, %v2282
        %v2300 = vmin.f32 %v2284, 20.0
        %v2301 = vmin.f32 %v2285, 20.0
        %v2302 = vmin.f32 %v2286, 20.0
        %v2303 = vmin.f32 %v2287, 20.0
        %v2304 = vmin.f32 %v2288, 20.0
        %v2305 = vmin.f32 %v2289, 20.0
        %v2306 = vmin.f32 %v2290, 20.0
        %v2307 = vmin.f32 %v2291, 20.0
        %v2308 = vmin.f32 %v2292, 20.0
        %v2309 = vmin.f32 %v2293, 20.0
        %v2310 = vmin.f32 %v2294, 20.0
        %v2311 = vmin.f32 %v2295, 20.0
        %v2312 = vmin.f32 %v2296, 20.0
        %v2313 = vmin.f32 %v2297, 20.0
        %v2314 = vmin.f32 %v2298, 20.0
        %v2315 = vmin.f32 %v2299, 20.0
        %v2316 = vmul.f32 %v2300, 1.442695
        %v2317 = vpow.pop %v2316
        %v2318 = vmul.f32 %v2301, 1.442695
        %v2319 = vpow.pop %v2318
        %v2320 = vmul.f32 %v2302, 1.442695
        %v2321 = vpow.pop %v2320
        %v2322 = vmul.f32 %v2303, 1.442695
        %v2323 = vpow.pop %v2322
        %v2324 = vmul.f32 %v2304, 1.442695
        %v2325 = vpow.pop %v2324
        %v2326 = vmul.f32 %v2305, 1.442695
        %v2327 = vpow.pop %v2326
        %v2328 = vmul.f32 %v2306, 1.442695
        %v2329 = vpow.pop %v2328
        %v2330 = vmul.f32 %v2307, 1.442695
        %v2331 = vpow.pop %v2330
        %v2332 = vmul.f32 %v2308, 1.442695
        %v2333 = vpow.pop %v2332
        %v2334 = vmul.f32 %v2309, 1.442695
        %v2335 = vpow.pop %v2334
        %v2336 = vmul.f32 %v2310, 1.442695
        %v2337 = vpow.pop %v2336
        %v2338 = vmul.f32 %v2311, 1.442695
        %v2339 = vpow.pop %v2338
        %v2340 = vmul.f32 %v2312, 1.442695
        %v2341 = vpow.pop %v2340
        %v2342 = vmul.f32 %v2313, 1.442695
        %v2343 = vpow.pop %v2342
        %v2344 = vmul.f32 %v2314, 1.442695
        %v2345 = vpow.pop %v2344
        %v2346 = vmul.f32 %v2315, 1.442695
        %v2347 = vpow.pop %v2346
        %v2348 = vadd.f32 %v2317, 2.0
        %v2349 = vadd.f32 %v2319, 2.0
        %v2350 = vadd.f32 %v2321, 2.0
        %v2351 = vadd.f32 %v2323, 2.0
        %v2352 = vadd.f32 %v2325, 2.0
        %v2353 = vadd.f32 %v2327, 2.0
        %v2354 = vadd.f32 %v2329, 2.0
        %v2355 = vadd.f32 %v2331, 2.0
        %v2356 = vadd.f32 %v2333, 2.0
        %v2357 = vadd.f32 %v2335, 2.0
        %v2358 = vadd.f32 %v2337, 2.0
        %v2359 = vadd.f32 %v2339, 2.0
        %v2360 = vadd.f32 %v2341, 2.0
        %v2361 = vadd.f32 %v2343, 2.0
        %v2362 = vadd.f32 %v2345, 2.0
        %v2363 = vadd.f32 %v2347, 2.0
        %v2364 = vmul.f32 %v2317, %v2348
        %v2365 = vmul.f32 %v2319, %v2349
        %v2366 = vmul.f32 %v2321, %v2350
        %v2367 = vmul.f32 %v2323, %v2351
        %v2368 = vmul.f32 %v2325, %v2352
        %v2369 = vmul.f32 %v2327, %v2353
        %v2370 = vmul.f32 %v2329, %v2354
        %v2371 = vmul.f32 %v2331, %v2355
        %v2372 = vmul.f32 %v2333, %v2356
        %v2373 = vmul.f32 %v2335, %v2357
        %v2374 = vmul.f32 %v2337, %v2358
        %v2375 = vmul.f32 %v2339, %v2359
        %v2376 = vmul.f32 %v2341, %v2360
        %v2377 = vmul.f32 %v2343, %v2361
        %v2378 = vmul.f32 %v2345, %v2362
        %v2379 = vmul.f32 %v2347, %v2363
        %v2380 = vadd.f32 %v2364, 2.0
        %v2381 = vadd.f32 %v2365, 2.0
        %v2382 = vadd.f32 %v2366, 2.0
        %v2383 = vadd.f32 %v2367, 2.0
        %v2384 = vadd.f32 %v2368, 2.0
        %v2385 = vadd.f32 %v2369, 2.0
        %v2386 = vadd.f32 %v2370, 2.0
        %v2387 = vadd.f32 %v2371, 2.0
        %v2388 = vadd.f32 %v2372, 2.0
        %v2389 = vadd.f32 %v2373, 2.0
        %v2390 = vadd.f32 %v2374, 2.0
        %v2391 = vadd.f32 %v2375, 2.0
        %v2392 = vadd.f32 %v2376, 2.0
        %v2393 = vadd.f32 %v2377, 2.0
        %v2394 = vadd.f32 %v2378, 2.0
        %v2395 = vadd.f32 %v2379, 2.0
        %v2396 = vrcp.pop %v2380
        %v2397 = vmul.f32 %v2380, %v2396
        %v2398 = vsub.f32 1.0, %v2397
        %v2399 = vmul.f32 %v2396, %v2398
        %v2400 = vadd.f32 %v2396, %v2399
        %vm2401 = vweird.f32 %v2380
        %vm2402 = vweird.f32 %v2396
        %vm2403 = vmor %vm2401, %vm2402
        %v2404 = vsel %vm2403, %v2396, %v2400
        %v2405 = vand.u32 2147483647, %v2380
        %vm2406 = vcmp.eq.f32.partialorder %v2405, 8.507059e+37
        %v2407 = vand.u32 %v2380, 2147483648
        %v2408 = vor.u32 1.1754944e-38, %v2407
        %v2409 = vsel %vm2406, %v2408, %v2404
        %v2410 = vmul.f32 %v2364, %v2409
        %v2411 = vrcp.pop %v2381
        %v2412 = vmul.f32 %v2381, %v2411
        %v2413 = vsub.f32 1.0, %v2412
        %v2414 = vmul.f32 %v2411, %v2413
        %v2415 = vadd.f32 %v2411, %v2414
        %vm2416 = vweird.f32 %v2381
        %vm2417 = vweird.f32 %v2411
        %vm2418 = vmor %vm2416, %vm2417
        %v2419 = vsel %vm2418, %v2411, %v2415
        %v2420 = vand.u32 2147483647, %v2381
        %vm2421 = vcmp.eq.f32.partialorder %v2420, 8.507059e+37
        %v2422 = vand.u32 %v2381, 2147483648
        %v2423 = vor.u32 1.1754944e-38, %v2422
        %v2424 = vsel %vm2421, %v2423, %v2419
        %v2425 = vmul.f32 %v2365, %v2424
        %v2426 = vrcp.pop %v2382
        %v2427 = vmul.f32 %v2382, %v2426
        %v2428 = vsub.f32 1.0, %v2427
        %v2429 = vmul.f32 %v2426, %v2428
        %v2430 = vadd.f32 %v2426, %v2429
        %vm2431 = vweird.f32 %v2382
        %vm2432 = vweird.f32 %v2426
        %vm2433 = vmor %vm2431, %vm2432
        %v2434 = vsel %vm2433, %v2426, %v2430
        %v2435 = vand.u32 2147483647, %v2382
        %vm2436 = vcmp.eq.f32.partialorder %v2435, 8.507059e+37
        %v2437 = vand.u32 %v2382, 2147483648
        %v2438 = vor.u32 1.1754944e-38, %v2437
        %v2439 = vsel %vm2436, %v2438, %v2434
        %v2440 = vmul.f32 %v2366, %v2439
        %v2441 = vrcp.pop %v2383
        %v2442 = vmul.f32 %v2383, %v2441
        %v2443 = vsub.f32 1.0, %v2442
        %v2444 = vmul.f32 %v2441, %v2443
        %v2445 = vadd.f32 %v2441, %v2444
        %vm2446 = vweird.f32 %v2383
        %vm2447 = vweird.f32 %v2441
        %vm2448 = vmor %vm2446, %vm2447
        %v2449 = vsel %vm2448, %v2441, %v2445
        %v2450 = vand.u32 2147483647, %v2383
        %vm2451 = vcmp.eq.f32.partialorder %v2450, 8.507059e+37
        %v2452 = vand.u32 %v2383, 2147483648
        %v2453 = vor.u32 1.1754944e-38, %v2452
        %v2454 = vsel %vm2451, %v2453, %v2449
        %v2455 = vmul.f32 %v2367, %v2454
        %v2456 = vrcp.pop %v2384
        %v2457 = vmul.f32 %v2384, %v2456
        %v2458 = vsub.f32 1.0, %v2457
        %v2459 = vmul.f32 %v2456, %v2458
        %v2460 = vadd.f32 %v2456, %v2459
        %vm2461 = vweird.f32 %v2384
        %vm2462 = vweird.f32 %v2456
        %vm2463 = vmor %vm2461, %vm2462
        %v2464 = vsel %vm2463, %v2456, %v2460
        %v2465 = vand.u32 2147483647, %v2384
        %vm2466 = vcmp.eq.f32.partialorder %v2465, 8.507059e+37
        %v2467 = vand.u32 %v2384, 2147483648
        %v2468 = vor.u32 1.1754944e-38, %v2467
        %v2469 = vsel %vm2466, %v2468, %v2464
        %v2470 = vmul.f32 %v2368, %v2469
        %v2471 = vrcp.pop %v2385
        %v2472 = vmul.f32 %v2385, %v2471
        %v2473 = vsub.f32 1.0, %v2472
        %v2474 = vmul.f32 %v2471, %v2473
        %v2475 = vadd.f32 %v2471, %v2474
        %vm2476 = vweird.f32 %v2385
        %vm2477 = vweird.f32 %v2471
        %vm2478 = vmor %vm2476, %vm2477
        %v2479 = vsel %vm2478, %v2471, %v2475
        %v2480 = vand.u32 2147483647, %v2385
        %vm2481 = vcmp.eq.f32.partialorder %v2480, 8.507059e+37
        %v2482 = vand.u32 %v2385, 2147483648
        %v2483 = vor.u32 1.1754944e-38, %v2482
        %v2484 = vsel %vm2481, %v2483, %v2479
        %v2485 = vmul.f32 %v2369, %v2484
        %v2486 = vrcp.pop %v2386
        %v2487 = vmul.f32 %v2386, %v2486
        %v2488 = vsub.f32 1.0, %v2487
        %v2489 = vmul.f32 %v2486, %v2488
        %v2490 = vadd.f32 %v2486, %v2489
        %vm2491 = vweird.f32 %v2386
        %vm2492 = vweird.f32 %v2486
        %vm2493 = vmor %vm2491, %vm2492
        %v2494 = vsel %vm2493, %v2486, %v2490
        %v2495 = vand.u32 2147483647, %v2386
        %vm2496 = vcmp.eq.f32.partialorder %v2495, 8.507059e+37
        %v2497 = vand.u32 %v2386, 2147483648
        %v2498 = vor.u32 1.1754944e-38, %v2497
        %v2499 = vsel %vm2496, %v2498, %v2494
        %v2500 = vmul.f32 %v2370, %v2499
        %v2501 = vrcp.pop %v2387
        %v2502 = vmul.f32 %v2387, %v2501
        %v2503 = vsub.f32 1.0, %v2502
        %v2504 = vmul.f32 %v2501, %v2503
        %v2505 = vadd.f32 %v2501, %v2504
        %vm2506 = vweird.f32 %v2387
        %vm2507 = vweird.f32 %v2501
        %vm2508 = vmor %vm2506, %vm2507
        %v2509 = vsel %vm2508, %v2501, %v2505
        %v2510 = vand.u32 2147483647, %v2387
        %vm2511 = vcmp.eq.f32.partialorder %v2510, 8.507059e+37
        %v2512 = vand.u32 %v2387, 2147483648
        %v2513 = vor.u32 1.1754944e-38, %v2512
        %v2514 = vsel %vm2511, %v2513, %v2509
        %v2515 = vmul.f32 %v2371, %v2514
        %v2516 = vrcp.pop %v2388
        %v2517 = vmul.f32 %v2388, %v2516
        %v2518 = vsub.f32 1.0, %v2517
        %v2519 = vmul.f32 %v2516, %v2518
        %v2520 = vadd.f32 %v2516, %v2519
        %vm2521 = vweird.f32 %v2388
        %vm2522 = vweird.f32 %v2516
        %vm2523 = vmor %vm2521, %vm2522
        %v2524 = vsel %vm2523, %v2516, %v2520
        %v2525 = vand.u32 2147483647, %v2388
        %vm2526 = vcmp.eq.f32.partialorder %v2525, 8.507059e+37
        %v2527 = vand.u32 %v2388, 2147483648
        %v2528 = vor.u32 1.1754944e-38, %v2527
        %v2529 = vsel %vm2526, %v2528, %v2524
        %v2530 = vmul.f32 %v2372, %v2529
        %v2531 = vrcp.pop %v2389
        %v2532 = vmul.f32 %v2389, %v2531
        %v2533 = vsub.f32 1.0, %v2532
        %v2534 = vmul.f32 %v2531, %v2533
        %v2535 = vadd.f32 %v2531, %v2534
        %vm2536 = vweird.f32 %v2389
        %vm2537 = vweird.f32 %v2531
        %vm2538 = vmor %vm2536, %vm2537
        %v2539 = vsel %vm2538, %v2531, %v2535
        %v2540 = vand.u32 2147483647, %v2389
        %vm2541 = vcmp.eq.f32.partialorder %v2540, 8.507059e+37
        %v2542 = vand.u32 %v2389, 2147483648
        %v2543 = vor.u32 1.1754944e-38, %v2542
        %v2544 = vsel %vm2541, %v2543, %v2539
        %v2545 = vmul.f32 %v2373, %v2544
        %v2546 = vrcp.pop %v2390
        %v2547 = vmul.f32 %v2390, %v2546
        %v2548 = vsub.f32 1.0, %v2547
        %v2549 = vmul.f32 %v2546, %v2548
        %v2550 = vadd.f32 %v2546, %v2549
        %vm2551 = vweird.f32 %v2390
        %vm2552 = vweird.f32 %v2546
        %vm2553 = vmor %vm2551, %vm2552
        %v2554 = vsel %vm2553, %v2546, %v2550
        %v2555 = vand.u32 2147483647, %v2390
        %vm2556 = vcmp.eq.f32.partialorder %v2555, 8.507059e+37
        %v2557 = vand.u32 %v2390, 2147483648
        %v2558 = vor.u32 1.1754944e-38, %v2557
        %v2559 = vsel %vm2556, %v2558, %v2554
        %v2560 = vmul.f32 %v2374, %v2559
        %v2561 = vrcp.pop %v2391
        %v2562 = vmul.f32 %v2391, %v2561
        %v2563 = vsub.f32 1.0, %v2562
        %v2564 = vmul.f32 %v2561, %v2563
        %v2565 = vadd.f32 %v2561, %v2564
        %vm2566 = vweird.f32 %v2391
        %vm2567 = vweird.f32 %v2561
        %vm2568 = vmor %vm2566, %vm2567
        %v2569 = vsel %vm2568, %v2561, %v2565
        %v2570 = vand.u32 2147483647, %v2391
        %vm2571 = vcmp.eq.f32.partialorder %v2570, 8.507059e+37
        %v2572 = vand.u32 %v2391, 2147483648
        %v2573 = vor.u32 1.1754944e-38, %v2572
        %v2574 = vsel %vm2571, %v2573, %v2569
        %v2575 = vmul.f32 %v2375, %v2574
        %v2576 = vrcp.pop %v2392
        %v2577 = vmul.f32 %v2392, %v2576
        %v2578 = vsub.f32 1.0, %v2577
        %v2579 = vmul.f32 %v2576, %v2578
        %v2580 = vadd.f32 %v2576, %v2579
        %vm2581 = vweird.f32 %v2392
        %vm2582 = vweird.f32 %v2576
        %vm2583 = vmor %vm2581, %vm2582
        %v2584 = vsel %vm2583, %v2576, %v2580
        %v2585 = vand.u32 2147483647, %v2392
        %vm2586 = vcmp.eq.f32.partialorder %v2585, 8.507059e+37
        %v2587 = vand.u32 %v2392, 2147483648
        %v2588 = vor.u32 1.1754944e-38, %v2587
        %v2589 = vsel %vm2586, %v2588, %v2584
        %v2590 = vmul.f32 %v2376, %v2589
        %v2591 = vrcp.pop %v2393
        %v2592 = vmul.f32 %v2393, %v2591
        %v2593 = vsub.f32 1.0, %v2592
        %v2594 = vmul.f32 %v2591, %v2593
        %v2595 = vadd.f32 %v2591, %v2594
        %vm2596 = vweird.f32 %v2393
        %vm2597 = vweird.f32 %v2591
        %vm2598 = vmor %vm2596, %vm2597
        %v2599 = vsel %vm2598, %v2591, %v2595
        %v2600 = vand.u32 2147483647, %v2393
        %vm2601 = vcmp.eq.f32.partialorder %v2600, 8.507059e+37
        %v2602 = vand.u32 %v2393, 2147483648
        %v2603 = vor.u32 1.1754944e-38, %v2602
        %v2604 = vsel %vm2601, %v2603, %v2599
        %v2605 = vmul.f32 %v2377, %v2604
        %v2606 = vrcp.pop %v2394
        %v2607 = vmul.f32 %v2394, %v2606
        %v2608 = vsub.f32 1.0, %v2607
        %v2609 = vmul.f32 %v2606, %v2608
        %v2610 = vadd.f32 %v2606, %v2609
        %vm2611 = vweird.f32 %v2394
        %vm2612 = vweird.f32 %v2606
        %vm2613 = vmor %vm2611, %vm2612
        %v2614 = vsel %vm2613, %v2606, %v2610
        %v2615 = vand.u32 2147483647, %v2394
        %vm2616 = vcmp.eq.f32.partialorder %v2615, 8.507059e+37
        %v2617 = vand.u32 %v2394, 2147483648
        %v2618 = vor.u32 1.1754944e-38, %v2617
        %v2619 = vsel %vm2616, %v2618, %v2614
        %v2620 = vmul.f32 %v2378, %v2619
        %v2621 = vrcp.pop %v2395
        %v2622 = vmul.f32 %v2395, %v2621
        %v2623 = vsub.f32 1.0, %v2622
        %v2624 = vmul.f32 %v2621, %v2623
        %v2625 = vadd.f32 %v2621, %v2624
        %vm2626 = vweird.f32 %v2395
        %vm2627 = vweird.f32 %v2621
        %vm2628 = vmor %vm2626, %vm2627
        %v2629 = vsel %vm2628, %v2621, %v2625
        %v2630 = vand.u32 2147483647, %v2395
        %vm2631 = vcmp.eq.f32.partialorder %v2630, 8.507059e+37
        %v2632 = vand.u32 %v2395, 2147483648
        %v2633 = vor.u32 1.1754944e-38, %v2632
        %v2634 = vsel %vm2631, %v2633, %v2629
        %v2635 = vmul.f32 %v2379, %v2634
        %vm2636 = vcmp.gt.f32.partialorder %v2284, 20.0
        %vm2637 = vcmp.gt.f32.partialorder %v2285, 20.0
        %vm2638 = vcmp.gt.f32.partialorder %v2286, 20.0
        %vm2639 = vcmp.gt.f32.partialorder %v2287, 20.0
        %vm2640 = vcmp.gt.f32.partialorder %v2288, 20.0
        %vm2641 = vcmp.gt.f32.partialorder %v2289, 20.0
        %vm2642 = vcmp.gt.f32.partialorder %v2290, 20.0
        %vm2643 = vcmp.gt.f32.partialorder %v2291, 20.0
        %vm2644 = vcmp.gt.f32.partialorder %v2292, 20.0
        %vm2645 = vcmp.gt.f32.partialorder %v2293, 20.0
        %vm2646 = vcmp.gt.f32.partialorder %v2294, 20.0
        %vm2647 = vcmp.gt.f32.partialorder %v2295, 20.0
        %vm2648 = vcmp.gt.f32.partialorder %v2296, 20.0
        %vm2649 = vcmp.gt.f32.partialorder %v2297, 20.0
        %vm2650 = vcmp.gt.f32.partialorder %v2298, 20.0
        %vm2651 = vcmp.gt.f32.partialorder %v2299, 20.0
        %v2652 = vmul.f32 %v2284, %v2410
        %v2653 = vmul.f32 %v2285, %v2425
        %v2654 = vmul.f32 %v2286, %v2440
        %v2655 = vmul.f32 %v2287, %v2455
        %v2656 = vmul.f32 %v2288, %v2470
        %v2657 = vmul.f32 %v2289, %v2485
        %v2658 = vmul.f32 %v2290, %v2500
        %v2659 = vmul.f32 %v2291, %v2515
        %v2660 = vmul.f32 %v2292, %v2530
        %v2661 = vmul.f32 %v2293, %v2545
        %v2662 = vmul.f32 %v2294, %v2560
        %v2663 = vmul.f32 %v2295, %v2575
        %v2664 = vmul.f32 %v2296, %v2590
        %v2665 = vmul.f32 %v2297, %v2605
        %v2666 = vmul.f32 %v2298, %v2620
        %v2667 = vmul.f32 %v2299, %v2635
        %v2668 = vsel %vm2636, %v2284, %v2652
        %v2669 = vsel %vm2637, %v2285, %v2653
        %v2670 = vsel %vm2638, %v2286, %v2654
        %v2671 = vsel %vm2639, %v2287, %v2655
        %v2672 = vsel %vm2640, %v2288, %v2656
        %v2673 = vsel %vm2641, %v2289, %v2657
        %v2674 = vsel %vm2642, %v2290, %v2658
        %v2675 = vsel %vm2643, %v2291, %v2659
        %v2676 = vsel %vm2644, %v2292, %v2660
        %v2677 = vsel %vm2645, %v2293, %v2661
        %v2678 = vsel %vm2646, %v2294, %v2662
        %v2679 = vsel %vm2647, %v2295, %v2663
        %v2680 = vsel %vm2648, %v2296, %v2664
        %v2681 = vsel %vm2649, %v2297, %v2665
        %v2682 = vsel %vm2650, %v2298, %v2666
        %v2683 = vsel %vm2651, %v2299, %v2667
        %v2684 = vadd.f32 %v2668, %v421
        %v2685 = vadd.f32 %v2669, %v422
        %v2686 = vadd.f32 %v2670, %v423
        %v2687 = vadd.f32 %v2671, %v424
        %v2688 = vadd.f32 %v2672, %v425
        %v2689 = vadd.f32 %v2673, %v426
        %v2690 = vadd.f32 %v2674, %v427
        %v2691 = vadd.f32 %v2675, %v428
        %v2692 = vadd.f32 %v2676, %v429
        %v2693 = vadd.f32 %v2677, %v430
        %v2694 = vadd.f32 %v2678, %v431
        %v2695 = vadd.f32 %v2679, %v432
        %v2696 = vadd.f32 %v2680, %v433
        %v2697 = vadd.f32 %v2681, %v434
        %v2698 = vadd.f32 %v2682, %v435
        %v2699 = vadd.f32 %v2683, %v436
        %2700 = vst [vmem:[%s355] sm:$0xff] %v2684
        %2701 = vst [vmem:[%s355 + $0x8] sm:$0xff] %v2685
        %2702 = vst [vmem:[%s355 + $0x10] sm:$0xff] %v2686
        %2703 = vst [vmem:[%s355 + $0x18] sm:$0xff] %v2687
        %2704 = vst [vmem:[%s355 + $0x20] sm:$0xff] %v2688
        %2705 = vst [vmem:[%s355 + $0x28] sm:$0xff] %v2689
        %2706 = vst [vmem:[%s355 + $0x30] sm:$0xff] %v2690
        %2707 = vst [vmem:[%s355 + $0x38] sm:$0xff] %v2691
        %2708 = vst [vmem:[%s355 + $0x40] sm:$0xff] %v2692
        %2709 = vst [vmem:[%s355 + $0x48] sm:$0xff] %v2693
        %2710 = vst [vmem:[%s355 + $0x50] sm:$0xff] %v2694
        %2711 = vst [vmem:[%s355 + $0x58] sm:$0xff] %v2695
        %2712 = vst [vmem:[%s355 + $0x60] sm:$0xff] %v2696
        %2713 = vst [vmem:[%s355 + $0x68] sm:$0xff] %v2697
        %2714 = vst [vmem:[%s355 + $0x70] sm:$0xff] %v2698
        %2715 = vst [vmem:[%s355 + $0x78] sm:$0xff] %v2699
        %s2716 = sand.u32 %s206, 1
        %s2717 = scalar_lea.sflag [#allocation7], %s2716
        %s2718 = sand.u32 %s206, 1
        %s2719 = smul.addr %s2718, 128
        %s2720 = scalar_lea.vmem [#allocation11], %s2719
        // Predicated region
        $region85: #{tpu_custom_call.1} parent=47 // pred_check
          %p2721 = pneg %p216
        $region86: #{tpu_custom_call.1} parent=47 // pred_check_branch
          %2723 = sbr.rel (%p2721) target = $region88
        $region87: #{tpu_custom_call.1} parent=47 // pred_region
          %s2724 = smul.u32 %s30, 2
          %s2725 = sadd.s32 %s2724, %s31
          %s2726 = smul.u32 8, %s2725
          %2728 = vsyncadd %s2717, 0
          %s2729 = smul.addr %s2726, 2
          %s2730 = smul.addr %s2729, 8
          %s2731 = scalar_lea.hbm %s8, %s2730
          %s2732 = sshll.u32 %s2720, 4
          %s2733 = int_to_ptr.vmem [resolvable:$true] %s2732
          %s2734 = sshll.u32 %s2731, 4
          %s2735 = int_to_ptr.hbm [resolvable:$true] %s2734
          %2740 = dma.vmem_to_hbm [thread:$0]  %s2733, 2048, %s2735, %s2717, 128, 128, 8
        $region88: #{tpu_custom_call.1} parent=47 // pred_fallthru
          _
      $region48: #{tpu_custom_call.1} parent=5 // pred_fallthru
        _
      %p2741 = scmp.le.s32.totalorder 2, %s21
      // Predicated region
      $region89: #{tpu_custom_call.1} parent=5 // pred_check
        %p2742 = pneg %p2741
      $region90: #{tpu_custom_call.1} parent=5 // pred_check_branch
        %2744 = sbr.rel (%p2742) target = $region92
      $region91: #{tpu_custom_call.1} parent=5 // pred_region
        %s2745 = ssub.s32 %s21, 2
        // Predicated region
        $region93: #{tpu_custom_call.1} parent=91 // pred_check
          %p2746 = pneg %p222
        $region94: #{tpu_custom_call.1} parent=91 // pred_check_branch
          %2748 = sbr.rel (%p2746) target = $region96
        $region95: #{tpu_custom_call.1} parent=91 // pred_region
          %s2749 = sand.u32 %s207, 1
          %s2750 = scalar_lea.sflag [#allocation7], %s2749
          %s2751 = sand.u32 %s207, 1
          %s2752 = smul.addr %s2751, 128
          %s2753 = scalar_lea.vmem [#allocation11], %s2752
          %2755 = dma.done %s2750, 2048
        $region96: #{tpu_custom_call.1} parent=91 // pred_fallthru
          _
      $region92: #{tpu_custom_call.1} parent=5 // pred_fallthru
        _
    $region6: #{tpu_custom_call.1} parent=1 // loop_footer
      %s25 = sadd.s32 1, %s21
    $region7: #{tpu_custom_call.1} parent=1 // loop_footer_branch
      %20 = sbr.rel target = $region3
    $region8: #{tpu_custom_call.1} parent=1 // loop_exit
      _
    %2756 = vsyncpa [#allocation6], 1
    %s2757 = scalar_lea.sflag [#allocation6], 1
    %2758 = vsyncpa %s2757, 1
    %2759 = vsyncpa [#allocation9], 1
    %2760 = vsyncpa [#allocation7], 1
    %s2761 = scalar_lea.sflag [#allocation7], 1
    %2762 = vsyncpa %s2761, 1
  %2763 = vsyncmov [#allocation4]
  %s2764 = vpop.sfrf %2763
  %p2765 = scmp.eq.s32.totalorder %s2764, 0
  %p2766 = pneg %p2765
  %2768 = shalt.err (%p2766)
  %s2769 = scalar_lea.sflag [#allocation4], 1
  %2770 = vsyncmov %s2769
  %s2771 = vpop.sfrf %2770
  %p2772 = scmp.eq.s32.totalorder %s2771, 0
  %p2773 = pneg %p2772
  %2775 = shalt.err (%p2773)

</llo_original>
